<compile_context>
chip_gen: v7x
topology: tpu7x:2x2x1
jax: 0.10.0
libtpu: 0.0.40
codegen_flags: <defaults>
</compile_context>

<pallas_src>
import functools
import math

import jax
import jax.numpy as jnp
from jax.experimental import pallas as pl
from jax.experimental.pallas import tpu as pltpu


def _pick_batch_tile(n):
    """Largest batch tile <= 8 dividing N, preferring a grid of >= 2 steps."""
    divisors = [d for d in range(1, min(n, 8) + 1) if n % d == 0]
    multi = [d for d in divisors if n // d >= 2]
    return max(multi) if multi else max(divisors)


def _attention_kernel(x_ref, w1_ref, b1_ref, w2_ref, b2_ref, wt_ref, bs_ref,
                      o_ref, pad_ref, *, NT, H, W, PAD):
    HW = H * W
    x = x_ref[...]                                        # (NT, C, HW) f32

    # ---- channel attention: global avg pool -> 1x1 -> ReLU -> 1x1 -> sigmoid
    mean_c = jnp.mean(x, axis=2, keepdims=True)           # (NT, C, 1)
    h = jnp.sum(w1_ref[...][None, :, :] * mean_c, axis=1, keepdims=True)
    h = jnp.maximum(h + b1_ref[...], 0.0)                 # (NT, 1, C8)
    logit = jnp.sum(w2_ref[...][None, :, :] * h, axis=2, keepdims=True)
    logit = logit + b2_ref[...]                           # (NT, C, 1)
    ch_att = 1.0 / (1.0 + jnp.exp(-logit))                # exact sigmoid
    xs = x * ch_att                                       # (NT, C, HW)

    # ---- spatial-attention input: per-pixel channel mean & max, stacked into
    # the sublane axis of one zero-halo scratch row block.
    avg_r = jnp.mean(xs, axis=1)                          # (NT, HW)
    max_r = jnp.max(xs, axis=1)                           # (NT, HW)

    zeros_halo = jnp.zeros((2 * NT, PAD), jnp.float32)
    pad_ref[:, pl.ds(0, PAD)] = zeros_halo                # left halo
    pad_ref[:, pl.ds(PAD + HW, PAD)] = zeros_halo         # right halo
    pad_ref[pl.ds(0, NT), pl.ds(PAD, HW)] = avg_r         # lane-aligned stores
    pad_ref[pl.ds(NT, NT), pl.ds(PAD, HW)] = max_r

    # Row / column index of every flattened output position (for edge masks).
    idx = jax.lax.broadcasted_iota(jnp.int32, (1, HW), 1)
    if W & (W - 1) == 0:                                  # power of two: shifts only
        h_idx = jnp.right_shift(idx, int(math.log2(W)))
        w_idx = jnp.bitwise_and(idx, W - 1)
    else:
        h_idx = idx // W
        w_idx = idx - h_idx * W

    def edge_mask(pos, d, limit):
        # Only one side can ever be out of range for a given offset d.
        if d < 0:
            return pos >= -d
        if d > 0:
            return pos < limit - d
        return None

    hmask = [edge_mask(h_idx, dh, H) for dh in range(-3, 4)]   # hoisted
    wmask = [edge_mask(w_idx, dw, W) for dw in range(-3, 4)]   # hoisted

    wt = wt_ref[...]                                      # (2*NT, 49) tap weights

    # 7x7 conv over [avg, max] with zero padding 3, fully unrolled (49 taps).
    acc = jnp.zeros((2 * NT, HW), jnp.float32)
    for dh in range(-3, 4):
        hm = hmask[dh + 3]
        for dw in range(-3, 4):
            wm = wmask[dw + 3]
            s = dh * W + dw
            t = (dh + 3) * 7 + (dw + 3)
            win = pad_ref[:, pl.ds(PAD + s, HW)]          # single (2NT, HW) load
            tap = win * wt[:, t:t + 1]                    # per-sublane tap weight
            if hm is None and wm is None:
                masked = tap                              # centre tap: no mask
            else:
                m = hm if wm is None else (wm if hm is None else (hm & wm))
                masked = jnp.where(m, tap, 0.0)
            acc = acc + masked

    conv = acc[0:NT, :] + acc[NT:2 * NT, :] + bs_ref[0, 0]     # (NT, HW)
    sp_att = 1.0 / (1.0 + jnp.exp(-conv))                      # (NT, HW)

    o_ref[...] = (xs * sp_att[:, None, :]).astype(o_ref.dtype)  # lane-dense store


def attention_block_forward(x, w1, b1, w2, b2, ws, bs):
    """Forward of AttentionBlock(channels=C).

    x : (N, C, H, W) f32
    w1: (C//8, C, 1, 1), b1: (C//8,)   -- channel_attention 1x1 conv #1
    w2: (C, C//8, 1, 1), b2: (C,)      -- channel_attention 1x1 conv #2
    ws: (1, 2, 7, 7),    bs: (1,)      -- spatial_attention 7x7 conv
    """
    N, C, H, W = x.shape
    C8 = w1.shape[0]
    HW = H * W
    assert HW % 128 == 0 and C % 8 == 0, "layout expects lane/sublane aligned shapes"

    NT = _pick_batch_tile(N)
    grid = N // NT

    x_rows = x.reshape(N, C, HW)                  # free view, H*W on lanes
    w1t = w1.reshape(C8, C).T                     # (C, C8)
    b1r = b1.reshape(1, C8)
    w2m = w2.reshape(C, C8)
    b2c = b2.reshape(C, 1)
    ws2 = ws.reshape(2, 7 * 7)                    # (2, 49)
    # Per-sublane tap-weight table: rows [0,NT) = avg weights, [NT,2NT) = max weights.
    w_tab = jnp.concatenate(
        [jnp.broadcast_to(ws2[0:1], (NT, 49)),
         jnp.broadcast_to(ws2[1:2], (NT, 49))], axis=0)         # (2*NT, 49)
    bs2 = bs.reshape(1, 1)

    PAD = ((3 * W + 3 + 127) // 128) * 128        # lane-aligned halo for 7x7 taps
    PADW = HW + 2 * PAD

    flops = int(N * (6 * C * HW + 4 * 49 * 2 * HW + 4 * C * C8))
    bytes_accessed = int(4 * (2 * N * C * HW + 2 * C * C8 + C + C8 + 2 * 49 + 1))

    kernel = functools.partial(_attention_kernel, NT=NT, H=H, W=W, PAD=PAD)
    out_rows = pl.pallas_call(
        kernel,
        out_shape=jax.ShapeDtypeStruct((N, C, HW), jnp.float32),
        grid_spec=pltpu.PrefetchScalarGridSpec(
            num_scalar_prefetch=0,
            grid=(grid,),
            in_specs=[
                pl.BlockSpec((NT, C, HW), lambda n: (n, 0, 0)),
                pl.BlockSpec((C, C8), lambda n: (0, 0)),
                pl.BlockSpec((1, C8), lambda n: (0, 0)),
                pl.BlockSpec((C, C8), lambda n: (0, 0)),
                pl.BlockSpec((C, 1), lambda n: (0, 0)),
                pl.BlockSpec((2 * NT, 49), lambda n: (0, 0)),
                pl.BlockSpec(memory_space=pltpu.MemorySpace.SMEM),
            ],
            out_specs=pl.BlockSpec((NT, C, HW), lambda n: (n, 0, 0)),
            scratch_shapes=[
                pltpu.VMEM((2 * NT, PADW), jnp.float32),
            ],
        ),
        compiler_params=pltpu.CompilerParams(
            dimension_semantics=("parallel",),    # batch tiles independent
            vmem_limit_bytes=32 * 1024 * 1024,
        ),
        cost_estimate=pl.CostEstimate(
            flops=flops,
            transcendentals=int(N * (C + HW)),
            bytes_accessed=bytes_accessed,
        ),
    )(x_rows, w1t, b1r, w2m, b2c, w_tab, bs2)

    return out_rows.reshape(N, C, H, W)


# ---------------------------------------------------------------------------
# Pure-JAX reference for verification
# ---------------------------------------------------------------------------
def attention_block_ref(x, w1, b1, w2, b2, ws, bs):
    N, C, H, W = x.shape
    C8 = w1.shape[0]
    pooled = jnp.mean(x, axis=(2, 3))                                # (N, C)
    h = jnp.maximum(pooled @ w1.reshape(C8, C).T + b1[None, :], 0.0) # (N, C8)
    att = jax.nn.sigmoid(h @ w2.reshape(C, C8).T + b2[None, :])      # (N, C)
    xs = x * att[:, :, None, None]
    avg = jnp.mean(xs, axis=1, keepdims=True)
    mx = jnp.max(xs, axis=1, keepdims=True)
    sp_in = jnp.concatenate([avg, mx], axis=1)                       # (N, 2, H, W)
    sp = jax.lax.conv_general_dilated(
        sp_in, ws, window_strides=(1, 1), padding=((3, 3), (3, 3)),
        dimension_numbers=("NCHW", "OIHW", "NCHW")) + bs[None, :, None, None]
    sp = jax.nn.sigmoid(sp)
    return xs * sp


if __name__ == "__main__":
    key = jax.random.PRNGKey(0)
    ks = jax.random.split(key, 7)

    # channels must be >= 8 (module builds Conv2d(C, C // 8, 1)), so use C=32.
    N, C, H, W = 2, 32, 16, 16
    C8 = C // 8

    x = jax.random.normal(ks[0], (N, C, H, W), dtype=jnp.float32)
    w1 = jax.random.normal(ks[1], (C8, C, 1, 1), dtype=jnp.float32) * 0.2
    b1 = jax.random.normal(ks[2], (C8,), dtype=jnp.float32) * 0.1
    w2 = jax.random.normal(ks[3], (C, C8, 1, 1), dtype=jnp.float32) * 0.2
    b2 = jax.random.normal(ks[4], (C,), dtype=jnp.float32) * 0.1
    ws = jax.random.normal(ks[5], (1, 2, 7, 7), dtype=jnp.float32) * 0.1
    bs = jax.random.normal(ks[6], (1,), dtype=jnp.float32) * 0.1

    out = jax.jit(attention_block_forward)(x, w1, b1, w2, b2, ws, bs)
    out = jax.block_until_ready(out)

    ref = attention_block_ref(x, w1, b1, w2, b2, ws, bs)
    assert out.shape == (N, C, H, W)
    err = float(jnp.max(jnp.abs(out - ref)))
    assert err < 1e-4, err

    print("KERNEL_OK")
</pallas_src>

<mosaic_0001>
module attributes {stable_mosaic.version = 11 : i64} {
  func.func @_attention_kernel(%arg0: i32, %arg1: memref<1x32x256xf32, #tpu.memory_space<vmem>>, %arg2: memref<32x4xf32, #tpu.memory_space<vmem>>, %arg3: memref<1x4xf32, #tpu.memory_space<vmem>>, %arg4: memref<32x4xf32, #tpu.memory_space<vmem>>, %arg5: memref<32x1xf32, #tpu.memory_space<vmem>>, %arg6: memref<2x49xf32, #tpu.memory_space<vmem>>, %arg7: memref<1x1xf32, #tpu.memory_space<smem>>, %arg8: memref<1x32x256xf32, #tpu.memory_space<vmem>>, %arg9: memref<2x512xf32, #tpu.memory_space<vmem>>) attributes {dimension_semantics = [#tpu.dimension_semantics<parallel>], iteration_bounds = array<i64: 2>, scalar_prefetch = 0 : i64, scratch_operands = 1 : i64, tpu.core_type = #tpu.core_type<tc>, window_params = [{transform_indices = @transform_0, window_bounds = array<i64: 1, 32, 256>}, {pipeline_mode = #tpu.pipeline_mode<synchronous>, transform_indices = @transform_1, window_bounds = array<i64: 32, 4>}, {pipeline_mode = #tpu.pipeline_mode<synchronous>, transform_indices = @transform_2, window_bounds = array<i64: 1, 4>}, {pipeline_mode = #tpu.pipeline_mode<synchronous>, transform_indices = @transform_3, window_bounds = array<i64: 32, 4>}, {pipeline_mode = #tpu.pipeline_mode<synchronous>, transform_indices = @transform_4, window_bounds = array<i64: 32, 1>}, {pipeline_mode = #tpu.pipeline_mode<synchronous>, transform_indices = @transform_5, window_bounds = array<i64: 2, 49>}, {transform_indices = @transform_6, window_bounds = array<i64: 1, 1>}, {transform_indices = @transform_7, window_bounds = array<i64: 1, 32, 256>}]} {
    %c0 = arith.constant 0 : index
    %c0_0 = arith.constant 0 : index
    %c0_1 = arith.constant 0 : index
    %0 = vector.load %arg1[%c0, %c0_0, %c0_1] : memref<1x32x256xf32, #tpu.memory_space<vmem>>, vector<1x32x256xf32>
    %cst = arith.constant dense<0.000000e+00> : vector<1x32xf32>
    %1 = vector.multi_reduction <add>, %0, %cst [2] : vector<1x32x256xf32> to vector<1x32xf32>
    %2 = vector.shape_cast %1 : vector<1x32xf32> to vector<1x32x1xf32>
    %cst_2 = arith.constant 2.560000e+02 : f32
    %3 = vector.broadcast %cst_2 : f32 to vector<1x32x1xf32>
    %4 = arith.divf %2, %3 : vector<1x32x1xf32>
    %c0_3 = arith.constant 0 : index
    %c0_4 = arith.constant 0 : index
    %5 = vector.load %arg2[%c0_3, %c0_4] : memref<32x4xf32, #tpu.memory_space<vmem>>, vector<32x4xf32>
    %6 = vector.shape_cast %5 : vector<32x4xf32> to vector<1x32x4xf32>
    %7 = vector.broadcast %4 : vector<1x32x1xf32> to vector<1x32x4xf32>
    %8 = arith.mulf %6, %7 : vector<1x32x4xf32>
    %cst_5 = arith.constant dense<0.000000e+00> : vector<1x4xf32>
    %9 = vector.multi_reduction <add>, %8, %cst_5 [1] : vector<1x32x4xf32> to vector<1x4xf32>
    %10 = vector.shape_cast %9 : vector<1x4xf32> to vector<1x1x4xf32>
    %c0_6 = arith.constant 0 : index
    %c0_7 = arith.constant 0 : index
    %11 = vector.load %arg3[%c0_6, %c0_7] : memref<1x4xf32, #tpu.memory_space<vmem>>, vector<1x4xf32>
    %12 = vector.shape_cast %11 : vector<1x4xf32> to vector<1x1x4xf32>
    %13 = arith.addf %10, %12 : vector<1x1x4xf32>
    %cst_8 = arith.constant 0.000000e+00 : f32
    %14 = vector.broadcast %cst_8 : f32 to vector<1x1x4xf32>
    %15 = arith.maximumf %13, %14 : vector<1x1x4xf32>
    %c0_9 = arith.constant 0 : index
    %c0_10 = arith.constant 0 : index
    %16 = vector.load %arg4[%c0_9, %c0_10] : memref<32x4xf32, #tpu.memory_space<vmem>>, vector<32x4xf32>
    %17 = vector.shape_cast %16 : vector<32x4xf32> to vector<1x32x4xf32>
    %18 = vector.broadcast %15 : vector<1x1x4xf32> to vector<1x32x4xf32>
    %19 = arith.mulf %17, %18 : vector<1x32x4xf32>
    %cst_11 = arith.constant dense<0.000000e+00> : vector<1x32xf32>
    %20 = vector.multi_reduction <add>, %19, %cst_11 [2] : vector<1x32x4xf32> to vector<1x32xf32>
    %21 = vector.shape_cast %20 : vector<1x32xf32> to vector<1x32x1xf32>
    %c0_12 = arith.constant 0 : index
    %c0_13 = arith.constant 0 : index
    %22 = vector.load %arg5[%c0_12, %c0_13] : memref<32x1xf32, #tpu.memory_space<vmem>>, vector<32x1xf32>
    %23 = vector.shape_cast %22 : vector<32x1xf32> to vector<1x32x1xf32>
    %24 = arith.addf %21, %23 : vector<1x32x1xf32>
    %cst_14 = arith.constant 0.000000e+00 : f32
    %25 = vector.broadcast %cst_14 : f32 to vector<1x32x1xf32>
    %26 = arith.subf %25, %24 : vector<1x32x1xf32>
    %27 = math.exp %26 : vector<1x32x1xf32>
    %cst_15 = arith.constant 1.000000e+00 : f32
    %28 = vector.broadcast %cst_15 : f32 to vector<1x32x1xf32>
    %29 = arith.addf %28, %27 : vector<1x32x1xf32>
    %cst_16 = arith.constant 1.000000e+00 : f32
    %30 = vector.broadcast %cst_16 : f32 to vector<1x32x1xf32>
    %31 = arith.divf %30, %29 : vector<1x32x1xf32>
    %32 = vector.broadcast %31 : vector<1x32x1xf32> to vector<1x32x256xf32>
    %33 = arith.mulf %0, %32 : vector<1x32x256xf32>
    %cst_17 = arith.constant dense<0.000000e+00> : vector<1x256xf32>
    %34 = vector.multi_reduction <add>, %33, %cst_17 [1] : vector<1x32x256xf32> to vector<1x256xf32>
    %cst_18 = arith.constant 3.200000e+01 : f32
    %35 = vector.broadcast %cst_18 : f32 to vector<1x256xf32>
    %36 = arith.divf %34, %35 : vector<1x256xf32>
    %cst_19 = arith.constant dense<0xFF800000> : vector<1x256xf32>
    %37 = vector.multi_reduction <maximumf>, %33, %cst_19 [1] : vector<1x32x256xf32> to vector<1x256xf32>
    %cst_20 = arith.constant 0.000000e+00 : f32
    %38 = vector.broadcast %cst_20 : f32 to vector<2x128xf32>
    %c0_21 = arith.constant 0 : index
    %c0_22 = arith.constant 0 : index
    %39 = vector.load %arg9[%c0_21, %c0_22] : memref<2x512xf32, #tpu.memory_space<vmem>>, vector<2x128xf32>
    tpu.vector_store %arg9[%c0_21, %c0_22], %38 {strides = array<i32>} : memref<2x512xf32, #tpu.memory_space<vmem>>, vector<2x128xf32>,
    %c0_23 = arith.constant 0 : index
    %c384 = arith.constant 384 : index
    %40 = vector.load %arg9[%c0_23, %c384] : memref<2x512xf32, #tpu.memory_space<vmem>>, vector<2x128xf32>
    tpu.vector_store %arg9[%c0_23, %c384], %38 {strides = array<i32>} : memref<2x512xf32, #tpu.memory_space<vmem>>, vector<2x128xf32>,
    %c0_24 = arith.constant 0 : index
    %c128 = arith.constant 128 : index
    %41 = vector.load %arg9[%c0_24, %c128] : memref<2x512xf32, #tpu.memory_space<vmem>>, vector<1x256xf32>
    tpu.vector_store %arg9[%c0_24, %c128], %36 {strides = array<i32>} : memref<2x512xf32, #tpu.memory_space<vmem>>, vector<1x256xf32>,
    %c1 = arith.constant 1 : index
    %c128_25 = arith.constant 128 : index
    %42 = vector.load %arg9[%c1, %c128_25] : memref<2x512xf32, #tpu.memory_space<vmem>>, vector<1x256xf32>
    tpu.vector_store %arg9[%c1, %c128_25], %37 {strides = array<i32>} : memref<2x512xf32, #tpu.memory_space<vmem>>, vector<1x256xf32>,
    %43 = tpu.iota {dimensions = array<i32: 1>} : vector<1x256xi32>
    %c4_i32 = arith.constant 4 : i32
    %44 = vector.broadcast %c4_i32 : i32 to vector<1x256xi32>
    %45 = arith.shrsi %43, %44 : vector<1x256xi32>
    %c15_i32 = arith.constant 15 : i32
    %46 = vector.broadcast %c15_i32 : i32 to vector<1x256xi32>
    %47 = arith.andi %43, %46 : vector<1x256xi32>
    %c3_i32 = arith.constant 3 : i32
    %48 = vector.broadcast %c3_i32 : i32 to vector<1x256xi32>
    %49 = arith.cmpi sge, %45, %48 : vector<1x256xi32>
    %c2_i32 = arith.constant 2 : i32
    %50 = vector.broadcast %c2_i32 : i32 to vector<1x256xi32>
    %51 = arith.cmpi sge, %45, %50 : vector<1x256xi32>
    %c1_i32 = arith.constant 1 : i32
    %52 = vector.broadcast %c1_i32 : i32 to vector<1x256xi32>
    %53 = arith.cmpi sge, %45, %52 : vector<1x256xi32>
    %c15_i32_26 = arith.constant 15 : i32
    %54 = vector.broadcast %c15_i32_26 : i32 to vector<1x256xi32>
    %55 = arith.cmpi slt, %45, %54 : vector<1x256xi32>
    %c14_i32 = arith.constant 14 : i32
    %56 = vector.broadcast %c14_i32 : i32 to vector<1x256xi32>
    %57 = arith.cmpi slt, %45, %56 : vector<1x256xi32>
    %c13_i32 = arith.constant 13 : i32
    %58 = vector.broadcast %c13_i32 : i32 to vector<1x256xi32>
    %59 = arith.cmpi slt, %45, %58 : vector<1x256xi32>
    %c3_i32_27 = arith.constant 3 : i32
    %60 = vector.broadcast %c3_i32_27 : i32 to vector<1x256xi32>
    %61 = arith.cmpi sge, %47, %60 : vector<1x256xi32>
    %c2_i32_28 = arith.constant 2 : i32
    %62 = vector.broadcast %c2_i32_28 : i32 to vector<1x256xi32>
    %63 = arith.cmpi sge, %47, %62 : vector<1x256xi32>
    %c1_i32_29 = arith.constant 1 : i32
    %64 = vector.broadcast %c1_i32_29 : i32 to vector<1x256xi32>
    %65 = arith.cmpi sge, %47, %64 : vector<1x256xi32>
    %c15_i32_30 = arith.constant 15 : i32
    %66 = vector.broadcast %c15_i32_30 : i32 to vector<1x256xi32>
    %67 = arith.cmpi slt, %47, %66 : vector<1x256xi32>
    %c14_i32_31 = arith.constant 14 : i32
    %68 = vector.broadcast %c14_i32_31 : i32 to vector<1x256xi32>
    %69 = arith.cmpi slt, %47, %68 : vector<1x256xi32>
    %c13_i32_32 = arith.constant 13 : i32
    %70 = vector.broadcast %c13_i32_32 : i32 to vector<1x256xi32>
    %71 = arith.cmpi slt, %47, %70 : vector<1x256xi32>
    %c0_33 = arith.constant 0 : index
    %c0_34 = arith.constant 0 : index
    %72 = vector.load %arg6[%c0_33, %c0_34] : memref<2x49xf32, #tpu.memory_space<vmem>>, vector<2x49xf32>
    %cst_35 = arith.constant 0.000000e+00 : f32
    %73 = vector.broadcast %cst_35 : f32 to vector<2x256xf32>
    %c0_36 = arith.constant 0 : index
    %c77 = arith.constant 77 : index
    %74 = vector.load %arg9[%c0_36, %c77] : memref<2x512xf32, #tpu.memory_space<vmem>>, vector<2x256xf32>
    %75 = vector.extract_strided_slice %72 {offsets = [0, 0], sizes = [2, 1], strides = [1, 1]} : vector<2x49xf32> to vector<2x1xf32>
    %76 = vector.broadcast %75 : vector<2x1xf32> to vector<2x256xf32>
    %77 = arith.mulf %74, %76 : vector<2x256xf32>
    %78 = arith.andi %49, %61 : vector<1x256xi1>
    %cst_37 = arith.constant 0.000000e+00 : f32
    %79 = vector.shape_cast %78 : vector<1x256xi1> to vector<1x256xi1>
    %80 = vector.broadcast %79 : vector<1x256xi1> to vector<2x256xi1>
    %81 = vector.broadcast %cst_37 : f32 to vector<2x256xf32>
    %82 = arith.select %80, %77, %81 : vector<2x256xi1>, vector<2x256xf32>
    %83 = arith.addf %73, %82 : vector<2x256xf32>
    %c0_38 = arith.constant 0 : index
    %c78 = arith.constant 78 : index
    %84 = vector.load %arg9[%c0_38, %c78] : memref<2x512xf32, #tpu.memory_space<vmem>>, vector<2x256xf32>
    %85 = vector.extract_strided_slice %72 {offsets = [0, 1], sizes = [2, 1], strides = [1, 1]} : vector<2x49xf32> to vector<2x1xf32>
    %86 = vector.broadcast %85 : vector<2x1xf32> to vector<2x256xf32>
    %87 = arith.mulf %84, %86 : vector<2x256xf32>
    %88 = arith.andi %49, %63 : vector<1x256xi1>
    %cst_39 = arith.constant 0.000000e+00 : f32
    %89 = vector.shape_cast %88 : vector<1x256xi1> to vector<1x256xi1>
    %90 = vector.broadcast %89 : vector<1x256xi1> to vector<2x256xi1>
    %91 = vector.broadcast %cst_39 : f32 to vector<2x256xf32>
    %92 = arith.select %90, %87, %91 : vector<2x256xi1>, vector<2x256xf32>
    %93 = arith.addf %83, %92 : vector<2x256xf32>
    %c0_40 = arith.constant 0 : index
    %c79 = arith.constant 79 : index
    %94 = vector.load %arg9[%c0_40, %c79] : memref<2x512xf32, #tpu.memory_space<vmem>>, vector<2x256xf32>
    %95 = vector.extract_strided_slice %72 {offsets = [0, 2], sizes = [2, 1], strides = [1, 1]} : vector<2x49xf32> to vector<2x1xf32>
    %96 = vector.broadcast %95 : vector<2x1xf32> to vector<2x256xf32>
    %97 = arith.mulf %94, %96 : vector<2x256xf32>
    %98 = arith.andi %49, %65 : vector<1x256xi1>
    %cst_41 = arith.constant 0.000000e+00 : f32
    %99 = vector.shape_cast %98 : vector<1x256xi1> to vector<1x256xi1>
    %100 = vector.broadcast %99 : vector<1x256xi1> to vector<2x256xi1>
    %101 = vector.broadcast %cst_41 : f32 to vector<2x256xf32>
    %102 = arith.select %100, %97, %101 : vector<2x256xi1>, vector<2x256xf32>
    %103 = arith.addf %93, %102 : vector<2x256xf32>
    %c0_42 = arith.constant 0 : index
    %c80 = arith.constant 80 : index
    %104 = vector.load %arg9[%c0_42, %c80] : memref<2x512xf32, #tpu.memory_space<vmem>>, vector<2x256xf32>
    %105 = vector.extract_strided_slice %72 {offsets = [0, 3], sizes = [2, 1], strides = [1, 1]} : vector<2x49xf32> to vector<2x1xf32>
    %106 = vector.broadcast %105 : vector<2x1xf32> to vector<2x256xf32>
    %107 = arith.mulf %104, %106 : vector<2x256xf32>
    %cst_43 = arith.constant 0.000000e+00 : f32
    %108 = vector.shape_cast %49 : vector<1x256xi1> to vector<1x256xi1>
    %109 = vector.broadcast %108 : vector<1x256xi1> to vector<2x256xi1>
    %110 = vector.broadcast %cst_43 : f32 to vector<2x256xf32>
    %111 = arith.select %109, %107, %110 : vector<2x256xi1>, vector<2x256xf32>
    %112 = arith.addf %103, %111 : vector<2x256xf32>
    %c0_44 = arith.constant 0 : index
    %c81 = arith.constant 81 : index
    %113 = vector.load %arg9[%c0_44, %c81] : memref<2x512xf32, #tpu.memory_space<vmem>>, vector<2x256xf32>
    %114 = vector.extract_strided_slice %72 {offsets = [0, 4], sizes = [2, 1], strides = [1, 1]} : vector<2x49xf32> to vector<2x1xf32>
    %115 = vector.broadcast %114 : vector<2x1xf32> to vector<2x256xf32>
    %116 = arith.mulf %113, %115 : vector<2x256xf32>
    %117 = arith.andi %49, %67 : vector<1x256xi1>
    %cst_45 = arith.constant 0.000000e+00 : f32
    %118 = vector.shape_cast %117 : vector<1x256xi1> to vector<1x256xi1>
    %119 = vector.broadcast %118 : vector<1x256xi1> to vector<2x256xi1>
    %120 = vector.broadcast %cst_45 : f32 to vector<2x256xf32>
    %121 = arith.select %119, %116, %120 : vector<2x256xi1>, vector<2x256xf32>
    %122 = arith.addf %112, %121 : vector<2x256xf32>
    %c0_46 = arith.constant 0 : index
    %c82 = arith.constant 82 : index
    %123 = vector.load %arg9[%c0_46, %c82] : memref<2x512xf32, #tpu.memory_space<vmem>>, vector<2x256xf32>
    %124 = vector.extract_strided_slice %72 {offsets = [0, 5], sizes = [2, 1], strides = [1, 1]} : vector<2x49xf32> to vector<2x1xf32>
    %125 = vector.broadcast %124 : vector<2x1xf32> to vector<2x256xf32>
    %126 = arith.mulf %123, %125 : vector<2x256xf32>
    %127 = arith.andi %49, %69 : vector<1x256xi1>
    %cst_47 = arith.constant 0.000000e+00 : f32
    %128 = vector.shape_cast %127 : vector<1x256xi1> to vector<1x256xi1>
    %129 = vector.broadcast %128 : vector<1x256xi1> to vector<2x256xi1>
    %130 = vector.broadcast %cst_47 : f32 to vector<2x256xf32>
    %131 = arith.select %129, %126, %130 : vector<2x256xi1>, vector<2x256xf32>
    %132 = arith.addf %122, %131 : vector<2x256xf32>
    %c0_48 = arith.constant 0 : index
    %c83 = arith.constant 83 : index
    %133 = vector.load %arg9[%c0_48, %c83] : memref<2x512xf32, #tpu.memory_space<vmem>>, vector<2x256xf32>
    %134 = vector.extract_strided_slice %72 {offsets = [0, 6], sizes = [2, 1], strides = [1, 1]} : vector<2x49xf32> to vector<2x1xf32>
    %135 = vector.broadcast %134 : vector<2x1xf32> to vector<2x256xf32>
    %136 = arith.mulf %133, %135 : vector<2x256xf32>
    %137 = arith.andi %49, %71 : vector<1x256xi1>
    %cst_49 = arith.constant 0.000000e+00 : f32
    %138 = vector.shape_cast %137 : vector<1x256xi1> to vector<1x256xi1>
    %139 = vector.broadcast %138 : vector<1x256xi1> to vector<2x256xi1>
    %140 = vector.broadcast %cst_49 : f32 to vector<2x256xf32>
    %141 = arith.select %139, %136, %140 : vector<2x256xi1>, vector<2x256xf32>
    %142 = arith.addf %132, %141 : vector<2x256xf32>
    %c0_50 = arith.constant 0 : index
    %c93 = arith.constant 93 : index
    %143 = vector.load %arg9[%c0_50, %c93] : memref<2x512xf32, #tpu.memory_space<vmem>>, vector<2x256xf32>
    %144 = vector.extract_strided_slice %72 {offsets = [0, 7], sizes = [2, 1], strides = [1, 1]} : vector<2x49xf32> to vector<2x1xf32>
    %145 = vector.broadcast %144 : vector<2x1xf32> to vector<2x256xf32>
    %146 = arith.mulf %143, %145 : vector<2x256xf32>
    %147 = arith.andi %51, %61 : vector<1x256xi1>
    %cst_51 = arith.constant 0.000000e+00 : f32
    %148 = vector.shape_cast %147 : vector<1x256xi1> to vector<1x256xi1>
    %149 = vector.broadcast %148 : vector<1x256xi1> to vector<2x256xi1>
    %150 = vector.broadcast %cst_51 : f32 to vector<2x256xf32>
    %151 = arith.select %149, %146, %150 : vector<2x256xi1>, vector<2x256xf32>
    %152 = arith.addf %142, %151 : vector<2x256xf32>
    %c0_52 = arith.constant 0 : index
    %c94 = arith.constant 94 : index
    %153 = vector.load %arg9[%c0_52, %c94] : memref<2x512xf32, #tpu.memory_space<vmem>>, vector<2x256xf32>
    %154 = vector.extract_strided_slice %72 {offsets = [0, 8], sizes = [2, 1], strides = [1, 1]} : vector<2x49xf32> to vector<2x1xf32>
    %155 = vector.broadcast %154 : vector<2x1xf32> to vector<2x256xf32>
    %156 = arith.mulf %153, %155 : vector<2x256xf32>
    %157 = arith.andi %51, %63 : vector<1x256xi1>
    %cst_53 = arith.constant 0.000000e+00 : f32
    %158 = vector.shape_cast %157 : vector<1x256xi1> to vector<1x256xi1>
    %159 = vector.broadcast %158 : vector<1x256xi1> to vector<2x256xi1>
    %160 = vector.broadcast %cst_53 : f32 to vector<2x256xf32>
    %161 = arith.select %159, %156, %160 : vector<2x256xi1>, vector<2x256xf32>
    %162 = arith.addf %152, %161 : vector<2x256xf32>
    %c0_54 = arith.constant 0 : index
    %c95 = arith.constant 95 : index
    %163 = vector.load %arg9[%c0_54, %c95] : memref<2x512xf32, #tpu.memory_space<vmem>>, vector<2x256xf32>
    %164 = vector.extract_strided_slice %72 {offsets = [0, 9], sizes = [2, 1], strides = [1, 1]} : vector<2x49xf32> to vector<2x1xf32>
    %165 = vector.broadcast %164 : vector<2x1xf32> to vector<2x256xf32>
    %166 = arith.mulf %163, %165 : vector<2x256xf32>
    %167 = arith.andi %51, %65 : vector<1x256xi1>
    %cst_55 = arith.constant 0.000000e+00 : f32
    %168 = vector.shape_cast %167 : vector<1x256xi1> to vector<1x256xi1>
    %169 = vector.broadcast %168 : vector<1x256xi1> to vector<2x256xi1>
    %170 = vector.broadcast %cst_55 : f32 to vector<2x256xf32>
    %171 = arith.select %169, %166, %170 : vector<2x256xi1>, vector<2x256xf32>
    %172 = arith.addf %162, %171 : vector<2x256xf32>
    %c0_56 = arith.constant 0 : index
    %c96 = arith.constant 96 : index
    %173 = vector.load %arg9[%c0_56, %c96] : memref<2x512xf32, #tpu.memory_space<vmem>>, vector<2x256xf32>
    %174 = vector.extract_strided_slice %72 {offsets = [0, 10], sizes = [2, 1], strides = [1, 1]} : vector<2x49xf32> to vector<2x1xf32>
    %175 = vector.broadcast %174 : vector<2x1xf32> to vector<2x256xf32>
    %176 = arith.mulf %173, %175 : vector<2x256xf32>
    %cst_57 = arith.constant 0.000000e+00 : f32
    %177 = vector.shape_cast %51 : vector<1x256xi1> to vector<1x256xi1>
    %178 = vector.broadcast %177 : vector<1x256xi1> to vector<2x256xi1>
    %179 = vector.broadcast %cst_57 : f32 to vector<2x256xf32>
    %180 = arith.select %178, %176, %179 : vector<2x256xi1>, vector<2x256xf32>
    %181 = arith.addf %172, %180 : vector<2x256xf32>
    %c0_58 = arith.constant 0 : index
    %c97 = arith.constant 97 : index
    %182 = vector.load %arg9[%c0_58, %c97] : memref<2x512xf32, #tpu.memory_space<vmem>>, vector<2x256xf32>
    %183 = vector.extract_strided_slice %72 {offsets = [0, 11], sizes = [2, 1], strides = [1, 1]} : vector<2x49xf32> to vector<2x1xf32>
    %184 = vector.broadcast %183 : vector<2x1xf32> to vector<2x256xf32>
    %185 = arith.mulf %182, %184 : vector<2x256xf32>
    %186 = arith.andi %51, %67 : vector<1x256xi1>
    %cst_59 = arith.constant 0.000000e+00 : f32
    %187 = vector.shape_cast %186 : vector<1x256xi1> to vector<1x256xi1>
    %188 = vector.broadcast %187 : vector<1x256xi1> to vector<2x256xi1>
    %189 = vector.broadcast %cst_59 : f32 to vector<2x256xf32>
    %190 = arith.select %188, %185, %189 : vector<2x256xi1>, vector<2x256xf32>
    %191 = arith.addf %181, %190 : vector<2x256xf32>
    %c0_60 = arith.constant 0 : index
    %c98 = arith.constant 98 : index
    %192 = vector.load %arg9[%c0_60, %c98] : memref<2x512xf32, #tpu.memory_space<vmem>>, vector<2x256xf32>
    %193 = vector.extract_strided_slice %72 {offsets = [0, 12], sizes = [2, 1], strides = [1, 1]} : vector<2x49xf32> to vector<2x1xf32>
    %194 = vector.broadcast %193 : vector<2x1xf32> to vector<2x256xf32>
    %195 = arith.mulf %192, %194 : vector<2x256xf32>
    %196 = arith.andi %51, %69 : vector<1x256xi1>
    %cst_61 = arith.constant 0.000000e+00 : f32
    %197 = vector.shape_cast %196 : vector<1x256xi1> to vector<1x256xi1>
    %198 = vector.broadcast %197 : vector<1x256xi1> to vector<2x256xi1>
    %199 = vector.broadcast %cst_61 : f32 to vector<2x256xf32>
    %200 = arith.select %198, %195, %199 : vector<2x256xi1>, vector<2x256xf32>
    %201 = arith.addf %191, %200 : vector<2x256xf32>
    %c0_62 = arith.constant 0 : index
    %c99 = arith.constant 99 : index
    %202 = vector.load %arg9[%c0_62, %c99] : memref<2x512xf32, #tpu.memory_space<vmem>>, vector<2x256xf32>
    %203 = vector.extract_strided_slice %72 {offsets = [0, 13], sizes = [2, 1], strides = [1, 1]} : vector<2x49xf32> to vector<2x1xf32>
    %204 = vector.broadcast %203 : vector<2x1xf32> to vector<2x256xf32>
    %205 = arith.mulf %202, %204 : vector<2x256xf32>
    %206 = arith.andi %51, %71 : vector<1x256xi1>
    %cst_63 = arith.constant 0.000000e+00 : f32
    %207 = vector.shape_cast %206 : vector<1x256xi1> to vector<1x256xi1>
    %208 = vector.broadcast %207 : vector<1x256xi1> to vector<2x256xi1>
    %209 = vector.broadcast %cst_63 : f32 to vector<2x256xf32>
    %210 = arith.select %208, %205, %209 : vector<2x256xi1>, vector<2x256xf32>
    %211 = arith.addf %201, %210 : vector<2x256xf32>
    %c0_64 = arith.constant 0 : index
    %c109 = arith.constant 109 : index
    %212 = vector.load %arg9[%c0_64, %c109] : memref<2x512xf32, #tpu.memory_space<vmem>>, vector<2x256xf32>
    %213 = vector.extract_strided_slice %72 {offsets = [0, 14], sizes = [2, 1], strides = [1, 1]} : vector<2x49xf32> to vector<2x1xf32>
    %214 = vector.broadcast %213 : vector<2x1xf32> to vector<2x256xf32>
    %215 = arith.mulf %212, %214 : vector<2x256xf32>
    %216 = arith.andi %53, %61 : vector<1x256xi1>
    %cst_65 = arith.constant 0.000000e+00 : f32
    %217 = vector.shape_cast %216 : vector<1x256xi1> to vector<1x256xi1>
    %218 = vector.broadcast %217 : vector<1x256xi1> to vector<2x256xi1>
    %219 = vector.broadcast %cst_65 : f32 to vector<2x256xf32>
    %220 = arith.select %218, %215, %219 : vector<2x256xi1>, vector<2x256xf32>
    %221 = arith.addf %211, %220 : vector<2x256xf32>
    %c0_66 = arith.constant 0 : index
    %c110 = arith.constant 110 : index
    %222 = vector.load %arg9[%c0_66, %c110] : memref<2x512xf32, #tpu.memory_space<vmem>>, vector<2x256xf32>
    %223 = vector.extract_strided_slice %72 {offsets = [0, 15], sizes = [2, 1], strides = [1, 1]} : vector<2x49xf32> to vector<2x1xf32>
    %224 = vector.broadcast %223 : vector<2x1xf32> to vector<2x256xf32>
    %225 = arith.mulf %222, %224 : vector<2x256xf32>
    %226 = arith.andi %53, %63 : vector<1x256xi1>
    %cst_67 = arith.constant 0.000000e+00 : f32
    %227 = vector.shape_cast %226 : vector<1x256xi1> to vector<1x256xi1>
    %228 = vector.broadcast %227 : vector<1x256xi1> to vector<2x256xi1>
    %229 = vector.broadcast %cst_67 : f32 to vector<2x256xf32>
    %230 = arith.select %228, %225, %229 : vector<2x256xi1>, vector<2x256xf32>
    %231 = arith.addf %221, %230 : vector<2x256xf32>
    %c0_68 = arith.constant 0 : index
    %c111 = arith.constant 111 : index
    %232 = vector.load %arg9[%c0_68, %c111] : memref<2x512xf32, #tpu.memory_space<vmem>>, vector<2x256xf32>
    %233 = vector.extract_strided_slice %72 {offsets = [0, 16], sizes = [2, 1], strides = [1, 1]} : vector<2x49xf32> to vector<2x1xf32>
    %234 = vector.broadcast %233 : vector<2x1xf32> to vector<2x256xf32>
    %235 = arith.mulf %232, %234 : vector<2x256xf32>
    %236 = arith.andi %53, %65 : vector<1x256xi1>
    %cst_69 = arith.constant 0.000000e+00 : f32
    %237 = vector.shape_cast %236 : vector<1x256xi1> to vector<1x256xi1>
    %238 = vector.broadcast %237 : vector<1x256xi1> to vector<2x256xi1>
    %239 = vector.broadcast %cst_69 : f32 to vector<2x256xf32>
    %240 = arith.select %238, %235, %239 : vector<2x256xi1>, vector<2x256xf32>
    %241 = arith.addf %231, %240 : vector<2x256xf32>
    %c0_70 = arith.constant 0 : index
    %c112 = arith.constant 112 : index
    %242 = vector.load %arg9[%c0_70, %c112] : memref<2x512xf32, #tpu.memory_space<vmem>>, vector<2x256xf32>
    %243 = vector.extract_strided_slice %72 {offsets = [0, 17], sizes = [2, 1], strides = [1, 1]} : vector<2x49xf32> to vector<2x1xf32>
    %244 = vector.broadcast %243 : vector<2x1xf32> to vector<2x256xf32>
    %245 = arith.mulf %242, %244 : vector<2x256xf32>
    %cst_71 = arith.constant 0.000000e+00 : f32
    %246 = vector.shape_cast %53 : vector<1x256xi1> to vector<1x256xi1>
    %247 = vector.broadcast %246 : vector<1x256xi1> to vector<2x256xi1>
    %248 = vector.broadcast %cst_71 : f32 to vector<2x256xf32>
    %249 = arith.select %247, %245, %248 : vector<2x256xi1>, vector<2x256xf32>
    %250 = arith.addf %241, %249 : vector<2x256xf32>
    %c0_72 = arith.constant 0 : index
    %c113 = arith.constant 113 : index
    %251 = vector.load %arg9[%c0_72, %c113] : memref<2x512xf32, #tpu.memory_space<vmem>>, vector<2x256xf32>
    %252 = vector.extract_strided_slice %72 {offsets = [0, 18], sizes = [2, 1], strides = [1, 1]} : vector<2x49xf32> to vector<2x1xf32>
    %253 = vector.broadcast %252 : vector<2x1xf32> to vector<2x256xf32>
    %254 = arith.mulf %251, %253 : vector<2x256xf32>
    %255 = arith.andi %53, %67 : vector<1x256xi1>
    %cst_73 = arith.constant 0.000000e+00 : f32
    %256 = vector.shape_cast %255 : vector<1x256xi1> to vector<1x256xi1>
    %257 = vector.broadcast %256 : vector<1x256xi1> to vector<2x256xi1>
    %258 = vector.broadcast %cst_73 : f32 to vector<2x256xf32>
    %259 = arith.select %257, %254, %258 : vector<2x256xi1>, vector<2x256xf32>
    %260 = arith.addf %250, %259 : vector<2x256xf32>
    %c0_74 = arith.constant 0 : index
    %c114 = arith.constant 114 : index
    %261 = vector.load %arg9[%c0_74, %c114] : memref<2x512xf32, #tpu.memory_space<vmem>>, vector<2x256xf32>
    %262 = vector.extract_strided_slice %72 {offsets = [0, 19], sizes = [2, 1], strides = [1, 1]} : vector<2x49xf32> to vector<2x1xf32>
    %263 = vector.broadcast %262 : vector<2x1xf32> to vector<2x256xf32>
    %264 = arith.mulf %261, %263 : vector<2x256xf32>
    %265 = arith.andi %53, %69 : vector<1x256xi1>
    %cst_75 = arith.constant 0.000000e+00 : f32
    %266 = vector.shape_cast %265 : vector<1x256xi1> to vector<1x256xi1>
    %267 = vector.broadcast %266 : vector<1x256xi1> to vector<2x256xi1>
    %268 = vector.broadcast %cst_75 : f32 to vector<2x256xf32>
    %269 = arith.select %267, %264, %268 : vector<2x256xi1>, vector<2x256xf32>
    %270 = arith.addf %260, %269 : vector<2x256xf32>
    %c0_76 = arith.constant 0 : index
    %c115 = arith.constant 115 : index
    %271 = vector.load %arg9[%c0_76, %c115] : memref<2x512xf32, #tpu.memory_space<vmem>>, vector<2x256xf32>
    %272 = vector.extract_strided_slice %72 {offsets = [0, 20], sizes = [2, 1], strides = [1, 1]} : vector<2x49xf32> to vector<2x1xf32>
    %273 = vector.broadcast %272 : vector<2x1xf32> to vector<2x256xf32>
    %274 = arith.mulf %271, %273 : vector<2x256xf32>
    %275 = arith.andi %53, %71 : vector<1x256xi1>
    %cst_77 = arith.constant 0.000000e+00 : f32
    %276 = vector.shape_cast %275 : vector<1x256xi1> to vector<1x256xi1>
    %277 = vector.broadcast %276 : vector<1x256xi1> to vector<2x256xi1>
    %278 = vector.broadcast %cst_77 : f32 to vector<2x256xf32>
    %279 = arith.select %277, %274, %278 : vector<2x256xi1>, vector<2x256xf32>
    %280 = arith.addf %270, %279 : vector<2x256xf32>
    %c0_78 = arith.constant 0 : index
    %c125 = arith.constant 125 : index
    %281 = vector.load %arg9[%c0_78, %c125] : memref<2x512xf32, #tpu.memory_space<vmem>>, vector<2x256xf32>
    %282 = vector.extract_strided_slice %72 {offsets = [0, 21], sizes = [2, 1], strides = [1, 1]} : vector<2x49xf32> to vector<2x1xf32>
    %283 = vector.broadcast %282 : vector<2x1xf32> to vector<2x256xf32>
    %284 = arith.mulf %281, %283 : vector<2x256xf32>
    %cst_79 = arith.constant 0.000000e+00 : f32
    %285 = vector.shape_cast %61 : vector<1x256xi1> to vector<1x256xi1>
    %286 = vector.broadcast %285 : vector<1x256xi1> to vector<2x256xi1>
    %287 = vector.broadcast %cst_79 : f32 to vector<2x256xf32>
    %288 = arith.select %286, %284, %287 : vector<2x256xi1>, vector<2x256xf32>
    %289 = arith.addf %280, %288 : vector<2x256xf32>
    %c0_80 = arith.constant 0 : index
    %c126 = arith.constant 126 : index
    %290 = vector.load %arg9[%c0_80, %c126] : memref<2x512xf32, #tpu.memory_space<vmem>>, vector<2x256xf32>
    %291 = vector.extract_strided_slice %72 {offsets = [0, 22], sizes = [2, 1], strides = [1, 1]} : vector<2x49xf32> to vector<2x1xf32>
    %292 = vector.broadcast %291 : vector<2x1xf32> to vector<2x256xf32>
    %293 = arith.mulf %290, %292 : vector<2x256xf32>
    %cst_81 = arith.constant 0.000000e+00 : f32
    %294 = vector.shape_cast %63 : vector<1x256xi1> to vector<1x256xi1>
    %295 = vector.broadcast %294 : vector<1x256xi1> to vector<2x256xi1>
    %296 = vector.broadcast %cst_81 : f32 to vector<2x256xf32>
    %297 = arith.select %295, %293, %296 : vector<2x256xi1>, vector<2x256xf32>
    %298 = arith.addf %289, %297 : vector<2x256xf32>
    %c0_82 = arith.constant 0 : index
    %c127 = arith.constant 127 : index
    %299 = vector.load %arg9[%c0_82, %c127] : memref<2x512xf32, #tpu.memory_space<vmem>>, vector<2x256xf32>
    %300 = vector.extract_strided_slice %72 {offsets = [0, 23], sizes = [2, 1], strides = [1, 1]} : vector<2x49xf32> to vector<2x1xf32>
    %301 = vector.broadcast %300 : vector<2x1xf32> to vector<2x256xf32>
    %302 = arith.mulf %299, %301 : vector<2x256xf32>
    %cst_83 = arith.constant 0.000000e+00 : f32
    %303 = vector.shape_cast %65 : vector<1x256xi1> to vector<1x256xi1>
    %304 = vector.broadcast %303 : vector<1x256xi1> to vector<2x256xi1>
    %305 = vector.broadcast %cst_83 : f32 to vector<2x256xf32>
    %306 = arith.select %304, %302, %305 : vector<2x256xi1>, vector<2x256xf32>
    %307 = arith.addf %298, %306 : vector<2x256xf32>
    %c0_84 = arith.constant 0 : index
    %c128_85 = arith.constant 128 : index
    %308 = vector.load %arg9[%c0_84, %c128_85] : memref<2x512xf32, #tpu.memory_space<vmem>>, vector<2x256xf32>
    %309 = vector.extract_strided_slice %72 {offsets = [0, 24], sizes = [2, 1], strides = [1, 1]} : vector<2x49xf32> to vector<2x1xf32>
    %310 = vector.broadcast %309 : vector<2x1xf32> to vector<2x256xf32>
    %311 = arith.mulf %308, %310 : vector<2x256xf32>
    %312 = arith.addf %307, %311 : vector<2x256xf32>
    %c0_86 = arith.constant 0 : index
    %c129 = arith.constant 129 : index
    %313 = vector.load %arg9[%c0_86, %c129] : memref<2x512xf32, #tpu.memory_space<vmem>>, vector<2x256xf32>
    %314 = vector.extract_strided_slice %72 {offsets = [0, 25], sizes = [2, 1], strides = [1, 1]} : vector<2x49xf32> to vector<2x1xf32>
    %315 = vector.broadcast %314 : vector<2x1xf32> to vector<2x256xf32>
    %316 = arith.mulf %313, %315 : vector<2x256xf32>
    %cst_87 = arith.constant 0.000000e+00 : f32
    %317 = vector.shape_cast %67 : vector<1x256xi1> to vector<1x256xi1>
    %318 = vector.broadcast %317 : vector<1x256xi1> to vector<2x256xi1>
    %319 = vector.broadcast %cst_87 : f32 to vector<2x256xf32>
    %320 = arith.select %318, %316, %319 : vector<2x256xi1>, vector<2x256xf32>
    %321 = arith.addf %312, %320 : vector<2x256xf32>
    %c0_88 = arith.constant 0 : index
    %c130 = arith.constant 130 : index
    %322 = vector.load %arg9[%c0_88, %c130] : memref<2x512xf32, #tpu.memory_space<vmem>>, vector<2x256xf32>
    %323 = vector.extract_strided_slice %72 {offsets = [0, 26], sizes = [2, 1], strides = [1, 1]} : vector<2x49xf32> to vector<2x1xf32>
    %324 = vector.broadcast %323 : vector<2x1xf32> to vector<2x256xf32>
    %325 = arith.mulf %322, %324 : vector<2x256xf32>
    %cst_89 = arith.constant 0.000000e+00 : f32
    %326 = vector.shape_cast %69 : vector<1x256xi1> to vector<1x256xi1>
    %327 = vector.broadcast %326 : vector<1x256xi1> to vector<2x256xi1>
    %328 = vector.broadcast %cst_89 : f32 to vector<2x256xf32>
    %329 = arith.select %327, %325, %328 : vector<2x256xi1>, vector<2x256xf32>
    %330 = arith.addf %321, %329 : vector<2x256xf32>
    %c0_90 = arith.constant 0 : index
    %c131 = arith.constant 131 : index
    %331 = vector.load %arg9[%c0_90, %c131] : memref<2x512xf32, #tpu.memory_space<vmem>>, vector<2x256xf32>
    %332 = vector.extract_strided_slice %72 {offsets = [0, 27], sizes = [2, 1], strides = [1, 1]} : vector<2x49xf32> to vector<2x1xf32>
    %333 = vector.broadcast %332 : vector<2x1xf32> to vector<2x256xf32>
    %334 = arith.mulf %331, %333 : vector<2x256xf32>
    %cst_91 = arith.constant 0.000000e+00 : f32
    %335 = vector.shape_cast %71 : vector<1x256xi1> to vector<1x256xi1>
    %336 = vector.broadcast %335 : vector<1x256xi1> to vector<2x256xi1>
    %337 = vector.broadcast %cst_91 : f32 to vector<2x256xf32>
    %338 = arith.select %336, %334, %337 : vector<2x256xi1>, vector<2x256xf32>
    %339 = arith.addf %330, %338 : vector<2x256xf32>
    %c0_92 = arith.constant 0 : index
    %c141 = arith.constant 141 : index
    %340 = vector.load %arg9[%c0_92, %c141] : memref<2x512xf32, #tpu.memory_space<vmem>>, vector<2x256xf32>
    %341 = vector.extract_strided_slice %72 {offsets = [0, 28], sizes = [2, 1], strides = [1, 1]} : vector<2x49xf32> to vector<2x1xf32>
    %342 = vector.broadcast %341 : vector<2x1xf32> to vector<2x256xf32>
    %343 = arith.mulf %340, %342 : vector<2x256xf32>
    %344 = arith.andi %55, %61 : vector<1x256xi1>
    %cst_93 = arith.constant 0.000000e+00 : f32
    %345 = vector.shape_cast %344 : vector<1x256xi1> to vector<1x256xi1>
    %346 = vector.broadcast %345 : vector<1x256xi1> to vector<2x256xi1>
    %347 = vector.broadcast %cst_93 : f32 to vector<2x256xf32>
    %348 = arith.select %346, %343, %347 : vector<2x256xi1>, vector<2x256xf32>
    %349 = arith.addf %339, %348 : vector<2x256xf32>
    %c0_94 = arith.constant 0 : index
    %c142 = arith.constant 142 : index
    %350 = vector.load %arg9[%c0_94, %c142] : memref<2x512xf32, #tpu.memory_space<vmem>>, vector<2x256xf32>
    %351 = vector.extract_strided_slice %72 {offsets = [0, 29], sizes = [2, 1], strides = [1, 1]} : vector<2x49xf32> to vector<2x1xf32>
    %352 = vector.broadcast %351 : vector<2x1xf32> to vector<2x256xf32>
    %353 = arith.mulf %350, %352 : vector<2x256xf32>
    %354 = arith.andi %55, %63 : vector<1x256xi1>
    %cst_95 = arith.constant 0.000000e+00 : f32
    %355 = vector.shape_cast %354 : vector<1x256xi1> to vector<1x256xi1>
    %356 = vector.broadcast %355 : vector<1x256xi1> to vector<2x256xi1>
    %357 = vector.broadcast %cst_95 : f32 to vector<2x256xf32>
    %358 = arith.select %356, %353, %357 : vector<2x256xi1>, vector<2x256xf32>
    %359 = arith.addf %349, %358 : vector<2x256xf32>
    %c0_96 = arith.constant 0 : index
    %c143 = arith.constant 143 : index
    %360 = vector.load %arg9[%c0_96, %c143] : memref<2x512xf32, #tpu.memory_space<vmem>>, vector<2x256xf32>
    %361 = vector.extract_strided_slice %72 {offsets = [0, 30], sizes = [2, 1], strides = [1, 1]} : vector<2x49xf32> to vector<2x1xf32>
    %362 = vector.broadcast %361 : vector<2x1xf32> to vector<2x256xf32>
    %363 = arith.mulf %360, %362 : vector<2x256xf32>
    %364 = arith.andi %55, %65 : vector<1x256xi1>
    %cst_97 = arith.constant 0.000000e+00 : f32
    %365 = vector.shape_cast %364 : vector<1x256xi1> to vector<1x256xi1>
    %366 = vector.broadcast %365 : vector<1x256xi1> to vector<2x256xi1>
    %367 = vector.broadcast %cst_97 : f32 to vector<2x256xf32>
    %368 = arith.select %366, %363, %367 : vector<2x256xi1>, vector<2x256xf32>
    %369 = arith.addf %359, %368 : vector<2x256xf32>
    %c0_98 = arith.constant 0 : index
    %c144 = arith.constant 144 : index
    %370 = vector.load %arg9[%c0_98, %c144] : memref<2x512xf32, #tpu.memory_space<vmem>>, vector<2x256xf32>
    %371 = vector.extract_strided_slice %72 {offsets = [0, 31], sizes = [2, 1], strides = [1, 1]} : vector<2x49xf32> to vector<2x1xf32>
    %372 = vector.broadcast %371 : vector<2x1xf32> to vector<2x256xf32>
    %373 = arith.mulf %370, %372 : vector<2x256xf32>
    %cst_99 = arith.constant 0.000000e+00 : f32
    %374 = vector.shape_cast %55 : vector<1x256xi1> to vector<1x256xi1>
    %375 = vector.broadcast %374 : vector<1x256xi1> to vector<2x256xi1>
    %376 = vector.broadcast %cst_99 : f32 to vector<2x256xf32>
    %377 = arith.select %375, %373, %376 : vector<2x256xi1>, vector<2x256xf32>
    %378 = arith.addf %369, %377 : vector<2x256xf32>
    %c0_100 = arith.constant 0 : index
    %c145 = arith.constant 145 : index
    %379 = vector.load %arg9[%c0_100, %c145] : memref<2x512xf32, #tpu.memory_space<vmem>>, vector<2x256xf32>
    %380 = vector.extract_strided_slice %72 {offsets = [0, 32], sizes = [2, 1], strides = [1, 1]} : vector<2x49xf32> to vector<2x1xf32>
    %381 = vector.broadcast %380 : vector<2x1xf32> to vector<2x256xf32>
    %382 = arith.mulf %379, %381 : vector<2x256xf32>
    %383 = arith.andi %55, %67 : vector<1x256xi1>
    %cst_101 = arith.constant 0.000000e+00 : f32
    %384 = vector.shape_cast %383 : vector<1x256xi1> to vector<1x256xi1>
    %385 = vector.broadcast %384 : vector<1x256xi1> to vector<2x256xi1>
    %386 = vector.broadcast %cst_101 : f32 to vector<2x256xf32>
    %387 = arith.select %385, %382, %386 : vector<2x256xi1>, vector<2x256xf32>
    %388 = arith.addf %378, %387 : vector<2x256xf32>
    %c0_102 = arith.constant 0 : index
    %c146 = arith.constant 146 : index
    %389 = vector.load %arg9[%c0_102, %c146] : memref<2x512xf32, #tpu.memory_space<vmem>>, vector<2x256xf32>
    %390 = vector.extract_strided_slice %72 {offsets = [0, 33], sizes = [2, 1], strides = [1, 1]} : vector<2x49xf32> to vector<2x1xf32>
    %391 = vector.broadcast %390 : vector<2x1xf32> to vector<2x256xf32>
    %392 = arith.mulf %389, %391 : vector<2x256xf32>
    %393 = arith.andi %55, %69 : vector<1x256xi1>
    %cst_103 = arith.constant 0.000000e+00 : f32
    %394 = vector.shape_cast %393 : vector<1x256xi1> to vector<1x256xi1>
    %395 = vector.broadcast %394 : vector<1x256xi1> to vector<2x256xi1>
    %396 = vector.broadcast %cst_103 : f32 to vector<2x256xf32>
    %397 = arith.select %395, %392, %396 : vector<2x256xi1>, vector<2x256xf32>
    %398 = arith.addf %388, %397 : vector<2x256xf32>
    %c0_104 = arith.constant 0 : index
    %c147 = arith.constant 147 : index
    %399 = vector.load %arg9[%c0_104, %c147] : memref<2x512xf32, #tpu.memory_space<vmem>>, vector<2x256xf32>
    %400 = vector.extract_strided_slice %72 {offsets = [0, 34], sizes = [2, 1], strides = [1, 1]} : vector<2x49xf32> to vector<2x1xf32>
    %401 = vector.broadcast %400 : vector<2x1xf32> to vector<2x256xf32>
    %402 = arith.mulf %399, %401 : vector<2x256xf32>
    %403 = arith.andi %55, %71 : vector<1x256xi1>
    %cst_105 = arith.constant 0.000000e+00 : f32
    %404 = vector.shape_cast %403 : vector<1x256xi1> to vector<1x256xi1>
    %405 = vector.broadcast %404 : vector<1x256xi1> to vector<2x256xi1>
    %406 = vector.broadcast %cst_105 : f32 to vector<2x256xf32>
    %407 = arith.select %405, %402, %406 : vector<2x256xi1>, vector<2x256xf32>
    %408 = arith.addf %398, %407 : vector<2x256xf32>
    %c0_106 = arith.constant 0 : index
    %c157 = arith.constant 157 : index
    %409 = vector.load %arg9[%c0_106, %c157] : memref<2x512xf32, #tpu.memory_space<vmem>>, vector<2x256xf32>
    %410 = vector.extract_strided_slice %72 {offsets = [0, 35], sizes = [2, 1], strides = [1, 1]} : vector<2x49xf32> to vector<2x1xf32>
    %411 = vector.broadcast %410 : vector<2x1xf32> to vector<2x256xf32>
    %412 = arith.mulf %409, %411 : vector<2x256xf32>
    %413 = arith.andi %57, %61 : vector<1x256xi1>
    %cst_107 = arith.constant 0.000000e+00 : f32
    %414 = vector.shape_cast %413 : vector<1x256xi1> to vector<1x256xi1>
    %415 = vector.broadcast %414 : vector<1x256xi1> to vector<2x256xi1>
    %416 = vector.broadcast %cst_107 : f32 to vector<2x256xf32>
    %417 = arith.select %415, %412, %416 : vector<2x256xi1>, vector<2x256xf32>
    %418 = arith.addf %408, %417 : vector<2x256xf32>
    %c0_108 = arith.constant 0 : index
    %c158 = arith.constant 158 : index
    %419 = vector.load %arg9[%c0_108, %c158] : memref<2x512xf32, #tpu.memory_space<vmem>>, vector<2x256xf32>
    %420 = vector.extract_strided_slice %72 {offsets = [0, 36], sizes = [2, 1], strides = [1, 1]} : vector<2x49xf32> to vector<2x1xf32>
    %421 = vector.broadcast %420 : vector<2x1xf32> to vector<2x256xf32>
    %422 = arith.mulf %419, %421 : vector<2x256xf32>
    %423 = arith.andi %57, %63 : vector<1x256xi1>
    %cst_109 = arith.constant 0.000000e+00 : f32
    %424 = vector.shape_cast %423 : vector<1x256xi1> to vector<1x256xi1>
    %425 = vector.broadcast %424 : vector<1x256xi1> to vector<2x256xi1>
    %426 = vector.broadcast %cst_109 : f32 to vector<2x256xf32>
    %427 = arith.select %425, %422, %426 : vector<2x256xi1>, vector<2x256xf32>
    %428 = arith.addf %418, %427 : vector<2x256xf32>
    %c0_110 = arith.constant 0 : index
    %c159 = arith.constant 159 : index
    %429 = vector.load %arg9[%c0_110, %c159] : memref<2x512xf32, #tpu.memory_space<vmem>>, vector<2x256xf32>
    %430 = vector.extract_strided_slice %72 {offsets = [0, 37], sizes = [2, 1], strides = [1, 1]} : vector<2x49xf32> to vector<2x1xf32>
    %431 = vector.broadcast %430 : vector<2x1xf32> to vector<2x256xf32>
    %432 = arith.mulf %429, %431 : vector<2x256xf32>
    %433 = arith.andi %57, %65 : vector<1x256xi1>
    %cst_111 = arith.constant 0.000000e+00 : f32
    %434 = vector.shape_cast %433 : vector<1x256xi1> to vector<1x256xi1>
    %435 = vector.broadcast %434 : vector<1x256xi1> to vector<2x256xi1>
    %436 = vector.broadcast %cst_111 : f32 to vector<2x256xf32>
    %437 = arith.select %435, %432, %436 : vector<2x256xi1>, vector<2x256xf32>
    %438 = arith.addf %428, %437 : vector<2x256xf32>
    %c0_112 = arith.constant 0 : index
    %c160 = arith.constant 160 : index
    %439 = vector.load %arg9[%c0_112, %c160] : memref<2x512xf32, #tpu.memory_space<vmem>>, vector<2x256xf32>
    %440 = vector.extract_strided_slice %72 {offsets = [0, 38], sizes = [2, 1], strides = [1, 1]} : vector<2x49xf32> to vector<2x1xf32>
    %441 = vector.broadcast %440 : vector<2x1xf32> to vector<2x256xf32>
    %442 = arith.mulf %439, %441 : vector<2x256xf32>
    %cst_113 = arith.constant 0.000000e+00 : f32
    %443 = vector.shape_cast %57 : vector<1x256xi1> to vector<1x256xi1>
    %444 = vector.broadcast %443 : vector<1x256xi1> to vector<2x256xi1>
    %445 = vector.broadcast %cst_113 : f32 to vector<2x256xf32>
    %446 = arith.select %444, %442, %445 : vector<2x256xi1>, vector<2x256xf32>
    %447 = arith.addf %438, %446 : vector<2x256xf32>
    %c0_114 = arith.constant 0 : index
    %c161 = arith.constant 161 : index
    %448 = vector.load %arg9[%c0_114, %c161] : memref<2x512xf32, #tpu.memory_space<vmem>>, vector<2x256xf32>
    %449 = vector.extract_strided_slice %72 {offsets = [0, 39], sizes = [2, 1], strides = [1, 1]} : vector<2x49xf32> to vector<2x1xf32>
    %450 = vector.broadcast %449 : vector<2x1xf32> to vector<2x256xf32>
    %451 = arith.mulf %448, %450 : vector<2x256xf32>
    %452 = arith.andi %57, %67 : vector<1x256xi1>
    %cst_115 = arith.constant 0.000000e+00 : f32
    %453 = vector.shape_cast %452 : vector<1x256xi1> to vector<1x256xi1>
    %454 = vector.broadcast %453 : vector<1x256xi1> to vector<2x256xi1>
    %455 = vector.broadcast %cst_115 : f32 to vector<2x256xf32>
    %456 = arith.select %454, %451, %455 : vector<2x256xi1>, vector<2x256xf32>
    %457 = arith.addf %447, %456 : vector<2x256xf32>
    %c0_116 = arith.constant 0 : index
    %c162 = arith.constant 162 : index
    %458 = vector.load %arg9[%c0_116, %c162] : memref<2x512xf32, #tpu.memory_space<vmem>>, vector<2x256xf32>
    %459 = vector.extract_strided_slice %72 {offsets = [0, 40], sizes = [2, 1], strides = [1, 1]} : vector<2x49xf32> to vector<2x1xf32>
    %460 = vector.broadcast %459 : vector<2x1xf32> to vector<2x256xf32>
    %461 = arith.mulf %458, %460 : vector<2x256xf32>
    %462 = arith.andi %57, %69 : vector<1x256xi1>
    %cst_117 = arith.constant 0.000000e+00 : f32
    %463 = vector.shape_cast %462 : vector<1x256xi1> to vector<1x256xi1>
    %464 = vector.broadcast %463 : vector<1x256xi1> to vector<2x256xi1>
    %465 = vector.broadcast %cst_117 : f32 to vector<2x256xf32>
    %466 = arith.select %464, %461, %465 : vector<2x256xi1>, vector<2x256xf32>
    %467 = arith.addf %457, %466 : vector<2x256xf32>
    %c0_118 = arith.constant 0 : index
    %c163 = arith.constant 163 : index
    %468 = vector.load %arg9[%c0_118, %c163] : memref<2x512xf32, #tpu.memory_space<vmem>>, vector<2x256xf32>
    %469 = vector.extract_strided_slice %72 {offsets = [0, 41], sizes = [2, 1], strides = [1, 1]} : vector<2x49xf32> to vector<2x1xf32>
    %470 = vector.broadcast %469 : vector<2x1xf32> to vector<2x256xf32>
    %471 = arith.mulf %468, %470 : vector<2x256xf32>
    %472 = arith.andi %57, %71 : vector<1x256xi1>
    %cst_119 = arith.constant 0.000000e+00 : f32
    %473 = vector.shape_cast %472 : vector<1x256xi1> to vector<1x256xi1>
    %474 = vector.broadcast %473 : vector<1x256xi1> to vector<2x256xi1>
    %475 = vector.broadcast %cst_119 : f32 to vector<2x256xf32>
    %476 = arith.select %474, %471, %475 : vector<2x256xi1>, vector<2x256xf32>
    %477 = arith.addf %467, %476 : vector<2x256xf32>
    %c0_120 = arith.constant 0 : index
    %c173 = arith.constant 173 : index
    %478 = vector.load %arg9[%c0_120, %c173] : memref<2x512xf32, #tpu.memory_space<vmem>>, vector<2x256xf32>
    %479 = vector.extract_strided_slice %72 {offsets = [0, 42], sizes = [2, 1], strides = [1, 1]} : vector<2x49xf32> to vector<2x1xf32>
    %480 = vector.broadcast %479 : vector<2x1xf32> to vector<2x256xf32>
    %481 = arith.mulf %478, %480 : vector<2x256xf32>
    %482 = arith.andi %59, %61 : vector<1x256xi1>
    %cst_121 = arith.constant 0.000000e+00 : f32
    %483 = vector.shape_cast %482 : vector<1x256xi1> to vector<1x256xi1>
    %484 = vector.broadcast %483 : vector<1x256xi1> to vector<2x256xi1>
    %485 = vector.broadcast %cst_121 : f32 to vector<2x256xf32>
    %486 = arith.select %484, %481, %485 : vector<2x256xi1>, vector<2x256xf32>
    %487 = arith.addf %477, %486 : vector<2x256xf32>
    %c0_122 = arith.constant 0 : index
    %c174 = arith.constant 174 : index
    %488 = vector.load %arg9[%c0_122, %c174] : memref<2x512xf32, #tpu.memory_space<vmem>>, vector<2x256xf32>
    %489 = vector.extract_strided_slice %72 {offsets = [0, 43], sizes = [2, 1], strides = [1, 1]} : vector<2x49xf32> to vector<2x1xf32>
    %490 = vector.broadcast %489 : vector<2x1xf32> to vector<2x256xf32>
    %491 = arith.mulf %488, %490 : vector<2x256xf32>
    %492 = arith.andi %59, %63 : vector<1x256xi1>
    %cst_123 = arith.constant 0.000000e+00 : f32
    %493 = vector.shape_cast %492 : vector<1x256xi1> to vector<1x256xi1>
    %494 = vector.broadcast %493 : vector<1x256xi1> to vector<2x256xi1>
    %495 = vector.broadcast %cst_123 : f32 to vector<2x256xf32>
    %496 = arith.select %494, %491, %495 : vector<2x256xi1>, vector<2x256xf32>
    %497 = arith.addf %487, %496 : vector<2x256xf32>
    %c0_124 = arith.constant 0 : index
    %c175 = arith.constant 175 : index
    %498 = vector.load %arg9[%c0_124, %c175] : memref<2x512xf32, #tpu.memory_space<vmem>>, vector<2x256xf32>
    %499 = vector.extract_strided_slice %72 {offsets = [0, 44], sizes = [2, 1], strides = [1, 1]} : vector<2x49xf32> to vector<2x1xf32>
    %500 = vector.broadcast %499 : vector<2x1xf32> to vector<2x256xf32>
    %501 = arith.mulf %498, %500 : vector<2x256xf32>
    %502 = arith.andi %59, %65 : vector<1x256xi1>
    %cst_125 = arith.constant 0.000000e+00 : f32
    %503 = vector.shape_cast %502 : vector<1x256xi1> to vector<1x256xi1>
    %504 = vector.broadcast %503 : vector<1x256xi1> to vector<2x256xi1>
    %505 = vector.broadcast %cst_125 : f32 to vector<2x256xf32>
    %506 = arith.select %504, %501, %505 : vector<2x256xi1>, vector<2x256xf32>
    %507 = arith.addf %497, %506 : vector<2x256xf32>
    %c0_126 = arith.constant 0 : index
    %c176 = arith.constant 176 : index
    %508 = vector.load %arg9[%c0_126, %c176] : memref<2x512xf32, #tpu.memory_space<vmem>>, vector<2x256xf32>
    %509 = vector.extract_strided_slice %72 {offsets = [0, 45], sizes = [2, 1], strides = [1, 1]} : vector<2x49xf32> to vector<2x1xf32>
    %510 = vector.broadcast %509 : vector<2x1xf32> to vector<2x256xf32>
    %511 = arith.mulf %508, %510 : vector<2x256xf32>
    %cst_127 = arith.constant 0.000000e+00 : f32
    %512 = vector.shape_cast %59 : vector<1x256xi1> to vector<1x256xi1>
    %513 = vector.broadcast %512 : vector<1x256xi1> to vector<2x256xi1>
    %514 = vector.broadcast %cst_127 : f32 to vector<2x256xf32>
    %515 = arith.select %513, %511, %514 : vector<2x256xi1>, vector<2x256xf32>
    %516 = arith.addf %507, %515 : vector<2x256xf32>
    %c0_128 = arith.constant 0 : index
    %c177 = arith.constant 177 : index
    %517 = vector.load %arg9[%c0_128, %c177] : memref<2x512xf32, #tpu.memory_space<vmem>>, vector<2x256xf32>
    %518 = vector.extract_strided_slice %72 {offsets = [0, 46], sizes = [2, 1], strides = [1, 1]} : vector<2x49xf32> to vector<2x1xf32>
    %519 = vector.broadcast %518 : vector<2x1xf32> to vector<2x256xf32>
    %520 = arith.mulf %517, %519 : vector<2x256xf32>
    %521 = arith.andi %59, %67 : vector<1x256xi1>
    %cst_129 = arith.constant 0.000000e+00 : f32
    %522 = vector.shape_cast %521 : vector<1x256xi1> to vector<1x256xi1>
    %523 = vector.broadcast %522 : vector<1x256xi1> to vector<2x256xi1>
    %524 = vector.broadcast %cst_129 : f32 to vector<2x256xf32>
    %525 = arith.select %523, %520, %524 : vector<2x256xi1>, vector<2x256xf32>
    %526 = arith.addf %516, %525 : vector<2x256xf32>
    %c0_130 = arith.constant 0 : index
    %c178 = arith.constant 178 : index
    %527 = vector.load %arg9[%c0_130, %c178] : memref<2x512xf32, #tpu.memory_space<vmem>>, vector<2x256xf32>
    %528 = vector.extract_strided_slice %72 {offsets = [0, 47], sizes = [2, 1], strides = [1, 1]} : vector<2x49xf32> to vector<2x1xf32>
    %529 = vector.broadcast %528 : vector<2x1xf32> to vector<2x256xf32>
    %530 = arith.mulf %527, %529 : vector<2x256xf32>
    %531 = arith.andi %59, %69 : vector<1x256xi1>
    %cst_131 = arith.constant 0.000000e+00 : f32
    %532 = vector.shape_cast %531 : vector<1x256xi1> to vector<1x256xi1>
    %533 = vector.broadcast %532 : vector<1x256xi1> to vector<2x256xi1>
    %534 = vector.broadcast %cst_131 : f32 to vector<2x256xf32>
    %535 = arith.select %533, %530, %534 : vector<2x256xi1>, vector<2x256xf32>
    %536 = arith.addf %526, %535 : vector<2x256xf32>
    %c0_132 = arith.constant 0 : index
    %c179 = arith.constant 179 : index
    %537 = vector.load %arg9[%c0_132, %c179] : memref<2x512xf32, #tpu.memory_space<vmem>>, vector<2x256xf32>
    %538 = vector.extract_strided_slice %72 {offsets = [0, 48], sizes = [2, 1], strides = [1, 1]} : vector<2x49xf32> to vector<2x1xf32>
    %539 = vector.broadcast %538 : vector<2x1xf32> to vector<2x256xf32>
    %540 = arith.mulf %537, %539 : vector<2x256xf32>
    %541 = arith.andi %59, %71 : vector<1x256xi1>
    %cst_133 = arith.constant 0.000000e+00 : f32
    %542 = vector.shape_cast %541 : vector<1x256xi1> to vector<1x256xi1>
    %543 = vector.broadcast %542 : vector<1x256xi1> to vector<2x256xi1>
    %544 = vector.broadcast %cst_133 : f32 to vector<2x256xf32>
    %545 = arith.select %543, %540, %544 : vector<2x256xi1>, vector<2x256xf32>
    %546 = arith.addf %536, %545 : vector<2x256xf32>
    %547 = vector.extract_strided_slice %546 {offsets = [0, 0], sizes = [1, 256], strides = [1, 1]} : vector<2x256xf32> to vector<1x256xf32>
    %548 = vector.extract_strided_slice %546 {offsets = [1, 0], sizes = [1, 256], strides = [1, 1]} : vector<2x256xf32> to vector<1x256xf32>
    %549 = arith.addf %547, %548 : vector<1x256xf32>
    %c0_134 = arith.constant 0 : index
    %c0_135 = arith.constant 0 : index
    %550 = memref.load %arg7[%c0_134, %c0_135] : memref<1x1xf32, #tpu.memory_space<smem>>
    %551 = vector.broadcast %550 : f32 to vector<1x256xf32>
    %552 = arith.addf %549, %551 : vector<1x256xf32>
    %cst_136 = arith.constant 0.000000e+00 : f32
    %553 = vector.broadcast %cst_136 : f32 to vector<1x256xf32>
    %554 = arith.subf %553, %552 : vector<1x256xf32>
    %555 = math.exp %554 : vector<1x256xf32>
    %cst_137 = arith.constant 1.000000e+00 : f32
    %556 = vector.broadcast %cst_137 : f32 to vector<1x256xf32>
    %557 = arith.addf %556, %555 : vector<1x256xf32>
    %cst_138 = arith.constant 1.000000e+00 : f32
    %558 = vector.broadcast %cst_138 : f32 to vector<1x256xf32>
    %559 = arith.divf %558, %557 : vector<1x256xf32>
    %560 = vector.shape_cast %559 : vector<1x256xf32> to vector<1x1x256xf32>
    %561 = vector.broadcast %560 : vector<1x1x256xf32> to vector<1x32x256xf32>
    %562 = arith.mulf %33, %561 : vector<1x32x256xf32>
    %c0_139 = arith.constant 0 : index
    %c0_140 = arith.constant 0 : index
    %c0_141 = arith.constant 0 : index
    %563 = vector.load %arg8[%c0_139, %c0_140, %c0_141] : memref<1x32x256xf32, #tpu.memory_space<vmem>>, vector<1x32x256xf32>
    tpu.vector_store %arg8[%c0_139, %c0_140, %c0_141], %562 {strides = array<i32>} : memref<1x32x256xf32, #tpu.memory_space<vmem>>, vector<1x32x256xf32>,
    return
  }
  func.func @transform_0(%arg0: i32) -> (i32, i32, i32) {
    %c0_i32 = arith.constant 0 : i32
    %c0_i32_0 = arith.constant 0 : i32
    %c0_i32_1 = arith.constant 0 : i32
    return %arg0, %c0_i32, %c0_i32_0 : i32, i32, i32
  }
  func.func @transform_1(%arg0: i32) -> (i32, i32) {
    %c0_i32 = arith.constant 0 : i32
    %c0_i32_0 = arith.constant 0 : i32
    %c0_i32_1 = arith.constant 0 : i32
    return %c0_i32, %c0_i32_0 : i32, i32
  }
  func.func @transform_2(%arg0: i32) -> (i32, i32) {
    %c0_i32 = arith.constant 0 : i32
    %c0_i32_0 = arith.constant 0 : i32
    %c0_i32_1 = arith.constant 0 : i32
    return %c0_i32, %c0_i32_0 : i32, i32
  }
  func.func @transform_3(%arg0: i32) -> (i32, i32) {
    %c0_i32 = arith.constant 0 : i32
    %c0_i32_0 = arith.constant 0 : i32
    %c0_i32_1 = arith.constant 0 : i32
    return %c0_i32, %c0_i32_0 : i32, i32
  }
  func.func @transform_4(%arg0: i32) -> (i32, i32) {
    %c0_i32 = arith.constant 0 : i32
    %c0_i32_0 = arith.constant 0 : i32
    %c0_i32_1 = arith.constant 0 : i32
    return %c0_i32, %c0_i32_0 : i32, i32
  }
  func.func @transform_5(%arg0: i32) -> (i32, i32) {
    %c0_i32 = arith.constant 0 : i32
    %c0_i32_0 = arith.constant 0 : i32
    %c0_i32_1 = arith.constant 0 : i32
    return %c0_i32, %c0_i32_0 : i32, i32
  }
  func.func @transform_6(%arg0: i32) -> (i32, i32) {
    %c0_i32 = arith.constant 0 : i32
    %c0_i32_0 = arith.constant 0 : i32
    %c0_i32_1 = arith.constant 0 : i32
    return %c0_i32, %c0_i32_0 : i32, i32
  }
  func.func @transform_7(%arg0: i32) -> (i32, i32, i32) {
    %c0_i32 = arith.constant 0 : i32
    %c0_i32_0 = arith.constant 0 : i32
    %c0_i32_1 = arith.constant 0 : i32
    return %arg0, %c0_i32, %c0_i32_0 : i32, i32, i32
  }
}

</mosaic_0001>

<llo_original>
// kernel: attention_block_forward.1
$region0: #{attention_block_forward.1}
  #allocation0 [shape = 'u32[]', space=smem, size = 0x4, offset = 0x4, fixed_abs, tag = 'smem constant byte address 0x4 - core index']
  #allocation1 [shape = 'u32[144,128]{1,0:T(1,128)}', space=vmem, size = 0x12000, scoped, tag = 'internal scratch']
  #allocation2 [shape = 'f32[2,512]{1,0:T(2,128)}', space=vmem, size = 0x1000, scoped, tag = 'scratch operand']
  #allocation3 [shape = 'f32[1,1]{1,0:T(1,128)S(6)}', space=smem, size = 0x200, scoped, tag = 'scoped memory for attention_block_forward.1']
  %s0 = inlined_call_operand.vmem [shape: f32[2,32,256], index: 0, kind: input, shape index: {}]
  %s1 = inlined_call_operand.vmem [shape: f32[32,4], index: 1, kind: input, shape index: {}]
  %s2 = inlined_call_operand.vmem [shape: f32[1,4], index: 2, kind: input, shape index: {}]
  %s3 = inlined_call_operand.vmem [shape: f32[32,4], index: 3, kind: input, shape index: {}]
  %s4 = inlined_call_operand.vmem [shape: f32[32,1], index: 4, kind: input, shape index: {}]
  %s5 = inlined_call_operand.vmem [shape: f32[2,49], index: 5, kind: input, shape index: {}]
  %s6 = inlined_call_operand.<no memory space> [shape: f32[1,1], index: 6, kind: input, shape index: {}]
  %s7 = inlined_call_operand.vmem [shape: f32[2,32,256], index: 7, kind: output, shape index: {}]
  %s8 = sld [smem:[#allocation0]]
  $region61: #{attention_block_forward.1} parent=0
    _
  %s10 = ssub.s32 1, %s8
  %s11 = scalar_select 0, %s10, %s8
  %12 = sst [smem:[#allocation3]] %s6
  loop: start=0, step=1, limit=4
  $region2: #{attention_block_forward.1} parent=0 // loop_pre_header
    _
  $region3: #{attention_block_forward.1} parent=0 // loop_header
    %s14 = sphi 0, %s18
    %p15 = scmp.ge.s32.totalorder %s14, 4
    %s24 = sphi 0, %s26
    %s27 = sphi 0, %s24
    %s28 = sphi 0, %s27
    %s44 = sphi 0, %s28
    %s48 = sphi 0, %s48
    %s50 = sphi 0, %s48
    %s51 = sphi 0, %s50
    %s65 = sphi 0, %s51
    %s69 = sphi 0, %s69
    %s71 = sphi 0, %s69
    %s72 = sphi 0, %s71
    %s86 = sphi 0, %s72
    %s90 = sphi 0, %s90
    %s92 = sphi 0, %s90
    %s93 = sphi 0, %s92
    %s107 = sphi 0, %s93
    %s111 = sphi 0, %s111
    %s113 = sphi 0, %s111
    %s114 = sphi 0, %s113
    %s128 = sphi 0, %s114
    %s132 = sphi 0, %s132
    %s134 = sphi 0, %s132
    %s135 = sphi 0, %s134
    %s149 = sphi 0, %s135
    %s153 = sphi 0, %s153
    %s155 = sphi 0, %s153
    %s156 = sphi 0, %s155
    %s170 = sphi 0, %s156
    %s176 = sphi 0, %s178
    %s179 = sphi 0, %s176
    %s180 = sphi 0, %s179
    %s196 = sphi 0, %s180
  $region4: #{attention_block_forward.1} parent=0 // loop_header_branch
    %17 = sbr.rel (%p15) target = $region8
  $region5: #{attention_block_forward.1} parent=0 // loop_body
    %s19 = ssub.s32 %s14, 1
    %s20 = ssub.s32 %s14, 2
    %s21 = sadd.s32 %s14, 1
    %s22 = ssub.s32 %s14, %s21
    %p23 = scmp.eq.s32.totalorder %s22, 0
    %s25 = sadd.s32 %s24, 1
    %s26 = scalar_select %p23, %s24, %s25
    %p29 = pneg %p23
    %p30 = scmp.eq.s32.totalorder %s14, 1
    %p31 = por %p29, %p30
    %p32 = scmp.ne.s32.totalorder %s24, %s27
    %p33 = scmp.eq.s32.totalorder %s14, 0
    %p34 = por %p32, %p33
    %p35 = scmp.ne.s32.totalorder %s24, %s27
    %p36 = scmp.eq.s32.totalorder %s19, 1
    %p37 = por %p35, %p36
    %p38 = scmp.ne.s32.totalorder %s27, %s28
    %p39 = scmp.eq.s32.totalorder %s19, 0
    %p40 = por %p38, %p39
    %p41 = scmp.ne.s32.totalorder %s27, %s28
    %p42 = scmp.eq.s32.totalorder %s20, 1
    %p43 = por %p41, %p42
    %p45 = scmp.ne.s32.totalorder %s28, %s44
    %p46 = scmp.eq.s32.totalorder %s20, 0
    %p47 = por %p45, %p46
    %s49 = sadd.s32 %s48, 1
    %p52 = scmp.eq.s32.totalorder %s14, 1
    %p53 = scmp.ne.s32.totalorder %s48, %s50
    %p54 = scmp.eq.s32.totalorder %s14, 0
    %p55 = por %p53, %p54
    %p56 = scmp.ne.s32.totalorder %s48, %s50
    %p57 = scmp.eq.s32.totalorder %s19, 1
    %p58 = por %p56, %p57
    %p59 = scmp.ne.s32.totalorder %s50, %s51
    %p60 = scmp.eq.s32.totalorder %s19, 0
    %p61 = por %p59, %p60
    %p62 = scmp.ne.s32.totalorder %s50, %s51
    %p63 = scmp.eq.s32.totalorder %s20, 1
    %p64 = por %p62, %p63
    %p66 = scmp.ne.s32.totalorder %s51, %s65
    %p67 = scmp.eq.s32.totalorder %s20, 0
    %p68 = por %p66, %p67
    %s70 = sadd.s32 %s69, 1
    %p73 = scmp.eq.s32.totalorder %s14, 1
    %p74 = scmp.ne.s32.totalorder %s69, %s71
    %p75 = scmp.eq.s32.totalorder %s14, 0
    %p76 = por %p74, %p75
    %p77 = scmp.ne.s32.totalorder %s69, %s71
    %p78 = scmp.eq.s32.totalorder %s19, 1
    %p79 = por %p77, %p78
    %p80 = scmp.ne.s32.totalorder %s71, %s72
    %p81 = scmp.eq.s32.totalorder %s19, 0
    %p82 = por %p80, %p81
    %p83 = scmp.ne.s32.totalorder %s71, %s72
    %p84 = scmp.eq.s32.totalorder %s20, 1
    %p85 = por %p83, %p84
    %p87 = scmp.ne.s32.totalorder %s72, %s86
    %p88 = scmp.eq.s32.totalorder %s20, 0
    %p89 = por %p87, %p88
    %s91 = sadd.s32 %s90, 1
    %p94 = scmp.eq.s32.totalorder %s14, 1
    %p95 = scmp.ne.s32.totalorder %s90, %s92
    %p96 = scmp.eq.s32.totalorder %s14, 0
    %p97 = por %p95, %p96
    %p98 = scmp.ne.s32.totalorder %s90, %s92
    %p99 = scmp.eq.s32.totalorder %s19, 1
    %p100 = por %p98, %p99
    %p101 = scmp.ne.s32.totalorder %s92, %s93
    %p102 = scmp.eq.s32.totalorder %s19, 0
    %p103 = por %p101, %p102
    %p104 = scmp.ne.s32.totalorder %s92, %s93
    %p105 = scmp.eq.s32.totalorder %s20, 1
    %p106 = por %p104, %p105
    %p108 = scmp.ne.s32.totalorder %s93, %s107
    %p109 = scmp.eq.s32.totalorder %s20, 0
    %p110 = por %p108, %p109
    %s112 = sadd.s32 %s111, 1
    %p115 = scmp.eq.s32.totalorder %s14, 1
    %p116 = scmp.ne.s32.totalorder %s111, %s113
    %p117 = scmp.eq.s32.totalorder %s14, 0
    %p118 = por %p116, %p117
    %p119 = scmp.ne.s32.totalorder %s111, %s113
    %p120 = scmp.eq.s32.totalorder %s19, 1
    %p121 = por %p119, %p120
    %p122 = scmp.ne.s32.totalorder %s113, %s114
    %p123 = scmp.eq.s32.totalorder %s19, 0
    %p124 = por %p122, %p123
    %p125 = scmp.ne.s32.totalorder %s113, %s114
    %p126 = scmp.eq.s32.totalorder %s20, 1
    %p127 = por %p125, %p126
    %p129 = scmp.ne.s32.totalorder %s114, %s128
    %p130 = scmp.eq.s32.totalorder %s20, 0
    %p131 = por %p129, %p130
    %s133 = sadd.s32 %s132, 1
    %p136 = scmp.eq.s32.totalorder %s14, 1
    %p137 = scmp.ne.s32.totalorder %s132, %s134
    %p138 = scmp.eq.s32.totalorder %s14, 0
    %p139 = por %p137, %p138
    %p140 = scmp.ne.s32.totalorder %s132, %s134
    %p141 = scmp.eq.s32.totalorder %s19, 1
    %p142 = por %p140, %p141
    %p143 = scmp.ne.s32.totalorder %s134, %s135
    %p144 = scmp.eq.s32.totalorder %s19, 0
    %p145 = por %p143, %p144
    %p146 = scmp.ne.s32.totalorder %s134, %s135
    %p147 = scmp.eq.s32.totalorder %s20, 1
    %p148 = por %p146, %p147
    %p150 = scmp.ne.s32.totalorder %s135, %s149
    %p151 = scmp.eq.s32.totalorder %s20, 0
    %p152 = por %p150, %p151
    %s154 = sadd.s32 %s153, 1
    %p157 = scmp.eq.s32.totalorder %s14, 1
    %p158 = scmp.ne.s32.totalorder %s153, %s155
    %p159 = scmp.eq.s32.totalorder %s14, 0
    %p160 = por %p158, %p159
    %p161 = scmp.ne.s32.totalorder %s153, %s155
    %p162 = scmp.eq.s32.totalorder %s19, 1
    %p163 = por %p161, %p162
    %p164 = scmp.ne.s32.totalorder %s155, %s156
    %p165 = scmp.eq.s32.totalorder %s19, 0
    %p166 = por %p164, %p165
    %p167 = scmp.ne.s32.totalorder %s155, %s156
    %p168 = scmp.eq.s32.totalorder %s20, 1
    %p169 = por %p167, %p168
    %p171 = scmp.ne.s32.totalorder %s156, %s170
    %p172 = scmp.eq.s32.totalorder %s20, 0
    %p173 = por %p171, %p172
    %s174 = ssub.s32 %s14, %s21
    %p175 = scmp.eq.s32.totalorder %s174, 0
    %s177 = sadd.s32 %s176, 1
    %s178 = scalar_select %p175, %s176, %s177
    %p181 = pneg %p175
    %p182 = scmp.eq.s32.totalorder %s14, 1
    %p183 = por %p181, %p182
    %p184 = scmp.ne.s32.totalorder %s176, %s179
    %p185 = scmp.eq.s32.totalorder %s14, 0
    %p186 = por %p184, %p185
    %p187 = scmp.ne.s32.totalorder %s176, %s179
    %p188 = scmp.eq.s32.totalorder %s19, 1
    %p189 = por %p187, %p188
    %p190 = scmp.ne.s32.totalorder %s179, %s180
    %p191 = scmp.eq.s32.totalorder %s19, 0
    %p192 = por %p190, %p191
    %p193 = scmp.ne.s32.totalorder %s179, %s180
    %p194 = scmp.eq.s32.totalorder %s20, 1
    %p195 = por %p193, %p194
    %p197 = scmp.ne.s32.totalorder %s180, %s196
    %p198 = scmp.eq.s32.totalorder %s20, 0
    %p199 = por %p197, %p198
    %p200 = scmp.le.s32.totalorder 1, %s14
    %p201 = scmp.lt.s32.totalorder %s14, 3
    %p202 = pnand %p200, %p201
    %p203 = pneg %p202
    // Predicated region
    $region9: #{attention_block_forward.1} parent=5 // pred_check
      _
    $region10: #{attention_block_forward.1} parent=5 // pred_check_branch
      %205 = sbr.rel (%p202) target = $region12
    $region11: #{attention_block_forward.1} parent=5 // pred_region
      %s206 = ssub.s32 %s14, 1
      // Predicated region
      $region13: #{attention_block_forward.1} parent=11 // pred_check
        %p207 = pneg %p61
      $region14: #{attention_block_forward.1} parent=11 // pred_check_branch
        %209 = sbr.rel (%p207) target = $region16
      $region15: #{attention_block_forward.1} parent=11 // pred_region
        _
      $region16: #{attention_block_forward.1} parent=11 // pred_fallthru
        _
      // Predicated region
      $region17: #{attention_block_forward.1} parent=11 // pred_check
        %p210 = pneg %p82
      $region18: #{attention_block_forward.1} parent=11 // pred_check_branch
        %212 = sbr.rel (%p210) target = $region20
      $region19: #{attention_block_forward.1} parent=11 // pred_region
        _
      $region20: #{attention_block_forward.1} parent=11 // pred_fallthru
        _
      // Predicated region
      $region21: #{attention_block_forward.1} parent=11 // pred_check
        %p213 = pneg %p103
      $region22: #{attention_block_forward.1} parent=11 // pred_check_branch
        %215 = sbr.rel (%p213) target = $region24
      $region23: #{attention_block_forward.1} parent=11 // pred_region
        _
      $region24: #{attention_block_forward.1} parent=11 // pred_fallthru
        _
      // Predicated region
      $region25: #{attention_block_forward.1} parent=11 // pred_check
        %p216 = pneg %p124
      $region26: #{attention_block_forward.1} parent=11 // pred_check_branch
        %218 = sbr.rel (%p216) target = $region28
      $region27: #{attention_block_forward.1} parent=11 // pred_region
        _
      $region28: #{attention_block_forward.1} parent=11 // pred_fallthru
        _
      // Predicated region
      $region29: #{attention_block_forward.1} parent=11 // pred_check
        %p219 = pneg %p145
      $region30: #{attention_block_forward.1} parent=11 // pred_check_branch
        %221 = sbr.rel (%p219) target = $region32
      $region31: #{attention_block_forward.1} parent=11 // pred_region
        _
      $region32: #{attention_block_forward.1} parent=11 // pred_fallthru
        _
      // Predicated region
      $region33: #{attention_block_forward.1} parent=11 // pred_check
        %p222 = pneg %p166
      $region34: #{attention_block_forward.1} parent=11 // pred_check_branch
        %224 = sbr.rel (%p222) target = $region36
      $region35: #{attention_block_forward.1} parent=11 // pred_region
        _
      $region36: #{attention_block_forward.1} parent=11 // pred_fallthru
        _
    $region12: #{attention_block_forward.1} parent=5 // pred_fallthru
      _
    %p225 = scmp.lt.s32.totalorder %s14, 2
    // Predicated region
    $region37: #{attention_block_forward.1} parent=5 // pred_check
      %p226 = pneg %p225
    $region38: #{attention_block_forward.1} parent=5 // pred_check_branch
      %228 = sbr.rel (%p226) target = $region40
    $region39: #{attention_block_forward.1} parent=5 // pred_region
      // Predicated region
      $region41: #{attention_block_forward.1} parent=39 // pred_check
        %p229 = pneg %p34
      $region42: #{attention_block_forward.1} parent=39 // pred_check_branch
        %231 = sbr.rel (%p229) target = $region44
      $region43: #{attention_block_forward.1} parent=39 // pred_region
        %p232 = scmp.lt.s32.totalorder %s14, 1
        %s233 = scalar_select %p232, %s14, 1
        %s234 = smul.addr %s233, 8
        %s235 = smul.addr %s234, 8
        %s236 = scalar_lea.vmem %s0, %s235
      $region44: #{attention_block_forward.1} parent=39 // pred_fallthru
        _
    $region40: #{attention_block_forward.1} parent=5 // pred_fallthru
      _
    %p237 = scmp.le.s32.totalorder 1, %s14
    %p238 = scmp.lt.s32.totalorder %s14, 3
    %p239 = pnand %p237, %p238
    %p240 = pneg %p239
    // Predicated region
    $region45: #{attention_block_forward.1} parent=5 // pred_check
      _
    $region46: #{attention_block_forward.1} parent=5 // pred_check_branch
      %242 = sbr.rel (%p239) target = $region48
    $region47: #{attention_block_forward.1} parent=5 // pred_region
      %s243 = ssub.s32 %s14, 1
      %p244 = scmp.lt.s32.totalorder %s19, 1
      %s245 = scalar_select %p244, %s19, 1
      %s246 = smul.addr %s245, 8
      %s247 = smul.addr %s246, 8
      %s248 = scalar_lea.vmem %s0, %s247
      %p249 = pneg %p40
      %p250 = pneg %p37
      %p251 = pneg %p61
      %p252 = pneg %p58
      %p253 = pneg %p82
      %p254 = pneg %p79
      %p255 = pneg %p103
      %p256 = pneg %p100
      %p257 = pneg %p124
      %p258 = pneg %p121
      %p259 = pneg %p145
      %p260 = pneg %p142
      %p261 = pneg %p166
      %p262 = pneg %p163
      %p263 = pneg %p192
      %p264 = pneg %p189
      %p265 = scmp.lt.s32.totalorder %s19, 1
      %s266 = scalar_select %p265, %s19, 1
      %s267 = smul.addr %s266, 8
      %s268 = smul.addr %s267, 8
      %s269 = scalar_lea.vmem %s7, %s268
      %p270 = scmp.lt.s32.totalorder %s19, 1
      %s271 = scalar_select %p270, %s19, 1
      %s272 = smul.addr %s271, 8
      %s273 = smul.addr %s272, 8
      %s274 = scalar_lea.vmem %s0, %s273
      %p275 = scmp.lt.s32.totalorder %s19, 1
      %s276 = scalar_select %p275, %s19, 1
      %s277 = smul.addr %s276, 8
      %s278 = smul.addr %s277, 8
      %s279 = scalar_lea.vmem %s7, %s278
      %v280 = vld [vmem:[%s274] sm:$0xff]
      %v281 = vld [vmem:[%s274 + $0x8] sm:$0xff]
      %v282 = vld [vmem:[%s274 + $0x10] sm:$0xff]
      %v283 = vld [vmem:[%s274 + $0x18] sm:$0xff]
      %v284 = vld [vmem:[%s274 + $0x20] sm:$0xff]
      %v285 = vld [vmem:[%s274 + $0x28] sm:$0xff]
      %v286 = vld [vmem:[%s274 + $0x30] sm:$0xff]
      %v287 = vld [vmem:[%s274 + $0x38] sm:$0xff]
      %v288 = vadd.f32 %v280, %v281
      %289 = vadd.xlane.f32.xlu0 %v288
      %v290 = vpop.xlane.xlu0 %289
      %v291 = vadd.f32 %v282, %v283
      %292 = vadd.xlane.f32.xlu0 %v291
      %v293 = vpop.xlane.xlu0 %292
      %v294 = vadd.f32 %v284, %v285
      %295 = vadd.xlane.f32.xlu0 %v294
      %v296 = vpop.xlane.xlu0 %295
      %v297 = vadd.f32 %v286, %v287
      %298 = vadd.xlane.f32.xlu0 %v297
      %v299 = vpop.xlane.xlu0 %298
      %v300 = vrcp.pop 256.0
      %v301 = vmul.f32 %v290, %v300
      %v302 = vmul.f32 %v293, %v300
      %v303 = vmul.f32 %v296, %v300
      %v304 = vmul.f32 %v299, %v300
      %v305 = vld [vmem:[%s1] sm:$0xff]
      %v306 = vld [vmem:[%s1 + $0x8] sm:$0xff]
      %v307 = vld [vmem:[%s1 + $0x10] sm:$0xff]
      %v308 = vld [vmem:[%s1 + $0x18] sm:$0xff]
      %v309 = vmul.f32 %v305, %v301
      %v310 = vmul.f32 %v306, %v302
      %v311 = vmul.f32 %v307, %v303
      %v312 = vmul.f32 %v308, %v304
      %vm313 = vcmask 31744
      %v314 = vsel %vm313, %v309, 0.0
      %v315 = vsel %vm313, %v310, 0.0
      %v316 = vadd.f32 %v314, %v315
      %v317 = vsel %vm313, %v311, 0.0
      %v318 = vadd.f32 %v316, %v317
      %v319 = vsel %vm313, %v312, 0.0
      %v320 = vadd.f32 %v318, %v319
      %v321 = vrot.slane %v320, 4
      %v322 = vadd.f32 %v320, %v321
      %v323 = vrot.slane %v322, 2
      %v324 = vadd.f32 %v322, %v323
      %v325 = vrot.slane %v324, 1
      %v326 = vadd.f32 %v324, %v325
      %v327 = vld [vmem:[%s2] sm:$0x1]
      %v328 = vadd.f32 %v326, %v327
      %v329 = vmax.f32 %v328, 0.0
      %v330 = vld [vmem:[%s3] sm:$0xff]
      %v331 = vld [vmem:[%s3 + $0x8] sm:$0xff]
      %v332 = vld [vmem:[%s3 + $0x10] sm:$0xff]
      %v333 = vld [vmem:[%s3 + $0x18] sm:$0xff]
      %v334 = vlaneseq
      %v335 = vshrl.u32 %v334, 7
      %v336 = vsub.s32 0, %v335
      %v337 = vrot.slane %v329, %v336
      %v338 = vmul.f32 %v330, %v337
      %v339 = vmul.f32 %v331, %v337
      %v340 = vmul.f32 %v332, %v337
      %v341 = vmul.f32 %v333, %v337
      %v342 = vsel %vm313, %v338, 0.0
      %343 = vadd.xlane.f32.xlu0 %v342
      %v344 = vpop.xlane.xlu0 %343
      %v345 = vsel %vm313, %v339, 0.0
      %346 = vadd.xlane.f32.xlu0 %v345
      %v347 = vpop.xlane.xlu0 %346
      %v348 = vsel %vm313, %v340, 0.0
      %349 = vadd.xlane.f32.xlu0 %v348
      %v350 = vpop.xlane.xlu0 %349
      %v351 = vsel %vm313, %v341, 0.0
      %352 = vadd.xlane.f32.xlu0 %v351
      %v353 = vpop.xlane.xlu0 %352
      %v354 = vld [vmem:[%s4] sm:$0xff]
      %v355 = vld [vmem:[%s4 + $0x8] sm:$0xff]
      %v356 = vld [vmem:[%s4 + $0x10] sm:$0xff]
      %v357 = vld [vmem:[%s4 + $0x18] sm:$0xff]
      %v358 = vadd.f32 %v344, %v354
      %v359 = vadd.f32 %v347, %v355
      %v360 = vadd.f32 %v350, %v356
      %v361 = vadd.f32 %v353, %v357
      %v362 = vsub.f32 0.0, %v358
      %v363 = vsub.f32 0.0, %v359
      %v364 = vsub.f32 0.0, %v360
      %v365 = vsub.f32 0.0, %v361
      %v366 = vmul.f32 %v362, 1.442695
      %v367 = vpow.pop %v366
      %v368 = vmul.f32 %v363, 1.442695
      %v369 = vpow.pop %v368
      %v370 = vmul.f32 %v364, 1.442695
      %v371 = vpow.pop %v370
      %v372 = vmul.f32 %v365, 1.442695
      %v373 = vpow.pop %v372
      %v374 = vadd.f32 %v367, 1.0
      %v375 = vadd.f32 %v369, 1.0
      %v376 = vadd.f32 %v371, 1.0
      %v377 = vadd.f32 %v373, 1.0
      %v378 = vrcp.pop %v374
      %v379 = vmul.f32 1.0, %v378
      %v380 = vrcp.pop %v375
      %v381 = vmul.f32 1.0, %v380
      %v382 = vrcp.pop %v376
      %v383 = vmul.f32 1.0, %v382
      %v384 = vrcp.pop %v377
      %v385 = vmul.f32 1.0, %v384
      %387 = vset.pattern.permute.xlu0 0
      %388 = vperm.xlu0 %387, %v379
      %v389 = vpop.permute.xlu0 %388
      %392 = vset.pattern.permute.xlu0 0
      %393 = vperm.xlu0 %392, %v381
      %v394 = vpop.permute.xlu0 %393
      %397 = vset.pattern.permute.xlu0 0
      %398 = vperm.xlu0 %397, %v383
      %v399 = vpop.permute.xlu0 %398
      %402 = vset.pattern.permute.xlu0 0
      %403 = vperm.xlu0 %402, %v385
      %v404 = vpop.permute.xlu0 %403
      %v406 = vmul.f32 %v280, %v389
      %v407 = vmul.f32 %v281, %v389
      %v408 = vmul.f32 %v282, %v394
      %v409 = vmul.f32 %v283, %v394
      %v410 = vmul.f32 %v284, %v399
      %v411 = vmul.f32 %v285, %v399
      %v412 = vmul.f32 %v286, %v404
      %v413 = vmul.f32 %v287, %v404
      %v414 = vadd.f32 %v406, %v408
      %v415 = vadd.f32 %v414, %v410
      %v416 = vadd.f32 %v415, %v412
      %v417 = vrot.slane %v416, 4
      %v418 = vadd.f32 %v416, %v417
      %v419 = vrot.slane %v418, 2
      %v420 = vadd.f32 %v418, %v419
      %v421 = vrot.slane %v420, 1
      %v422 = vadd.f32 %v420, %v421
      %v423 = vadd.f32 %v407, %v409
      %v424 = vadd.f32 %v423, %v411
      %v425 = vadd.f32 %v424, %v413
      %v426 = vrot.slane %v425, 4
      %v427 = vadd.f32 %v425, %v426
      %v428 = vrot.slane %v427, 2
      %v429 = vadd.f32 %v427, %v428
      %v430 = vrot.slane %v429, 1
      %v431 = vadd.f32 %v429, %v430
      %v432 = vrcp.pop 32.0
      %v433 = vmul.f32 %v422, %v432
      %v434 = vmul.f32 %v431, %v432
      %v435 = vmax.f32 %v406, %v410
      %v436 = vmax.f32 %v408, %v412
      %v437 = vmax.f32 %v435, %v436
      %v438 = vrot.slane %v437, 4
      %v439 = vmax.f32 %v437, %v438
      %v440 = vrot.slane %v439, 2
      %v441 = vmax.f32 %v439, %v440
      %v442 = vrot.slane %v441, 1
      %v443 = vmax.f32 %v441, %v442
      %v444 = vmax.f32 %v407, %v411
      %v445 = vmax.f32 %v409, %v413
      %v446 = vmax.f32 %v444, %v445
      %v447 = vrot.slane %v446, 4
      %v448 = vmax.f32 %v446, %v447
      %v449 = vrot.slane %v448, 2
      %v450 = vmax.f32 %v448, %v449
      %v451 = vrot.slane %v450, 1
      %v452 = vmax.f32 %v450, %v451
      %453 = vst [vmem:[#allocation2] sm:$0x3] 0.0
      %454 = vst [vmem:[#allocation2 + $0x6] sm:$0x3] 0.0
      %v457 = vcombine.low %v433, %v434
      %v459 = vunpack.c.l.s4 1966171168
      %v460 = vunpack.c.0.s8 %v459
      %v461 = vlaneseq
      %v462 = vshrl.u32 %v461, 7
      %v463 = vsub.s32 %v460, %v462
      %v464 = vrot.slane %v457, %v463
      %v466 = vunpack.c.l.s4 1966171168
      %v467 = vunpack.c.0.s8 %v466
      %v468 = vlaneseq
      %v469 = vshrl.u32 %v468, 7
      %v470 = vsub.s32 %v467, %v469
      %v471 = vrot.slane %v464, %v470
      %v473 = vlaneseq
      %vm474 = vcmp.ge.s32.totalorder %v473, 0
      %vm475 = vcmp.lt.s32.totalorder %v473, 256
      %vm476 = vmand %vm474, %vm475
      %s477 = scalar_lea.vmem [#allocation2], 2
      %478 = vst.msk [vmem:[%s477] ss:$2 sm:$0x3] %vm476, %v471
      %v481 = vcombine.low %v443, %v452
      %v483 = vunpack.c.l.s4 1966171168
      %v484 = vunpack.c.0.s8 %v483
      %v485 = vlaneseq
      %v486 = vshrl.u32 %v485, 7
      %v487 = vsub.s32 %v484, %v486
      %v488 = vrot.slane %v481, %v487
      %v490 = vunpack.c.l.s4 1966171168
      %v491 = vunpack.c.0.s8 %v490
      %v492 = vlaneseq
      %v493 = vshrl.u32 %v492, 7
      %v494 = vsub.s32 %v491, %v493
      %v495 = vrot.slane %v488, %v494
      %s497 = scalar_lea.vmem [#allocation2], 3
      %498 = vst.msk [vmem:[%s497] ss:$2 sm:$0x3] %vm476, %v495
      %v499 = vlaneseq
      %v500 = vand.u32 %v499, 127
      %v501 = vadd.s32 %v500, 128
      %v502 = vshra.s32 %v500, 4
      %v503 = vshra.s32 %v501, 4
      %v504 = vand.u32 %v500, 15
      %v505 = vand.u32 %v501, 15
      %vm506 = vcmp.ge.s32.totalorder %v502, 3
      %vm507 = vcmp.ge.s32.totalorder %v503, 3
      %vm508 = vcmp.ge.s32.totalorder %v502, 2
      %vm509 = vcmp.ge.s32.totalorder %v503, 2
      %vm510 = vcmp.ge.s32.totalorder %v502, 1
      %vm511 = vcmp.ge.s32.totalorder %v503, 1
      %vm512 = vcmp.lt.s32.totalorder %v502, 15
      %vm513 = vcmp.lt.s32.totalorder %v503, 15
      %vm514 = vcmp.lt.s32.totalorder %v502, 14
      %vm515 = vcmp.lt.s32.totalorder %v503, 14
      %vm516 = vcmp.lt.s32.totalorder %v502, 13
      %vm517 = vcmp.lt.s32.totalorder %v503, 13
      %vm518 = vcmp.ge.s32.totalorder %v504, 3
      %vm519 = vcmp.ge.s32.totalorder %v505, 3
      %vm520 = vcmp.ge.s32.totalorder %v504, 2
      %vm521 = vcmp.ge.s32.totalorder %v505, 2
      %vm522 = vcmp.ge.s32.totalorder %v504, 1
      %vm523 = vcmp.ge.s32.totalorder %v505, 1
      %vm524 = vcmp.lt.s32.totalorder %v504, 15
      %vm525 = vcmp.lt.s32.totalorder %v505, 15
      %vm526 = vcmp.lt.s32.totalorder %v504, 14
      %vm527 = vcmp.lt.s32.totalorder %v505, 14
      %vm528 = vcmp.lt.s32.totalorder %v504, 13
      %vm529 = vcmp.lt.s32.totalorder %v505, 13
      %v530 = vld [vmem:[%s5] sm:$0x3]
      %v531 = vld [vmem:[#allocation2] sm:$0x3f]
      %533 = vset.pattern.permute.xlu0 0
      %534 = vperm.xlu0 %533, %v530
      %v535 = vpop.permute.xlu0 %534
      %v537 = vunpack.c.l.s4 269488144
      %v538 = vunpack.c.0.s8 %v537
      %v539 = vlaneseq
      %v540 = vshrl.u32 %v539, 7
      %v541 = vsub.s32 %v538, %v540
      %v542 = vrot.slane %v535, %v541
      %v544 = vmul.f32 %v531, %v542
      %vm545 = vmand %vm506, %vm518
      %vm546 = vmand %vm507, %vm519
      %v547 = vsel %vm545, 1, 0
      %v548 = vsel %vm546, 1, 0
      %vm549 = vcmp.eq.s32.totalorder %v547, 1
      %vm550 = vcmp.eq.s32.totalorder %v548, 1
      %v552 = vcombine.high %v544, %v544
      %v554 = vunpack.c.l.s4 1983009808
      %v555 = vunpack.c.0.s8 %v554
      %v556 = vlaneseq
      %v557 = vshrl.u32 %v556, 7
      %v558 = vsub.s32 %v555, %v557
      %v559 = vrot.slane %v544, %v558
      %v561 = vunpack.c.l.s4 1983009808
      %v562 = vunpack.c.0.s8 %v561
      %v563 = vlaneseq
      %v564 = vshrl.u32 %v563, 7
      %v565 = vsub.s32 %v562, %v564
      %v566 = vrot.slane %v552, %v565
      %v567 = vcombine.high %v559, %v559
      %568 = vrot.lane.b32.xlu0 %v559, 51
      %v569 = vpop.permute.xlu0 %568
      %570 = vrot.lane.b32.xlu0 %v567, 51
      %v571 = vpop.permute.xlu0 %570
      %572 = vrot.lane.b32.xlu0 %v566, 51
      %v573 = vpop.permute.xlu0 %572
      %vm574 = vcmask 416768
      %v575 = vsel %vm574, %v569, %v571
      %v576 = vsel %vm574, %v571, %v573
      %v579 = vsel %vm549, %v575, 0.0
      %v580 = vsel %vm550, %v576, 0.0
      %v581 = vadd.f32 %v579, 0.0
      %v582 = vadd.f32 %v580, 0.0
      %v583 = vld [vmem:[#allocation2] sm:$0x3f]
      %584 = vset.pattern.permute.xlu0 1
      %585 = vperm.xlu0 %584, %v530
      %v586 = vpop.permute.xlu0 %585
      %v588 = vunpack.c.l.s4 269488144
      %v589 = vunpack.c.0.s8 %v588
      %v590 = vlaneseq
      %v591 = vshrl.u32 %v590, 7
      %v592 = vsub.s32 %v589, %v591
      %v593 = vrot.slane %v586, %v592
      %v595 = vmul.f32 %v583, %v593
      %vm596 = vmand %vm506, %vm520
      %vm597 = vmand %vm507, %vm521
      %v598 = vsel %vm596, 1, 0
      %v599 = vsel %vm597, 1, 0
      %vm600 = vcmp.eq.s32.totalorder %v598, 1
      %vm601 = vcmp.eq.s32.totalorder %v599, 1
      %v603 = vcombine.high %v595, %v595
      %v605 = vunpack.c.l.s4 1983009808
      %v606 = vunpack.c.0.s8 %v605
      %v607 = vlaneseq
      %v608 = vshrl.u32 %v607, 7
      %v609 = vsub.s32 %v606, %v608
      %v610 = vrot.slane %v595, %v609
      %v612 = vunpack.c.l.s4 1983009808
      %v613 = vunpack.c.0.s8 %v612
      %v614 = vlaneseq
      %v615 = vshrl.u32 %v614, 7
      %v616 = vsub.s32 %v613, %v615
      %v617 = vrot.slane %v603, %v616
      %v618 = vcombine.high %v610, %v610
      %619 = vrot.lane.b32.xlu0 %v610, 50
      %v620 = vpop.permute.xlu0 %619
      %621 = vrot.lane.b32.xlu0 %v618, 50
      %v622 = vpop.permute.xlu0 %621
      %623 = vrot.lane.b32.xlu0 %v617, 50
      %v624 = vpop.permute.xlu0 %623
      %vm625 = vcmask 408576
      %v626 = vsel %vm625, %v620, %v622
      %v627 = vsel %vm625, %v622, %v624
      %v630 = vsel %vm600, %v626, 0.0
      %v631 = vsel %vm601, %v627, 0.0
      %v632 = vadd.f32 %v581, %v630
      %v633 = vadd.f32 %v582, %v631
      %v634 = vld [vmem:[#allocation2] sm:$0x3f]
      %635 = vset.pattern.permute.xlu0 2
      %636 = vperm.xlu0 %635, %v530
      %v637 = vpop.permute.xlu0 %636
      %v639 = vunpack.c.l.s4 269488144
      %v640 = vunpack.c.0.s8 %v639
      %v641 = vlaneseq
      %v642 = vshrl.u32 %v641, 7
      %v643 = vsub.s32 %v640, %v642
      %v644 = vrot.slane %v637, %v643
      %v646 = vmul.f32 %v634, %v644
      %vm647 = vmand %vm506, %vm522
      %vm648 = vmand %vm507, %vm523
      %v649 = vsel %vm647, 1, 0
      %v650 = vsel %vm648, 1, 0
      %vm651 = vcmp.eq.s32.totalorder %v649, 1
      %vm652 = vcmp.eq.s32.totalorder %v650, 1
      %v654 = vcombine.high %v646, %v646
      %v656 = vunpack.c.l.s4 1983009808
      %v657 = vunpack.c.0.s8 %v656
      %v658 = vlaneseq
      %v659 = vshrl.u32 %v658, 7
      %v660 = vsub.s32 %v657, %v659
      %v661 = vrot.slane %v646, %v660
      %v663 = vunpack.c.l.s4 1983009808
      %v664 = vunpack.c.0.s8 %v663
      %v665 = vlaneseq
      %v666 = vshrl.u32 %v665, 7
      %v667 = vsub.s32 %v664, %v666
      %v668 = vrot.slane %v654, %v667
      %v669 = vcombine.high %v661, %v661
      %670 = vrot.lane.b32.xlu0 %v661, 49
      %v671 = vpop.permute.xlu0 %670
      %672 = vrot.lane.b32.xlu0 %v669, 49
      %v673 = vpop.permute.xlu0 %672
      %674 = vrot.lane.b32.xlu0 %v668, 49
      %v675 = vpop.permute.xlu0 %674
      %vm676 = vcmask 400384
      %v677 = vsel %vm676, %v671, %v673
      %v678 = vsel %vm676, %v673, %v675
      %v681 = vsel %vm651, %v677, 0.0
      %v682 = vsel %vm652, %v678, 0.0
      %v683 = vadd.f32 %v632, %v681
      %v684 = vadd.f32 %v633, %v682
      %v685 = vld [vmem:[#allocation2] sm:$0x3f]
      %686 = vset.pattern.permute.xlu0 3
      %687 = vperm.xlu0 %686, %v530
      %v688 = vpop.permute.xlu0 %687
      %v690 = vunpack.c.l.s4 269488144
      %v691 = vunpack.c.0.s8 %v690
      %v692 = vlaneseq
      %v693 = vshrl.u32 %v692, 7
      %v694 = vsub.s32 %v691, %v693
      %v695 = vrot.slane %v688, %v694
      %v697 = vmul.f32 %v685, %v695
      %v698 = vsel %vm506, 1, 0
      %v699 = vsel %vm507, 1, 0
      %vm700 = vcmp.eq.s32.totalorder %v698, 1
      %vm701 = vcmp.eq.s32.totalorder %v699, 1
      %v703 = vcombine.high %v697, %v697
      %v705 = vunpack.c.l.s4 1983009808
      %v706 = vunpack.c.0.s8 %v705
      %v707 = vlaneseq
      %v708 = vshrl.u32 %v707, 7
      %v709 = vsub.s32 %v706, %v708
      %v710 = vrot.slane %v697, %v709
      %v712 = vunpack.c.l.s4 1983009808
      %v713 = vunpack.c.0.s8 %v712
      %v714 = vlaneseq
      %v715 = vshrl.u32 %v714, 7
      %v716 = vsub.s32 %v713, %v715
      %v717 = vrot.slane %v703, %v716
      %v718 = vcombine.high %v710, %v710
      %719 = vrot.lane.b32.xlu0 %v710, 48
      %v720 = vpop.permute.xlu0 %719
      %721 = vrot.lane.b32.xlu0 %v718, 48
      %v722 = vpop.permute.xlu0 %721
      %723 = vrot.lane.b32.xlu0 %v717, 48
      %v724 = vpop.permute.xlu0 %723
      %vm725 = vcmask 392192
      %v726 = vsel %vm725, %v720, %v722
      %v727 = vsel %vm725, %v722, %v724
      %v730 = vsel %vm700, %v726, 0.0
      %v731 = vsel %vm701, %v727, 0.0
      %v732 = vadd.f32 %v683, %v730
      %v733 = vadd.f32 %v684, %v731
      %v734 = vld [vmem:[#allocation2] sm:$0x3f]
      %735 = vset.pattern.permute.xlu0 4
      %736 = vperm.xlu0 %735, %v530
      %v737 = vpop.permute.xlu0 %736
      %v739 = vunpack.c.l.s4 269488144
      %v740 = vunpack.c.0.s8 %v739
      %v741 = vlaneseq
      %v742 = vshrl.u32 %v741, 7
      %v743 = vsub.s32 %v740, %v742
      %v744 = vrot.slane %v737, %v743
      %v746 = vmul.f32 %v734, %v744
      %vm747 = vmand %vm506, %vm524
      %vm748 = vmand %vm507, %vm525
      %v749 = vsel %vm747, 1, 0
      %v750 = vsel %vm748, 1, 0
      %vm751 = vcmp.eq.s32.totalorder %v749, 1
      %vm752 = vcmp.eq.s32.totalorder %v750, 1
      %v754 = vcombine.high %v746, %v746
      %v756 = vunpack.c.l.s4 1983009808
      %v757 = vunpack.c.0.s8 %v756
      %v758 = vlaneseq
      %v759 = vshrl.u32 %v758, 7
      %v760 = vsub.s32 %v757, %v759
      %v761 = vrot.slane %v746, %v760
      %v763 = vunpack.c.l.s4 1983009808
      %v764 = vunpack.c.0.s8 %v763
      %v765 = vlaneseq
      %v766 = vshrl.u32 %v765, 7
      %v767 = vsub.s32 %v764, %v766
      %v768 = vrot.slane %v754, %v767
      %v769 = vcombine.high %v761, %v761
      %770 = vrot.lane.b32.xlu0 %v761, 47
      %v771 = vpop.permute.xlu0 %770
      %772 = vrot.lane.b32.xlu0 %v769, 47
      %v773 = vpop.permute.xlu0 %772
      %774 = vrot.lane.b32.xlu0 %v768, 47
      %v775 = vpop.permute.xlu0 %774
      %vm776 = vcmask 384000
      %v777 = vsel %vm776, %v771, %v773
      %v778 = vsel %vm776, %v773, %v775
      %v781 = vsel %vm751, %v777, 0.0
      %v782 = vsel %vm752, %v778, 0.0
      %v783 = vadd.f32 %v732, %v781
      %v784 = vadd.f32 %v733, %v782
      %v785 = vld [vmem:[#allocation2] sm:$0x3f]
      %786 = vset.pattern.permute.xlu0 5
      %787 = vperm.xlu0 %786, %v530
      %v788 = vpop.permute.xlu0 %787
      %v790 = vunpack.c.l.s4 269488144
      %v791 = vunpack.c.0.s8 %v790
      %v792 = vlaneseq
      %v793 = vshrl.u32 %v792, 7
      %v794 = vsub.s32 %v791, %v793
      %v795 = vrot.slane %v788, %v794
      %v797 = vmul.f32 %v785, %v795
      %vm798 = vmand %vm506, %vm526
      %vm799 = vmand %vm507, %vm527
      %v800 = vsel %vm798, 1, 0
      %v801 = vsel %vm799, 1, 0
      %vm802 = vcmp.eq.s32.totalorder %v800, 1
      %vm803 = vcmp.eq.s32.totalorder %v801, 1
      %v805 = vcombine.high %v797, %v797
      %v807 = vunpack.c.l.s4 1983009808
      %v808 = vunpack.c.0.s8 %v807
      %v809 = vlaneseq
      %v810 = vshrl.u32 %v809, 7
      %v811 = vsub.s32 %v808, %v810
      %v812 = vrot.slane %v797, %v811
      %v814 = vunpack.c.l.s4 1983009808
      %v815 = vunpack.c.0.s8 %v814
      %v816 = vlaneseq
      %v817 = vshrl.u32 %v816, 7
      %v818 = vsub.s32 %v815, %v817
      %v819 = vrot.slane %v805, %v818
      %v820 = vcombine.high %v812, %v812
      %821 = vrot.lane.b32.xlu0 %v812, 46
      %v822 = vpop.permute.xlu0 %821
      %823 = vrot.lane.b32.xlu0 %v820, 46
      %v824 = vpop.permute.xlu0 %823
      %825 = vrot.lane.b32.xlu0 %v819, 46
      %v826 = vpop.permute.xlu0 %825
      %vm827 = vcmask 375808
      %v828 = vsel %vm827, %v822, %v824
      %v829 = vsel %vm827, %v824, %v826
      %v832 = vsel %vm802, %v828, 0.0
      %v833 = vsel %vm803, %v829, 0.0
      %v834 = vadd.f32 %v783, %v832
      %v835 = vadd.f32 %v784, %v833
      %v836 = vld [vmem:[#allocation2] sm:$0x3f]
      %837 = vset.pattern.permute.xlu0 6
      %838 = vperm.xlu0 %837, %v530
      %v839 = vpop.permute.xlu0 %838
      %v841 = vunpack.c.l.s4 269488144
      %v842 = vunpack.c.0.s8 %v841
      %v843 = vlaneseq
      %v844 = vshrl.u32 %v843, 7
      %v845 = vsub.s32 %v842, %v844
      %v846 = vrot.slane %v839, %v845
      %v848 = vmul.f32 %v836, %v846
      %vm849 = vmand %vm506, %vm528
      %vm850 = vmand %vm507, %vm529
      %v851 = vsel %vm849, 1, 0
      %v852 = vsel %vm850, 1, 0
      %vm853 = vcmp.eq.s32.totalorder %v851, 1
      %vm854 = vcmp.eq.s32.totalorder %v852, 1
      %v856 = vcombine.high %v848, %v848
      %v858 = vunpack.c.l.s4 1983009808
      %v859 = vunpack.c.0.s8 %v858
      %v860 = vlaneseq
      %v861 = vshrl.u32 %v860, 7
      %v862 = vsub.s32 %v859, %v861
      %v863 = vrot.slane %v848, %v862
      %v865 = vunpack.c.l.s4 1983009808
      %v866 = vunpack.c.0.s8 %v865
      %v867 = vlaneseq
      %v868 = vshrl.u32 %v867, 7
      %v869 = vsub.s32 %v866, %v868
      %v870 = vrot.slane %v856, %v869
      %v871 = vcombine.high %v863, %v863
      %872 = vrot.lane.b32.xlu0 %v863, 45
      %v873 = vpop.permute.xlu0 %872
      %874 = vrot.lane.b32.xlu0 %v871, 45
      %v875 = vpop.permute.xlu0 %874
      %876 = vrot.lane.b32.xlu0 %v870, 45
      %v877 = vpop.permute.xlu0 %876
      %vm878 = vcmask 367616
      %v879 = vsel %vm878, %v873, %v875
      %v880 = vsel %vm878, %v875, %v877
      %v883 = vsel %vm853, %v879, 0.0
      %v884 = vsel %vm854, %v880, 0.0
      %v885 = vadd.f32 %v834, %v883
      %v886 = vadd.f32 %v835, %v884
      %v887 = vld [vmem:[#allocation2] sm:$0x3f]
      %888 = vset.pattern.permute.xlu0 7
      %889 = vperm.xlu0 %888, %v530
      %v890 = vpop.permute.xlu0 %889
      %v892 = vunpack.c.l.s4 269488144
      %v893 = vunpack.c.0.s8 %v892
      %v894 = vlaneseq
      %v895 = vshrl.u32 %v894, 7
      %v896 = vsub.s32 %v893, %v895
      %v897 = vrot.slane %v890, %v896
      %v899 = vmul.f32 %v887, %v897
      %vm900 = vmand %vm508, %vm518
      %vm901 = vmand %vm509, %vm519
      %v902 = vsel %vm900, 1, 0
      %v903 = vsel %vm901, 1, 0
      %vm904 = vcmp.eq.s32.totalorder %v902, 1
      %vm905 = vcmp.eq.s32.totalorder %v903, 1
      %v907 = vcombine.high %v899, %v899
      %v909 = vunpack.c.l.s4 1983009808
      %v910 = vunpack.c.0.s8 %v909
      %v911 = vlaneseq
      %v912 = vshrl.u32 %v911, 7
      %v913 = vsub.s32 %v910, %v912
      %v914 = vrot.slane %v899, %v913
      %v916 = vunpack.c.l.s4 1983009808
      %v917 = vunpack.c.0.s8 %v916
      %v918 = vlaneseq
      %v919 = vshrl.u32 %v918, 7
      %v920 = vsub.s32 %v917, %v919
      %v921 = vrot.slane %v907, %v920
      %v922 = vcombine.high %v914, %v914
      %923 = vrot.lane.b32.xlu0 %v914, 35
      %v924 = vpop.permute.xlu0 %923
      %925 = vrot.lane.b32.xlu0 %v922, 35
      %v926 = vpop.permute.xlu0 %925
      %927 = vrot.lane.b32.xlu0 %v921, 35
      %v928 = vpop.permute.xlu0 %927
      %vm929 = vcmask 285696
      %v930 = vsel %vm929, %v924, %v926
      %v931 = vsel %vm929, %v926, %v928
      %v934 = vsel %vm904, %v930, 0.0
      %v935 = vsel %vm905, %v931, 0.0
      %v936 = vadd.f32 %v885, %v934
      %v937 = vadd.f32 %v886, %v935
      %v938 = vld [vmem:[#allocation2] sm:$0x3f]
      %939 = vset.pattern.permute.xlu0 8
      %940 = vperm.xlu0 %939, %v530
      %v941 = vpop.permute.xlu0 %940
      %v943 = vunpack.c.l.s4 269488144
      %v944 = vunpack.c.0.s8 %v943
      %v945 = vlaneseq
      %v946 = vshrl.u32 %v945, 7
      %v947 = vsub.s32 %v944, %v946
      %v948 = vrot.slane %v941, %v947
      %v950 = vmul.f32 %v938, %v948
      %vm951 = vmand %vm508, %vm520
      %vm952 = vmand %vm509, %vm521
      %v953 = vsel %vm951, 1, 0
      %v954 = vsel %vm952, 1, 0
      %vm955 = vcmp.eq.s32.totalorder %v953, 1
      %vm956 = vcmp.eq.s32.totalorder %v954, 1
      %v958 = vcombine.high %v950, %v950
      %v960 = vunpack.c.l.s4 1983009808
      %v961 = vunpack.c.0.s8 %v960
      %v962 = vlaneseq
      %v963 = vshrl.u32 %v962, 7
      %v964 = vsub.s32 %v961, %v963
      %v965 = vrot.slane %v950, %v964
      %v967 = vunpack.c.l.s4 1983009808
      %v968 = vunpack.c.0.s8 %v967
      %v969 = vlaneseq
      %v970 = vshrl.u32 %v969, 7
      %v971 = vsub.s32 %v968, %v970
      %v972 = vrot.slane %v958, %v971
      %v973 = vcombine.high %v965, %v965
      %974 = vrot.lane.b32.xlu0 %v965, 34
      %v975 = vpop.permute.xlu0 %974
      %976 = vrot.lane.b32.xlu0 %v973, 34
      %v977 = vpop.permute.xlu0 %976
      %978 = vrot.lane.b32.xlu0 %v972, 34
      %v979 = vpop.permute.xlu0 %978
      %vm980 = vcmask 277504
      %v981 = vsel %vm980, %v975, %v977
      %v982 = vsel %vm980, %v977, %v979
      %v985 = vsel %vm955, %v981, 0.0
      %v986 = vsel %vm956, %v982, 0.0
      %v987 = vadd.f32 %v936, %v985
      %v988 = vadd.f32 %v937, %v986
      %v989 = vld [vmem:[#allocation2] sm:$0x3f]
      %990 = vset.pattern.permute.xlu0 9
      %991 = vperm.xlu0 %990, %v530
      %v992 = vpop.permute.xlu0 %991
      %v994 = vunpack.c.l.s4 269488144
      %v995 = vunpack.c.0.s8 %v994
      %v996 = vlaneseq
      %v997 = vshrl.u32 %v996, 7
      %v998 = vsub.s32 %v995, %v997
      %v999 = vrot.slane %v992, %v998
      %v1001 = vmul.f32 %v989, %v999
      %vm1002 = vmand %vm508, %vm522
      %vm1003 = vmand %vm509, %vm523
      %v1004 = vsel %vm1002, 1, 0
      %v1005 = vsel %vm1003, 1, 0
      %vm1006 = vcmp.eq.s32.totalorder %v1004, 1
      %vm1007 = vcmp.eq.s32.totalorder %v1005, 1
      %v1009 = vcombine.high %v1001, %v1001
      %v1011 = vunpack.c.l.s4 1983009808
      %v1012 = vunpack.c.0.s8 %v1011
      %v1013 = vlaneseq
      %v1014 = vshrl.u32 %v1013, 7
      %v1015 = vsub.s32 %v1012, %v1014
      %v1016 = vrot.slane %v1001, %v1015
      %v1018 = vunpack.c.l.s4 1983009808
      %v1019 = vunpack.c.0.s8 %v1018
      %v1020 = vlaneseq
      %v1021 = vshrl.u32 %v1020, 7
      %v1022 = vsub.s32 %v1019, %v1021
      %v1023 = vrot.slane %v1009, %v1022
      %v1024 = vcombine.high %v1016, %v1016
      %1025 = vrot.lane.b32.xlu0 %v1016, 33
      %v1026 = vpop.permute.xlu0 %1025
      %1027 = vrot.lane.b32.xlu0 %v1024, 33
      %v1028 = vpop.permute.xlu0 %1027
      %1029 = vrot.lane.b32.xlu0 %v1023, 33
      %v1030 = vpop.permute.xlu0 %1029
      %vm1031 = vcmask 269312
      %v1032 = vsel %vm1031, %v1026, %v1028
      %v1033 = vsel %vm1031, %v1028, %v1030
      %v1036 = vsel %vm1006, %v1032, 0.0
      %v1037 = vsel %vm1007, %v1033, 0.0
      %v1038 = vadd.f32 %v987, %v1036
      %v1039 = vadd.f32 %v988, %v1037
      %v1040 = vld [vmem:[#allocation2] sm:$0x3f]
      %1041 = vset.pattern.permute.xlu0 10
      %1042 = vperm.xlu0 %1041, %v530
      %v1043 = vpop.permute.xlu0 %1042
      %v1045 = vunpack.c.l.s4 269488144
      %v1046 = vunpack.c.0.s8 %v1045
      %v1047 = vlaneseq
      %v1048 = vshrl.u32 %v1047, 7
      %v1049 = vsub.s32 %v1046, %v1048
      %v1050 = vrot.slane %v1043, %v1049
      %v1052 = vmul.f32 %v1040, %v1050
      %v1053 = vsel %vm508, 1, 0
      %v1054 = vsel %vm509, 1, 0
      %vm1055 = vcmp.eq.s32.totalorder %v1053, 1
      %vm1056 = vcmp.eq.s32.totalorder %v1054, 1
      %v1058 = vcombine.high %v1052, %v1052
      %v1060 = vunpack.c.l.s4 1983009808
      %v1061 = vunpack.c.0.s8 %v1060
      %v1062 = vlaneseq
      %v1063 = vshrl.u32 %v1062, 7
      %v1064 = vsub.s32 %v1061, %v1063
      %v1065 = vrot.slane %v1052, %v1064
      %v1067 = vunpack.c.l.s4 1983009808
      %v1068 = vunpack.c.0.s8 %v1067
      %v1069 = vlaneseq
      %v1070 = vshrl.u32 %v1069, 7
      %v1071 = vsub.s32 %v1068, %v1070
      %v1072 = vrot.slane %v1058, %v1071
      %v1073 = vcombine.high %v1065, %v1065
      %1074 = vrot.lane.b32.xlu0 %v1065, 32
      %v1075 = vpop.permute.xlu0 %1074
      %1076 = vrot.lane.b32.xlu0 %v1073, 32
      %v1077 = vpop.permute.xlu0 %1076
      %1078 = vrot.lane.b32.xlu0 %v1072, 32
      %v1079 = vpop.permute.xlu0 %1078
      %vm1080 = vcmask 261120
      %v1081 = vsel %vm1080, %v1075, %v1077
      %v1082 = vsel %vm1080, %v1077, %v1079
      %v1085 = vsel %vm1055, %v1081, 0.0
      %v1086 = vsel %vm1056, %v1082, 0.0
      %v1087 = vadd.f32 %v1038, %v1085
      %v1088 = vadd.f32 %v1039, %v1086
      %v1089 = vld [vmem:[#allocation2] sm:$0x3f]
      %1090 = vset.pattern.permute.xlu0 11
      %1091 = vperm.xlu0 %1090, %v530
      %v1092 = vpop.permute.xlu0 %1091
      %v1094 = vunpack.c.l.s4 269488144
      %v1095 = vunpack.c.0.s8 %v1094
      %v1096 = vlaneseq
      %v1097 = vshrl.u32 %v1096, 7
      %v1098 = vsub.s32 %v1095, %v1097
      %v1099 = vrot.slane %v1092, %v1098
      %v1101 = vmul.f32 %v1089, %v1099
      %vm1102 = vmand %vm508, %vm524
      %vm1103 = vmand %vm509, %vm525
      %v1104 = vsel %vm1102, 1, 0
      %v1105 = vsel %vm1103, 1, 0
      %vm1106 = vcmp.eq.s32.totalorder %v1104, 1
      %vm1107 = vcmp.eq.s32.totalorder %v1105, 1
      %v1109 = vcombine.high %v1101, %v1101
      %v1111 = vunpack.c.l.s4 1983009808
      %v1112 = vunpack.c.0.s8 %v1111
      %v1113 = vlaneseq
      %v1114 = vshrl.u32 %v1113, 7
      %v1115 = vsub.s32 %v1112, %v1114
      %v1116 = vrot.slane %v1101, %v1115
      %v1118 = vunpack.c.l.s4 1983009808
      %v1119 = vunpack.c.0.s8 %v1118
      %v1120 = vlaneseq
      %v1121 = vshrl.u32 %v1120, 7
      %v1122 = vsub.s32 %v1119, %v1121
      %v1123 = vrot.slane %v1109, %v1122
      %v1124 = vcombine.high %v1116, %v1116
      %1125 = vrot.lane.b32.xlu0 %v1116, 31
      %v1126 = vpop.permute.xlu0 %1125
      %1127 = vrot.lane.b32.xlu0 %v1124, 31
      %v1128 = vpop.permute.xlu0 %1127
      %1129 = vrot.lane.b32.xlu0 %v1123, 31
      %v1130 = vpop.permute.xlu0 %1129
      %vm1131 = vcmask 252928
      %v1132 = vsel %vm1131, %v1126, %v1128
      %v1133 = vsel %vm1131, %v1128, %v1130
      %v1136 = vsel %vm1106, %v1132, 0.0
      %v1137 = vsel %vm1107, %v1133, 0.0
      %v1138 = vadd.f32 %v1087, %v1136
      %v1139 = vadd.f32 %v1088, %v1137
      %v1140 = vld [vmem:[#allocation2] sm:$0x3f]
      %1141 = vset.pattern.permute.xlu0 12
      %1142 = vperm.xlu0 %1141, %v530
      %v1143 = vpop.permute.xlu0 %1142
      %v1145 = vunpack.c.l.s4 269488144
      %v1146 = vunpack.c.0.s8 %v1145
      %v1147 = vlaneseq
      %v1148 = vshrl.u32 %v1147, 7
      %v1149 = vsub.s32 %v1146, %v1148
      %v1150 = vrot.slane %v1143, %v1149
      %v1152 = vmul.f32 %v1140, %v1150
      %vm1153 = vmand %vm508, %vm526
      %vm1154 = vmand %vm509, %vm527
      %v1155 = vsel %vm1153, 1, 0
      %v1156 = vsel %vm1154, 1, 0
      %vm1157 = vcmp.eq.s32.totalorder %v1155, 1
      %vm1158 = vcmp.eq.s32.totalorder %v1156, 1
      %v1160 = vcombine.high %v1152, %v1152
      %v1162 = vunpack.c.l.s4 1983009808
      %v1163 = vunpack.c.0.s8 %v1162
      %v1164 = vlaneseq
      %v1165 = vshrl.u32 %v1164, 7
      %v1166 = vsub.s32 %v1163, %v1165
      %v1167 = vrot.slane %v1152, %v1166
      %v1169 = vunpack.c.l.s4 1983009808
      %v1170 = vunpack.c.0.s8 %v1169
      %v1171 = vlaneseq
      %v1172 = vshrl.u32 %v1171, 7
      %v1173 = vsub.s32 %v1170, %v1172
      %v1174 = vrot.slane %v1160, %v1173
      %v1175 = vcombine.high %v1167, %v1167
      %1176 = vrot.lane.b32.xlu0 %v1167, 30
      %v1177 = vpop.permute.xlu0 %1176
      %1178 = vrot.lane.b32.xlu0 %v1175, 30
      %v1179 = vpop.permute.xlu0 %1178
      %1180 = vrot.lane.b32.xlu0 %v1174, 30
      %v1181 = vpop.permute.xlu0 %1180
      %vm1182 = vcmask 244736
      %v1183 = vsel %vm1182, %v1177, %v1179
      %v1184 = vsel %vm1182, %v1179, %v1181
      %v1187 = vsel %vm1157, %v1183, 0.0
      %v1188 = vsel %vm1158, %v1184, 0.0
      %v1189 = vadd.f32 %v1138, %v1187
      %v1190 = vadd.f32 %v1139, %v1188
      %v1191 = vld [vmem:[#allocation2] sm:$0x3f]
      %1192 = vset.pattern.permute.xlu0 13
      %1193 = vperm.xlu0 %1192, %v530
      %v1194 = vpop.permute.xlu0 %1193
      %v1196 = vunpack.c.l.s4 269488144
      %v1197 = vunpack.c.0.s8 %v1196
      %v1198 = vlaneseq
      %v1199 = vshrl.u32 %v1198, 7
      %v1200 = vsub.s32 %v1197, %v1199
      %v1201 = vrot.slane %v1194, %v1200
      %v1203 = vmul.f32 %v1191, %v1201
      %vm1204 = vmand %vm508, %vm528
      %vm1205 = vmand %vm509, %vm529
      %v1206 = vsel %vm1204, 1, 0
      %v1207 = vsel %vm1205, 1, 0
      %vm1208 = vcmp.eq.s32.totalorder %v1206, 1
      %vm1209 = vcmp.eq.s32.totalorder %v1207, 1
      %v1211 = vcombine.high %v1203, %v1203
      %v1213 = vunpack.c.l.s4 1983009808
      %v1214 = vunpack.c.0.s8 %v1213
      %v1215 = vlaneseq
      %v1216 = vshrl.u32 %v1215, 7
      %v1217 = vsub.s32 %v1214, %v1216
      %v1218 = vrot.slane %v1203, %v1217
      %v1220 = vunpack.c.l.s4 1983009808
      %v1221 = vunpack.c.0.s8 %v1220
      %v1222 = vlaneseq
      %v1223 = vshrl.u32 %v1222, 7
      %v1224 = vsub.s32 %v1221, %v1223
      %v1225 = vrot.slane %v1211, %v1224
      %v1226 = vcombine.high %v1218, %v1218
      %1227 = vrot.lane.b32.xlu0 %v1218, 29
      %v1228 = vpop.permute.xlu0 %1227
      %1229 = vrot.lane.b32.xlu0 %v1226, 29
      %v1230 = vpop.permute.xlu0 %1229
      %1231 = vrot.lane.b32.xlu0 %v1225, 29
      %v1232 = vpop.permute.xlu0 %1231
      %vm1233 = vcmask 236544
      %v1234 = vsel %vm1233, %v1228, %v1230
      %v1235 = vsel %vm1233, %v1230, %v1232
      %v1238 = vsel %vm1208, %v1234, 0.0
      %v1239 = vsel %vm1209, %v1235, 0.0
      %v1240 = vadd.f32 %v1189, %v1238
      %v1241 = vadd.f32 %v1190, %v1239
      %v1242 = vld [vmem:[#allocation2] sm:$0x3f]
      %1243 = vset.pattern.permute.xlu0 14
      %1244 = vperm.xlu0 %1243, %v530
      %v1245 = vpop.permute.xlu0 %1244
      %v1247 = vunpack.c.l.s4 269488144
      %v1248 = vunpack.c.0.s8 %v1247
      %v1249 = vlaneseq
      %v1250 = vshrl.u32 %v1249, 7
      %v1251 = vsub.s32 %v1248, %v1250
      %v1252 = vrot.slane %v1245, %v1251
      %v1254 = vmul.f32 %v1242, %v1252
      %vm1255 = vmand %vm510, %vm518
      %vm1256 = vmand %vm511, %vm519
      %v1257 = vsel %vm1255, 1, 0
      %v1258 = vsel %vm1256, 1, 0
      %vm1259 = vcmp.eq.s32.totalorder %v1257, 1
      %vm1260 = vcmp.eq.s32.totalorder %v1258, 1
      %v1262 = vcombine.high %v1254, %v1254
      %v1264 = vunpack.c.l.s4 1983009808
      %v1265 = vunpack.c.0.s8 %v1264
      %v1266 = vlaneseq
      %v1267 = vshrl.u32 %v1266, 7
      %v1268 = vsub.s32 %v1265, %v1267
      %v1269 = vrot.slane %v1254, %v1268
      %v1271 = vunpack.c.l.s4 1983009808
      %v1272 = vunpack.c.0.s8 %v1271
      %v1273 = vlaneseq
      %v1274 = vshrl.u32 %v1273, 7
      %v1275 = vsub.s32 %v1272, %v1274
      %v1276 = vrot.slane %v1262, %v1275
      %v1277 = vcombine.high %v1269, %v1269
      %1278 = vrot.lane.b32.xlu0 %v1269, 19
      %v1279 = vpop.permute.xlu0 %1278
      %1280 = vrot.lane.b32.xlu0 %v1277, 19
      %v1281 = vpop.permute.xlu0 %1280
      %1282 = vrot.lane.b32.xlu0 %v1276, 19
      %v1283 = vpop.permute.xlu0 %1282
      %vm1284 = vcmask 154624
      %v1285 = vsel %vm1284, %v1279, %v1281
      %v1286 = vsel %vm1284, %v1281, %v1283
      %v1289 = vsel %vm1259, %v1285, 0.0
      %v1290 = vsel %vm1260, %v1286, 0.0
      %v1291 = vadd.f32 %v1240, %v1289
      %v1292 = vadd.f32 %v1241, %v1290
      %v1293 = vld [vmem:[#allocation2] sm:$0x3f]
      %1294 = vset.pattern.permute.xlu0 15
      %1295 = vperm.xlu0 %1294, %v530
      %v1296 = vpop.permute.xlu0 %1295
      %v1298 = vunpack.c.l.s4 269488144
      %v1299 = vunpack.c.0.s8 %v1298
      %v1300 = vlaneseq
      %v1301 = vshrl.u32 %v1300, 7
      %v1302 = vsub.s32 %v1299, %v1301
      %v1303 = vrot.slane %v1296, %v1302
      %v1305 = vmul.f32 %v1293, %v1303
      %vm1306 = vmand %vm510, %vm520
      %vm1307 = vmand %vm511, %vm521
      %v1308 = vsel %vm1306, 1, 0
      %v1309 = vsel %vm1307, 1, 0
      %vm1310 = vcmp.eq.s32.totalorder %v1308, 1
      %vm1311 = vcmp.eq.s32.totalorder %v1309, 1
      %v1313 = vcombine.high %v1305, %v1305
      %v1315 = vunpack.c.l.s4 1983009808
      %v1316 = vunpack.c.0.s8 %v1315
      %v1317 = vlaneseq
      %v1318 = vshrl.u32 %v1317, 7
      %v1319 = vsub.s32 %v1316, %v1318
      %v1320 = vrot.slane %v1305, %v1319
      %v1322 = vunpack.c.l.s4 1983009808
      %v1323 = vunpack.c.0.s8 %v1322
      %v1324 = vlaneseq
      %v1325 = vshrl.u32 %v1324, 7
      %v1326 = vsub.s32 %v1323, %v1325
      %v1327 = vrot.slane %v1313, %v1326
      %v1328 = vcombine.high %v1320, %v1320
      %1329 = vrot.lane.b32.xlu0 %v1320, 18
      %v1330 = vpop.permute.xlu0 %1329
      %1331 = vrot.lane.b32.xlu0 %v1328, 18
      %v1332 = vpop.permute.xlu0 %1331
      %1333 = vrot.lane.b32.xlu0 %v1327, 18
      %v1334 = vpop.permute.xlu0 %1333
      %vm1335 = vcmask 146432
      %v1336 = vsel %vm1335, %v1330, %v1332
      %v1337 = vsel %vm1335, %v1332, %v1334
      %v1340 = vsel %vm1310, %v1336, 0.0
      %v1341 = vsel %vm1311, %v1337, 0.0
      %v1342 = vadd.f32 %v1291, %v1340
      %v1343 = vadd.f32 %v1292, %v1341
      %v1344 = vld [vmem:[#allocation2] sm:$0x3f]
      %1345 = vset.pattern.permute.xlu0 16
      %1346 = vperm.xlu0 %1345, %v530
      %v1347 = vpop.permute.xlu0 %1346
      %v1349 = vunpack.c.l.s4 269488144
      %v1350 = vunpack.c.0.s8 %v1349
      %v1351 = vlaneseq
      %v1352 = vshrl.u32 %v1351, 7
      %v1353 = vsub.s32 %v1350, %v1352
      %v1354 = vrot.slane %v1347, %v1353
      %v1356 = vmul.f32 %v1344, %v1354
      %vm1357 = vmand %vm510, %vm522
      %vm1358 = vmand %vm511, %vm523
      %v1359 = vsel %vm1357, 1, 0
      %v1360 = vsel %vm1358, 1, 0
      %vm1361 = vcmp.eq.s32.totalorder %v1359, 1
      %vm1362 = vcmp.eq.s32.totalorder %v1360, 1
      %v1364 = vcombine.high %v1356, %v1356
      %v1366 = vunpack.c.l.s4 1983009808
      %v1367 = vunpack.c.0.s8 %v1366
      %v1368 = vlaneseq
      %v1369 = vshrl.u32 %v1368, 7
      %v1370 = vsub.s32 %v1367, %v1369
      %v1371 = vrot.slane %v1356, %v1370
      %v1373 = vunpack.c.l.s4 1983009808
      %v1374 = vunpack.c.0.s8 %v1373
      %v1375 = vlaneseq
      %v1376 = vshrl.u32 %v1375, 7
      %v1377 = vsub.s32 %v1374, %v1376
      %v1378 = vrot.slane %v1364, %v1377
      %v1379 = vcombine.high %v1371, %v1371
      %1380 = vrot.lane.b32.xlu0 %v1371, 17
      %v1381 = vpop.permute.xlu0 %1380
      %1382 = vrot.lane.b32.xlu0 %v1379, 17
      %v1383 = vpop.permute.xlu0 %1382
      %1384 = vrot.lane.b32.xlu0 %v1378, 17
      %v1385 = vpop.permute.xlu0 %1384
      %vm1386 = vcmask 138240
      %v1387 = vsel %vm1386, %v1381, %v1383
      %v1388 = vsel %vm1386, %v1383, %v1385
      %v1391 = vsel %vm1361, %v1387, 0.0
      %v1392 = vsel %vm1362, %v1388, 0.0
      %v1393 = vadd.f32 %v1342, %v1391
      %v1394 = vadd.f32 %v1343, %v1392
      %v1395 = vld [vmem:[#allocation2] sm:$0x3f]
      %1396 = vset.pattern.permute.xlu0 17
      %1397 = vperm.xlu0 %1396, %v530
      %v1398 = vpop.permute.xlu0 %1397
      %v1400 = vunpack.c.l.s4 269488144
      %v1401 = vunpack.c.0.s8 %v1400
      %v1402 = vlaneseq
      %v1403 = vshrl.u32 %v1402, 7
      %v1404 = vsub.s32 %v1401, %v1403
      %v1405 = vrot.slane %v1398, %v1404
      %v1407 = vmul.f32 %v1395, %v1405
      %v1408 = vsel %vm510, 1, 0
      %v1409 = vsel %vm511, 1, 0
      %vm1410 = vcmp.eq.s32.totalorder %v1408, 1
      %vm1411 = vcmp.eq.s32.totalorder %v1409, 1
      %v1413 = vcombine.high %v1407, %v1407
      %v1415 = vunpack.c.l.s4 1983009808
      %v1416 = vunpack.c.0.s8 %v1415
      %v1417 = vlaneseq
      %v1418 = vshrl.u32 %v1417, 7
      %v1419 = vsub.s32 %v1416, %v1418
      %v1420 = vrot.slane %v1407, %v1419
      %v1422 = vunpack.c.l.s4 1983009808
      %v1423 = vunpack.c.0.s8 %v1422
      %v1424 = vlaneseq
      %v1425 = vshrl.u32 %v1424, 7
      %v1426 = vsub.s32 %v1423, %v1425
      %v1427 = vrot.slane %v1413, %v1426
      %v1428 = vcombine.high %v1420, %v1420
      %1429 = vrot.lane.b32.xlu0 %v1420, 16
      %v1430 = vpop.permute.xlu0 %1429
      %1431 = vrot.lane.b32.xlu0 %v1428, 16
      %v1432 = vpop.permute.xlu0 %1431
      %1433 = vrot.lane.b32.xlu0 %v1427, 16
      %v1434 = vpop.permute.xlu0 %1433
      %vm1435 = vcmask 130048
      %v1436 = vsel %vm1435, %v1430, %v1432
      %v1437 = vsel %vm1435, %v1432, %v1434
      %v1440 = vsel %vm1410, %v1436, 0.0
      %v1441 = vsel %vm1411, %v1437, 0.0
      %v1442 = vadd.f32 %v1393, %v1440
      %v1443 = vadd.f32 %v1394, %v1441
      %v1444 = vld [vmem:[#allocation2] sm:$0x3f]
      %1445 = vset.pattern.permute.xlu0 18
      %1446 = vperm.xlu0 %1445, %v530
      %v1447 = vpop.permute.xlu0 %1446
      %v1449 = vunpack.c.l.s4 269488144
      %v1450 = vunpack.c.0.s8 %v1449
      %v1451 = vlaneseq
      %v1452 = vshrl.u32 %v1451, 7
      %v1453 = vsub.s32 %v1450, %v1452
      %v1454 = vrot.slane %v1447, %v1453
      %v1456 = vmul.f32 %v1444, %v1454
      %vm1457 = vmand %vm510, %vm524
      %vm1458 = vmand %vm511, %vm525
      %v1459 = vsel %vm1457, 1, 0
      %v1460 = vsel %vm1458, 1, 0
      %vm1461 = vcmp.eq.s32.totalorder %v1459, 1
      %vm1462 = vcmp.eq.s32.totalorder %v1460, 1
      %v1464 = vcombine.high %v1456, %v1456
      %v1466 = vunpack.c.l.s4 1983009808
      %v1467 = vunpack.c.0.s8 %v1466
      %v1468 = vlaneseq
      %v1469 = vshrl.u32 %v1468, 7
      %v1470 = vsub.s32 %v1467, %v1469
      %v1471 = vrot.slane %v1456, %v1470
      %v1473 = vunpack.c.l.s4 1983009808
      %v1474 = vunpack.c.0.s8 %v1473
      %v1475 = vlaneseq
      %v1476 = vshrl.u32 %v1475, 7
      %v1477 = vsub.s32 %v1474, %v1476
      %v1478 = vrot.slane %v1464, %v1477
      %v1479 = vcombine.high %v1471, %v1471
      %1480 = vrot.lane.b32.xlu0 %v1471, 15
      %v1481 = vpop.permute.xlu0 %1480
      %1482 = vrot.lane.b32.xlu0 %v1479, 15
      %v1483 = vpop.permute.xlu0 %1482
      %1484 = vrot.lane.b32.xlu0 %v1478, 15
      %v1485 = vpop.permute.xlu0 %1484
      %vm1486 = vcmask 121856
      %v1487 = vsel %vm1486, %v1481, %v1483
      %v1488 = vsel %vm1486, %v1483, %v1485
      %v1491 = vsel %vm1461, %v1487, 0.0
      %v1492 = vsel %vm1462, %v1488, 0.0
      %v1493 = vadd.f32 %v1442, %v1491
      %v1494 = vadd.f32 %v1443, %v1492
      %v1495 = vld [vmem:[#allocation2] sm:$0x3f]
      %1496 = vset.pattern.permute.xlu0 19
      %1497 = vperm.xlu0 %1496, %v530
      %v1498 = vpop.permute.xlu0 %1497
      %v1500 = vunpack.c.l.s4 269488144
      %v1501 = vunpack.c.0.s8 %v1500
      %v1502 = vlaneseq
      %v1503 = vshrl.u32 %v1502, 7
      %v1504 = vsub.s32 %v1501, %v1503
      %v1505 = vrot.slane %v1498, %v1504
      %v1507 = vmul.f32 %v1495, %v1505
      %vm1508 = vmand %vm510, %vm526
      %vm1509 = vmand %vm511, %vm527
      %v1510 = vsel %vm1508, 1, 0
      %v1511 = vsel %vm1509, 1, 0
      %vm1512 = vcmp.eq.s32.totalorder %v1510, 1
      %vm1513 = vcmp.eq.s32.totalorder %v1511, 1
      %v1515 = vcombine.high %v1507, %v1507
      %v1517 = vunpack.c.l.s4 1983009808
      %v1518 = vunpack.c.0.s8 %v1517
      %v1519 = vlaneseq
      %v1520 = vshrl.u32 %v1519, 7
      %v1521 = vsub.s32 %v1518, %v1520
      %v1522 = vrot.slane %v1507, %v1521
      %v1524 = vunpack.c.l.s4 1983009808
      %v1525 = vunpack.c.0.s8 %v1524
      %v1526 = vlaneseq
      %v1527 = vshrl.u32 %v1526, 7
      %v1528 = vsub.s32 %v1525, %v1527
      %v1529 = vrot.slane %v1515, %v1528
      %v1530 = vcombine.high %v1522, %v1522
      %1531 = vrot.lane.b32.xlu0 %v1522, 14
      %v1532 = vpop.permute.xlu0 %1531
      %1533 = vrot.lane.b32.xlu0 %v1530, 14
      %v1534 = vpop.permute.xlu0 %1533
      %1535 = vrot.lane.b32.xlu0 %v1529, 14
      %v1536 = vpop.permute.xlu0 %1535
      %vm1537 = vcmask 113664
      %v1538 = vsel %vm1537, %v1532, %v1534
      %v1539 = vsel %vm1537, %v1534, %v1536
      %v1542 = vsel %vm1512, %v1538, 0.0
      %v1543 = vsel %vm1513, %v1539, 0.0
      %v1544 = vadd.f32 %v1493, %v1542
      %v1545 = vadd.f32 %v1494, %v1543
      %v1546 = vld [vmem:[#allocation2] sm:$0x3f]
      %1547 = vset.pattern.permute.xlu0 20
      %1548 = vperm.xlu0 %1547, %v530
      %v1549 = vpop.permute.xlu0 %1548
      %v1551 = vunpack.c.l.s4 269488144
      %v1552 = vunpack.c.0.s8 %v1551
      %v1553 = vlaneseq
      %v1554 = vshrl.u32 %v1553, 7
      %v1555 = vsub.s32 %v1552, %v1554
      %v1556 = vrot.slane %v1549, %v1555
      %v1558 = vmul.f32 %v1546, %v1556
      %vm1559 = vmand %vm510, %vm528
      %vm1560 = vmand %vm511, %vm529
      %v1561 = vsel %vm1559, 1, 0
      %v1562 = vsel %vm1560, 1, 0
      %vm1563 = vcmp.eq.s32.totalorder %v1561, 1
      %vm1564 = vcmp.eq.s32.totalorder %v1562, 1
      %v1566 = vcombine.high %v1558, %v1558
      %v1568 = vunpack.c.l.s4 1983009808
      %v1569 = vunpack.c.0.s8 %v1568
      %v1570 = vlaneseq
      %v1571 = vshrl.u32 %v1570, 7
      %v1572 = vsub.s32 %v1569, %v1571
      %v1573 = vrot.slane %v1558, %v1572
      %v1575 = vunpack.c.l.s4 1983009808
      %v1576 = vunpack.c.0.s8 %v1575
      %v1577 = vlaneseq
      %v1578 = vshrl.u32 %v1577, 7
      %v1579 = vsub.s32 %v1576, %v1578
      %v1580 = vrot.slane %v1566, %v1579
      %v1581 = vcombine.high %v1573, %v1573
      %1582 = vrot.lane.b32.xlu0 %v1573, 13
      %v1583 = vpop.permute.xlu0 %1582
      %1584 = vrot.lane.b32.xlu0 %v1581, 13
      %v1585 = vpop.permute.xlu0 %1584
      %1586 = vrot.lane.b32.xlu0 %v1580, 13
      %v1587 = vpop.permute.xlu0 %1586
      %vm1588 = vcmask 105472
      %v1589 = vsel %vm1588, %v1583, %v1585
      %v1590 = vsel %vm1588, %v1585, %v1587
      %v1593 = vsel %vm1563, %v1589, 0.0
      %v1594 = vsel %vm1564, %v1590, 0.0
      %v1595 = vadd.f32 %v1544, %v1593
      %v1596 = vadd.f32 %v1545, %v1594
      %v1597 = vld [vmem:[#allocation2] sm:$0x3f]
      %1598 = vset.pattern.permute.xlu0 21
      %1599 = vperm.xlu0 %1598, %v530
      %v1600 = vpop.permute.xlu0 %1599
      %v1602 = vunpack.c.l.s4 269488144
      %v1603 = vunpack.c.0.s8 %v1602
      %v1604 = vlaneseq
      %v1605 = vshrl.u32 %v1604, 7
      %v1606 = vsub.s32 %v1603, %v1605
      %v1607 = vrot.slane %v1600, %v1606
      %v1609 = vmul.f32 %v1597, %v1607
      %v1610 = vsel %vm518, 1, 0
      %v1611 = vsel %vm519, 1, 0
      %vm1612 = vcmp.eq.s32.totalorder %v1610, 1
      %vm1613 = vcmp.eq.s32.totalorder %v1611, 1
      %v1615 = vcombine.high %v1609, %v1609
      %v1617 = vunpack.c.l.s4 1983009808
      %v1618 = vunpack.c.0.s8 %v1617
      %v1619 = vlaneseq
      %v1620 = vshrl.u32 %v1619, 7
      %v1621 = vsub.s32 %v1618, %v1620
      %v1622 = vrot.slane %v1609, %v1621
      %v1624 = vunpack.c.l.s4 1983009808
      %v1625 = vunpack.c.0.s8 %v1624
      %v1626 = vlaneseq
      %v1627 = vshrl.u32 %v1626, 7
      %v1628 = vsub.s32 %v1625, %v1627
      %v1629 = vrot.slane %v1615, %v1628
      %v1630 = vcombine.high %v1622, %v1622
      %1631 = vrot.lane.b32.xlu0 %v1622, 3
      %v1632 = vpop.permute.xlu0 %1631
      %1633 = vrot.lane.b32.xlu0 %v1630, 3
      %v1634 = vpop.permute.xlu0 %1633
      %1635 = vrot.lane.b32.xlu0 %v1629, 3
      %v1636 = vpop.permute.xlu0 %1635
      %vm1637 = vcmask 23552
      %v1638 = vsel %vm1637, %v1632, %v1634
      %v1639 = vsel %vm1637, %v1634, %v1636
      %v1642 = vsel %vm1612, %v1638, 0.0
      %v1643 = vsel %vm1613, %v1639, 0.0
      %v1644 = vadd.f32 %v1595, %v1642
      %v1645 = vadd.f32 %v1596, %v1643
      %v1646 = vld [vmem:[#allocation2] sm:$0x3f]
      %1647 = vset.pattern.permute.xlu0 22
      %1648 = vperm.xlu0 %1647, %v530
      %v1649 = vpop.permute.xlu0 %1648
      %v1651 = vunpack.c.l.s4 269488144
      %v1652 = vunpack.c.0.s8 %v1651
      %v1653 = vlaneseq
      %v1654 = vshrl.u32 %v1653, 7
      %v1655 = vsub.s32 %v1652, %v1654
      %v1656 = vrot.slane %v1649, %v1655
      %v1658 = vmul.f32 %v1646, %v1656
      %v1659 = vsel %vm520, 1, 0
      %v1660 = vsel %vm521, 1, 0
      %vm1661 = vcmp.eq.s32.totalorder %v1659, 1
      %vm1662 = vcmp.eq.s32.totalorder %v1660, 1
      %v1664 = vcombine.high %v1658, %v1658
      %v1666 = vunpack.c.l.s4 1983009808
      %v1667 = vunpack.c.0.s8 %v1666
      %v1668 = vlaneseq
      %v1669 = vshrl.u32 %v1668, 7
      %v1670 = vsub.s32 %v1667, %v1669
      %v1671 = vrot.slane %v1658, %v1670
      %v1673 = vunpack.c.l.s4 1983009808
      %v1674 = vunpack.c.0.s8 %v1673
      %v1675 = vlaneseq
      %v1676 = vshrl.u32 %v1675, 7
      %v1677 = vsub.s32 %v1674, %v1676
      %v1678 = vrot.slane %v1664, %v1677
      %v1679 = vcombine.high %v1671, %v1671
      %1680 = vrot.lane.b32.xlu0 %v1671, 2
      %v1681 = vpop.permute.xlu0 %1680
      %1682 = vrot.lane.b32.xlu0 %v1679, 2
      %v1683 = vpop.permute.xlu0 %1682
      %1684 = vrot.lane.b32.xlu0 %v1678, 2
      %v1685 = vpop.permute.xlu0 %1684
      %vm1686 = vcmask 15360
      %v1687 = vsel %vm1686, %v1681, %v1683
      %v1688 = vsel %vm1686, %v1683, %v1685
      %v1691 = vsel %vm1661, %v1687, 0.0
      %v1692 = vsel %vm1662, %v1688, 0.0
      %v1693 = vadd.f32 %v1644, %v1691
      %v1694 = vadd.f32 %v1645, %v1692
      %v1695 = vld [vmem:[#allocation2] sm:$0x3f]
      %1696 = vset.pattern.permute.xlu0 23
      %1697 = vperm.xlu0 %1696, %v530
      %v1698 = vpop.permute.xlu0 %1697
      %v1700 = vunpack.c.l.s4 269488144
      %v1701 = vunpack.c.0.s8 %v1700
      %v1702 = vlaneseq
      %v1703 = vshrl.u32 %v1702, 7
      %v1704 = vsub.s32 %v1701, %v1703
      %v1705 = vrot.slane %v1698, %v1704
      %v1707 = vmul.f32 %v1695, %v1705
      %v1708 = vsel %vm522, 1, 0
      %v1709 = vsel %vm523, 1, 0
      %vm1710 = vcmp.eq.s32.totalorder %v1708, 1
      %vm1711 = vcmp.eq.s32.totalorder %v1709, 1
      %v1713 = vcombine.high %v1707, %v1707
      %v1715 = vunpack.c.l.s4 1983009808
      %v1716 = vunpack.c.0.s8 %v1715
      %v1717 = vlaneseq
      %v1718 = vshrl.u32 %v1717, 7
      %v1719 = vsub.s32 %v1716, %v1718
      %v1720 = vrot.slane %v1707, %v1719
      %v1722 = vunpack.c.l.s4 1983009808
      %v1723 = vunpack.c.0.s8 %v1722
      %v1724 = vlaneseq
      %v1725 = vshrl.u32 %v1724, 7
      %v1726 = vsub.s32 %v1723, %v1725
      %v1727 = vrot.slane %v1713, %v1726
      %v1728 = vcombine.high %v1720, %v1720
      %1729 = vrot.lane.b32.xlu0 %v1720, 1
      %v1730 = vpop.permute.xlu0 %1729
      %1731 = vrot.lane.b32.xlu0 %v1728, 1
      %v1732 = vpop.permute.xlu0 %1731
      %1733 = vrot.lane.b32.xlu0 %v1727, 1
      %v1734 = vpop.permute.xlu0 %1733
      %vm1735 = vcmask 7168
      %v1736 = vsel %vm1735, %v1730, %v1732
      %v1737 = vsel %vm1735, %v1732, %v1734
      %v1740 = vsel %vm1710, %v1736, 0.0
      %v1741 = vsel %vm1711, %v1737, 0.0
      %v1742 = vadd.f32 %v1693, %v1740
      %v1743 = vadd.f32 %v1694, %v1741
      %v1744 = vld [vmem:[#allocation2 + $0x2] sm:$0xf]
      %1745 = vset.pattern.permute.xlu0 24
      %1746 = vperm.xlu0 %1745, %v530
      %v1747 = vpop.permute.xlu0 %1746
      %v1749 = vunpack.c.l.s4 269488144
      %v1750 = vunpack.c.0.s8 %v1749
      %v1751 = vlaneseq
      %v1752 = vshrl.u32 %v1751, 7
      %v1753 = vsub.s32 %v1750, %v1752
      %v1754 = vrot.slane %v1747, %v1753
      %v1756 = vmul.f32 %v1744, %v1754
      %v1759 = vunpack.c.l.s4 1983009808
      %v1760 = vunpack.c.0.s8 %v1759
      %v1761 = vlaneseq
      %v1762 = vshrl.u32 %v1761, 7
      %v1763 = vsub.s32 %v1760, %v1762
      %v1764 = vrot.slane %v1756, %v1763
      %v1765 = vcombine.high %v1764, %v1764
      %v1768 = vadd.f32 %v1742, %v1764
      %v1769 = vadd.f32 %v1743, %v1765
      %v1770 = vld [vmem:[#allocation2 + $0x2] sm:$0x3f]
      %1771 = vset.pattern.permute.xlu0 25
      %1772 = vperm.xlu0 %1771, %v530
      %v1773 = vpop.permute.xlu0 %1772
      %v1775 = vunpack.c.l.s4 269488144
      %v1776 = vunpack.c.0.s8 %v1775
      %v1777 = vlaneseq
      %v1778 = vshrl.u32 %v1777, 7
      %v1779 = vsub.s32 %v1776, %v1778
      %v1780 = vrot.slane %v1773, %v1779
      %v1782 = vmul.f32 %v1770, %v1780
      %v1783 = vsel %vm524, 1, 0
      %v1784 = vsel %vm525, 1, 0
      %vm1785 = vcmp.eq.s32.totalorder %v1783, 1
      %vm1786 = vcmp.eq.s32.totalorder %v1784, 1
      %v1788 = vcombine.high %v1782, %v1782
      %v1790 = vunpack.c.l.s4 1983009808
      %v1791 = vunpack.c.0.s8 %v1790
      %v1792 = vlaneseq
      %v1793 = vshrl.u32 %v1792, 7
      %v1794 = vsub.s32 %v1791, %v1793
      %v1795 = vrot.slane %v1782, %v1794
      %v1797 = vunpack.c.l.s4 1983009808
      %v1798 = vunpack.c.0.s8 %v1797
      %v1799 = vlaneseq
      %v1800 = vshrl.u32 %v1799, 7
      %v1801 = vsub.s32 %v1798, %v1800
      %v1802 = vrot.slane %v1788, %v1801
      %v1803 = vcombine.high %v1795, %v1795
      %1804 = vrot.lane.b32.xlu0 %v1795, 127
      %v1805 = vpop.permute.xlu0 %1804
      %1806 = vrot.lane.b32.xlu0 %v1803, 127
      %v1807 = vpop.permute.xlu0 %1806
      %1808 = vrot.lane.b32.xlu0 %v1802, 127
      %v1809 = vpop.permute.xlu0 %1808
      %vm1810 = vcmask 1039360
      %v1811 = vsel %vm1810, %v1805, %v1807
      %v1812 = vsel %vm1810, %v1807, %v1809
      %v1815 = vsel %vm1785, %v1811, 0.0
      %v1816 = vsel %vm1786, %v1812, 0.0
      %v1817 = vadd.f32 %v1768, %v1815
      %v1818 = vadd.f32 %v1769, %v1816
      %v1819 = vld [vmem:[#allocation2 + $0x2] sm:$0x3f]
      %1820 = vset.pattern.permute.xlu0 26
      %1821 = vperm.xlu0 %1820, %v530
      %v1822 = vpop.permute.xlu0 %1821
      %v1824 = vunpack.c.l.s4 269488144
      %v1825 = vunpack.c.0.s8 %v1824
      %v1826 = vlaneseq
      %v1827 = vshrl.u32 %v1826, 7
      %v1828 = vsub.s32 %v1825, %v1827
      %v1829 = vrot.slane %v1822, %v1828
      %v1831 = vmul.f32 %v1819, %v1829
      %v1832 = vsel %vm526, 1, 0
      %v1833 = vsel %vm527, 1, 0
      %vm1834 = vcmp.eq.s32.totalorder %v1832, 1
      %vm1835 = vcmp.eq.s32.totalorder %v1833, 1
      %v1837 = vcombine.high %v1831, %v1831
      %v1839 = vunpack.c.l.s4 1983009808
      %v1840 = vunpack.c.0.s8 %v1839
      %v1841 = vlaneseq
      %v1842 = vshrl.u32 %v1841, 7
      %v1843 = vsub.s32 %v1840, %v1842
      %v1844 = vrot.slane %v1831, %v1843
      %v1846 = vunpack.c.l.s4 1983009808
      %v1847 = vunpack.c.0.s8 %v1846
      %v1848 = vlaneseq
      %v1849 = vshrl.u32 %v1848, 7
      %v1850 = vsub.s32 %v1847, %v1849
      %v1851 = vrot.slane %v1837, %v1850
      %v1852 = vcombine.high %v1844, %v1844
      %1853 = vrot.lane.b32.xlu0 %v1844, 126
      %v1854 = vpop.permute.xlu0 %1853
      %1855 = vrot.lane.b32.xlu0 %v1852, 126
      %v1856 = vpop.permute.xlu0 %1855
      %1857 = vrot.lane.b32.xlu0 %v1851, 126
      %v1858 = vpop.permute.xlu0 %1857
      %vm1859 = vcmask 1031168
      %v1860 = vsel %vm1859, %v1854, %v1856
      %v1861 = vsel %vm1859, %v1856, %v1858
      %v1864 = vsel %vm1834, %v1860, 0.0
      %v1865 = vsel %vm1835, %v1861, 0.0
      %v1866 = vadd.f32 %v1817, %v1864
      %v1867 = vadd.f32 %v1818, %v1865
      %v1868 = vld [vmem:[#allocation2 + $0x2] sm:$0x3f]
      %1869 = vset.pattern.permute.xlu0 27
      %1870 = vperm.xlu0 %1869, %v530
      %v1871 = vpop.permute.xlu0 %1870
      %v1873 = vunpack.c.l.s4 269488144
      %v1874 = vunpack.c.0.s8 %v1873
      %v1875 = vlaneseq
      %v1876 = vshrl.u32 %v1875, 7
      %v1877 = vsub.s32 %v1874, %v1876
      %v1878 = vrot.slane %v1871, %v1877
      %v1880 = vmul.f32 %v1868, %v1878
      %v1881 = vsel %vm528, 1, 0
      %v1882 = vsel %vm529, 1, 0
      %vm1883 = vcmp.eq.s32.totalorder %v1881, 1
      %vm1884 = vcmp.eq.s32.totalorder %v1882, 1
      %v1886 = vcombine.high %v1880, %v1880
      %v1888 = vunpack.c.l.s4 1983009808
      %v1889 = vunpack.c.0.s8 %v1888
      %v1890 = vlaneseq
      %v1891 = vshrl.u32 %v1890, 7
      %v1892 = vsub.s32 %v1889, %v1891
      %v1893 = vrot.slane %v1880, %v1892
      %v1895 = vunpack.c.l.s4 1983009808
      %v1896 = vunpack.c.0.s8 %v1895
      %v1897 = vlaneseq
      %v1898 = vshrl.u32 %v1897, 7
      %v1899 = vsub.s32 %v1896, %v1898
      %v1900 = vrot.slane %v1886, %v1899
      %v1901 = vcombine.high %v1893, %v1893
      %1902 = vrot.lane.b32.xlu0 %v1893, 125
      %v1903 = vpop.permute.xlu0 %1902
      %1904 = vrot.lane.b32.xlu0 %v1901, 125
      %v1905 = vpop.permute.xlu0 %1904
      %1906 = vrot.lane.b32.xlu0 %v1900, 125
      %v1907 = vpop.permute.xlu0 %1906
      %vm1908 = vcmask 1022976
      %v1909 = vsel %vm1908, %v1903, %v1905
      %v1910 = vsel %vm1908, %v1905, %v1907
      %v1913 = vsel %vm1883, %v1909, 0.0
      %v1914 = vsel %vm1884, %v1910, 0.0
      %v1915 = vadd.f32 %v1866, %v1913
      %v1916 = vadd.f32 %v1867, %v1914
      %v1917 = vld [vmem:[#allocation2 + $0x2] sm:$0x3f]
      %1918 = vset.pattern.permute.xlu0 28
      %1919 = vperm.xlu0 %1918, %v530
      %v1920 = vpop.permute.xlu0 %1919
      %v1922 = vunpack.c.l.s4 269488144
      %v1923 = vunpack.c.0.s8 %v1922
      %v1924 = vlaneseq
      %v1925 = vshrl.u32 %v1924, 7
      %v1926 = vsub.s32 %v1923, %v1925
      %v1927 = vrot.slane %v1920, %v1926
      %v1929 = vmul.f32 %v1917, %v1927
      %vm1930 = vmand %vm512, %vm518
      %vm1931 = vmand %vm513, %vm519
      %v1932 = vsel %vm1930, 1, 0
      %v1933 = vsel %vm1931, 1, 0
      %vm1934 = vcmp.eq.s32.totalorder %v1932, 1
      %vm1935 = vcmp.eq.s32.totalorder %v1933, 1
      %v1937 = vcombine.high %v1929, %v1929
      %v1939 = vunpack.c.l.s4 1983009808
      %v1940 = vunpack.c.0.s8 %v1939
      %v1941 = vlaneseq
      %v1942 = vshrl.u32 %v1941, 7
      %v1943 = vsub.s32 %v1940, %v1942
      %v1944 = vrot.slane %v1929, %v1943
      %v1946 = vunpack.c.l.s4 1983009808
      %v1947 = vunpack.c.0.s8 %v1946
      %v1948 = vlaneseq
      %v1949 = vshrl.u32 %v1948, 7
      %v1950 = vsub.s32 %v1947, %v1949
      %v1951 = vrot.slane %v1937, %v1950
      %v1952 = vcombine.high %v1944, %v1944
      %1953 = vrot.lane.b32.xlu0 %v1944, 115
      %v1954 = vpop.permute.xlu0 %1953
      %1955 = vrot.lane.b32.xlu0 %v1952, 115
      %v1956 = vpop.permute.xlu0 %1955
      %1957 = vrot.lane.b32.xlu0 %v1951, 115
      %v1958 = vpop.permute.xlu0 %1957
      %vm1959 = vcmask 941056
      %v1960 = vsel %vm1959, %v1954, %v1956
      %v1961 = vsel %vm1959, %v1956, %v1958
      %v1964 = vsel %vm1934, %v1960, 0.0
      %v1965 = vsel %vm1935, %v1961, 0.0
      %v1966 = vadd.f32 %v1915, %v1964
      %v1967 = vadd.f32 %v1916, %v1965
      %v1968 = vld [vmem:[#allocation2 + $0x2] sm:$0x3f]
      %1969 = vset.pattern.permute.xlu0 29
      %1970 = vperm.xlu0 %1969, %v530
      %v1971 = vpop.permute.xlu0 %1970
      %v1973 = vunpack.c.l.s4 269488144
      %v1974 = vunpack.c.0.s8 %v1973
      %v1975 = vlaneseq
      %v1976 = vshrl.u32 %v1975, 7
      %v1977 = vsub.s32 %v1974, %v1976
      %v1978 = vrot.slane %v1971, %v1977
      %v1980 = vmul.f32 %v1968, %v1978
      %vm1981 = vmand %vm512, %vm520
      %vm1982 = vmand %vm513, %vm521
      %v1983 = vsel %vm1981, 1, 0
      %v1984 = vsel %vm1982, 1, 0
      %vm1985 = vcmp.eq.s32.totalorder %v1983, 1
      %vm1986 = vcmp.eq.s32.totalorder %v1984, 1
      %v1988 = vcombine.high %v1980, %v1980
      %v1990 = vunpack.c.l.s4 1983009808
      %v1991 = vunpack.c.0.s8 %v1990
      %v1992 = vlaneseq
      %v1993 = vshrl.u32 %v1992, 7
      %v1994 = vsub.s32 %v1991, %v1993
      %v1995 = vrot.slane %v1980, %v1994
      %v1997 = vunpack.c.l.s4 1983009808
      %v1998 = vunpack.c.0.s8 %v1997
      %v1999 = vlaneseq
      %v2000 = vshrl.u32 %v1999, 7
      %v2001 = vsub.s32 %v1998, %v2000
      %v2002 = vrot.slane %v1988, %v2001
      %v2003 = vcombine.high %v1995, %v1995
      %2004 = vrot.lane.b32.xlu0 %v1995, 114
      %v2005 = vpop.permute.xlu0 %2004
      %2006 = vrot.lane.b32.xlu0 %v2003, 114
      %v2007 = vpop.permute.xlu0 %2006
      %2008 = vrot.lane.b32.xlu0 %v2002, 114
      %v2009 = vpop.permute.xlu0 %2008
      %vm2010 = vcmask 932864
      %v2011 = vsel %vm2010, %v2005, %v2007
      %v2012 = vsel %vm2010, %v2007, %v2009
      %v2015 = vsel %vm1985, %v2011, 0.0
      %v2016 = vsel %vm1986, %v2012, 0.0
      %v2017 = vadd.f32 %v1966, %v2015
      %v2018 = vadd.f32 %v1967, %v2016
      %v2019 = vld [vmem:[#allocation2 + $0x2] sm:$0x3f]
      %2020 = vset.pattern.permute.xlu0 30
      %2021 = vperm.xlu0 %2020, %v530
      %v2022 = vpop.permute.xlu0 %2021
      %v2024 = vunpack.c.l.s4 269488144
      %v2025 = vunpack.c.0.s8 %v2024
      %v2026 = vlaneseq
      %v2027 = vshrl.u32 %v2026, 7
      %v2028 = vsub.s32 %v2025, %v2027
      %v2029 = vrot.slane %v2022, %v2028
      %v2031 = vmul.f32 %v2019, %v2029
      %vm2032 = vmand %vm512, %vm522
      %vm2033 = vmand %vm513, %vm523
      %v2034 = vsel %vm2032, 1, 0
      %v2035 = vsel %vm2033, 1, 0
      %vm2036 = vcmp.eq.s32.totalorder %v2034, 1
      %vm2037 = vcmp.eq.s32.totalorder %v2035, 1
      %v2039 = vcombine.high %v2031, %v2031
      %v2041 = vunpack.c.l.s4 1983009808
      %v2042 = vunpack.c.0.s8 %v2041
      %v2043 = vlaneseq
      %v2044 = vshrl.u32 %v2043, 7
      %v2045 = vsub.s32 %v2042, %v2044
      %v2046 = vrot.slane %v2031, %v2045
      %v2048 = vunpack.c.l.s4 1983009808
      %v2049 = vunpack.c.0.s8 %v2048
      %v2050 = vlaneseq
      %v2051 = vshrl.u32 %v2050, 7
      %v2052 = vsub.s32 %v2049, %v2051
      %v2053 = vrot.slane %v2039, %v2052
      %v2054 = vcombine.high %v2046, %v2046
      %2055 = vrot.lane.b32.xlu0 %v2046, 113
      %v2056 = vpop.permute.xlu0 %2055
      %2057 = vrot.lane.b32.xlu0 %v2054, 113
      %v2058 = vpop.permute.xlu0 %2057
      %2059 = vrot.lane.b32.xlu0 %v2053, 113
      %v2060 = vpop.permute.xlu0 %2059
      %vm2061 = vcmask 924672
      %v2062 = vsel %vm2061, %v2056, %v2058
      %v2063 = vsel %vm2061, %v2058, %v2060
      %v2066 = vsel %vm2036, %v2062, 0.0
      %v2067 = vsel %vm2037, %v2063, 0.0
      %v2068 = vadd.f32 %v2017, %v2066
      %v2069 = vadd.f32 %v2018, %v2067
      %v2070 = vld [vmem:[#allocation2 + $0x2] sm:$0x3f]
      %2071 = vset.pattern.permute.xlu0 31
      %2072 = vperm.xlu0 %2071, %v530
      %v2073 = vpop.permute.xlu0 %2072
      %v2075 = vunpack.c.l.s4 269488144
      %v2076 = vunpack.c.0.s8 %v2075
      %v2077 = vlaneseq
      %v2078 = vshrl.u32 %v2077, 7
      %v2079 = vsub.s32 %v2076, %v2078
      %v2080 = vrot.slane %v2073, %v2079
      %v2082 = vmul.f32 %v2070, %v2080
      %v2083 = vsel %vm512, 1, 0
      %v2084 = vsel %vm513, 1, 0
      %vm2085 = vcmp.eq.s32.totalorder %v2083, 1
      %vm2086 = vcmp.eq.s32.totalorder %v2084, 1
      %v2088 = vcombine.high %v2082, %v2082
      %v2090 = vunpack.c.l.s4 1983009808
      %v2091 = vunpack.c.0.s8 %v2090
      %v2092 = vlaneseq
      %v2093 = vshrl.u32 %v2092, 7
      %v2094 = vsub.s32 %v2091, %v2093
      %v2095 = vrot.slane %v2082, %v2094
      %v2097 = vunpack.c.l.s4 1983009808
      %v2098 = vunpack.c.0.s8 %v2097
      %v2099 = vlaneseq
      %v2100 = vshrl.u32 %v2099, 7
      %v2101 = vsub.s32 %v2098, %v2100
      %v2102 = vrot.slane %v2088, %v2101
      %v2103 = vcombine.high %v2095, %v2095
      %2104 = vrot.lane.b32.xlu0 %v2095, 112
      %v2105 = vpop.permute.xlu0 %2104
      %2106 = vrot.lane.b32.xlu0 %v2103, 112
      %v2107 = vpop.permute.xlu0 %2106
      %2108 = vrot.lane.b32.xlu0 %v2102, 112
      %v2109 = vpop.permute.xlu0 %2108
      %vm2110 = vcmask 916480
      %v2111 = vsel %vm2110, %v2105, %v2107
      %v2112 = vsel %vm2110, %v2107, %v2109
      %v2115 = vsel %vm2085, %v2111, 0.0
      %v2116 = vsel %vm2086, %v2112, 0.0
      %v2117 = vadd.f32 %v2068, %v2115
      %v2118 = vadd.f32 %v2069, %v2116
      %v2119 = vld [vmem:[#allocation2 + $0x2] sm:$0x3f]
      %2120 = vset.pattern.permute.xlu0 32
      %2121 = vperm.xlu0 %2120, %v530
      %v2122 = vpop.permute.xlu0 %2121
      %v2124 = vunpack.c.l.s4 269488144
      %v2125 = vunpack.c.0.s8 %v2124
      %v2126 = vlaneseq
      %v2127 = vshrl.u32 %v2126, 7
      %v2128 = vsub.s32 %v2125, %v2127
      %v2129 = vrot.slane %v2122, %v2128
      %v2131 = vmul.f32 %v2119, %v2129
      %vm2132 = vmand %vm512, %vm524
      %vm2133 = vmand %vm513, %vm525
      %v2134 = vsel %vm2132, 1, 0
      %v2135 = vsel %vm2133, 1, 0
      %vm2136 = vcmp.eq.s32.totalorder %v2134, 1
      %vm2137 = vcmp.eq.s32.totalorder %v2135, 1
      %v2139 = vcombine.high %v2131, %v2131
      %v2141 = vunpack.c.l.s4 1983009808
      %v2142 = vunpack.c.0.s8 %v2141
      %v2143 = vlaneseq
      %v2144 = vshrl.u32 %v2143, 7
      %v2145 = vsub.s32 %v2142, %v2144
      %v2146 = vrot.slane %v2131, %v2145
      %v2148 = vunpack.c.l.s4 1983009808
      %v2149 = vunpack.c.0.s8 %v2148
      %v2150 = vlaneseq
      %v2151 = vshrl.u32 %v2150, 7
      %v2152 = vsub.s32 %v2149, %v2151
      %v2153 = vrot.slane %v2139, %v2152
      %v2154 = vcombine.high %v2146, %v2146
      %2155 = vrot.lane.b32.xlu0 %v2146, 111
      %v2156 = vpop.permute.xlu0 %2155
      %2157 = vrot.lane.b32.xlu0 %v2154, 111
      %v2158 = vpop.permute.xlu0 %2157
      %2159 = vrot.lane.b32.xlu0 %v2153, 111
      %v2160 = vpop.permute.xlu0 %2159
      %vm2161 = vcmask 908288
      %v2162 = vsel %vm2161, %v2156, %v2158
      %v2163 = vsel %vm2161, %v2158, %v2160
      %v2166 = vsel %vm2136, %v2162, 0.0
      %v2167 = vsel %vm2137, %v2163, 0.0
      %v2168 = vadd.f32 %v2117, %v2166
      %v2169 = vadd.f32 %v2118, %v2167
      %v2170 = vld [vmem:[#allocation2 + $0x2] sm:$0x3f]
      %2171 = vset.pattern.permute.xlu0 33
      %2172 = vperm.xlu0 %2171, %v530
      %v2173 = vpop.permute.xlu0 %2172
      %v2175 = vunpack.c.l.s4 269488144
      %v2176 = vunpack.c.0.s8 %v2175
      %v2177 = vlaneseq
      %v2178 = vshrl.u32 %v2177, 7
      %v2179 = vsub.s32 %v2176, %v2178
      %v2180 = vrot.slane %v2173, %v2179
      %v2182 = vmul.f32 %v2170, %v2180
      %vm2183 = vmand %vm512, %vm526
      %vm2184 = vmand %vm513, %vm527
      %v2185 = vsel %vm2183, 1, 0
      %v2186 = vsel %vm2184, 1, 0
      %vm2187 = vcmp.eq.s32.totalorder %v2185, 1
      %vm2188 = vcmp.eq.s32.totalorder %v2186, 1
      %v2190 = vcombine.high %v2182, %v2182
      %v2192 = vunpack.c.l.s4 1983009808
      %v2193 = vunpack.c.0.s8 %v2192
      %v2194 = vlaneseq
      %v2195 = vshrl.u32 %v2194, 7
      %v2196 = vsub.s32 %v2193, %v2195
      %v2197 = vrot.slane %v2182, %v2196
      %v2199 = vunpack.c.l.s4 1983009808
      %v2200 = vunpack.c.0.s8 %v2199
      %v2201 = vlaneseq
      %v2202 = vshrl.u32 %v2201, 7
      %v2203 = vsub.s32 %v2200, %v2202
      %v2204 = vrot.slane %v2190, %v2203
      %v2205 = vcombine.high %v2197, %v2197
      %2206 = vrot.lane.b32.xlu0 %v2197, 110
      %v2207 = vpop.permute.xlu0 %2206
      %2208 = vrot.lane.b32.xlu0 %v2205, 110
      %v2209 = vpop.permute.xlu0 %2208
      %2210 = vrot.lane.b32.xlu0 %v2204, 110
      %v2211 = vpop.permute.xlu0 %2210
      %vm2212 = vcmask 900096
      %v2213 = vsel %vm2212, %v2207, %v2209
      %v2214 = vsel %vm2212, %v2209, %v2211
      %v2217 = vsel %vm2187, %v2213, 0.0
      %v2218 = vsel %vm2188, %v2214, 0.0
      %v2219 = vadd.f32 %v2168, %v2217
      %v2220 = vadd.f32 %v2169, %v2218
      %v2221 = vld [vmem:[#allocation2 + $0x2] sm:$0x3f]
      %2222 = vset.pattern.permute.xlu0 34
      %2223 = vperm.xlu0 %2222, %v530
      %v2224 = vpop.permute.xlu0 %2223
      %v2226 = vunpack.c.l.s4 269488144
      %v2227 = vunpack.c.0.s8 %v2226
      %v2228 = vlaneseq
      %v2229 = vshrl.u32 %v2228, 7
      %v2230 = vsub.s32 %v2227, %v2229
      %v2231 = vrot.slane %v2224, %v2230
      %v2233 = vmul.f32 %v2221, %v2231
      %vm2234 = vmand %vm512, %vm528
      %vm2235 = vmand %vm513, %vm529
      %v2236 = vsel %vm2234, 1, 0
      %v2237 = vsel %vm2235, 1, 0
      %vm2238 = vcmp.eq.s32.totalorder %v2236, 1
      %vm2239 = vcmp.eq.s32.totalorder %v2237, 1
      %v2241 = vcombine.high %v2233, %v2233
      %v2243 = vunpack.c.l.s4 1983009808
      %v2244 = vunpack.c.0.s8 %v2243
      %v2245 = vlaneseq
      %v2246 = vshrl.u32 %v2245, 7
      %v2247 = vsub.s32 %v2244, %v2246
      %v2248 = vrot.slane %v2233, %v2247
      %v2250 = vunpack.c.l.s4 1983009808
      %v2251 = vunpack.c.0.s8 %v2250
      %v2252 = vlaneseq
      %v2253 = vshrl.u32 %v2252, 7
      %v2254 = vsub.s32 %v2251, %v2253
      %v2255 = vrot.slane %v2241, %v2254
      %v2256 = vcombine.high %v2248, %v2248
      %2257 = vrot.lane.b32.xlu0 %v2248, 109
      %v2258 = vpop.permute.xlu0 %2257
      %2259 = vrot.lane.b32.xlu0 %v2256, 109
      %v2260 = vpop.permute.xlu0 %2259
      %2261 = vrot.lane.b32.xlu0 %v2255, 109
      %v2262 = vpop.permute.xlu0 %2261
      %vm2263 = vcmask 891904
      %v2264 = vsel %vm2263, %v2258, %v2260
      %v2265 = vsel %vm2263, %v2260, %v2262
      %v2268 = vsel %vm2238, %v2264, 0.0
      %v2269 = vsel %vm2239, %v2265, 0.0
      %v2270 = vadd.f32 %v2219, %v2268
      %v2271 = vadd.f32 %v2220, %v2269
      %v2272 = vld [vmem:[#allocation2 + $0x2] sm:$0x3f]
      %2273 = vset.pattern.permute.xlu0 35
      %2274 = vperm.xlu0 %2273, %v530
      %v2275 = vpop.permute.xlu0 %2274
      %v2277 = vunpack.c.l.s4 269488144
      %v2278 = vunpack.c.0.s8 %v2277
      %v2279 = vlaneseq
      %v2280 = vshrl.u32 %v2279, 7
      %v2281 = vsub.s32 %v2278, %v2280
      %v2282 = vrot.slane %v2275, %v2281
      %v2284 = vmul.f32 %v2272, %v2282
      %vm2285 = vmand %vm514, %vm518
      %vm2286 = vmand %vm515, %vm519
      %v2287 = vsel %vm2285, 1, 0
      %v2288 = vsel %vm2286, 1, 0
      %vm2289 = vcmp.eq.s32.totalorder %v2287, 1
      %vm2290 = vcmp.eq.s32.totalorder %v2288, 1
      %v2292 = vcombine.high %v2284, %v2284
      %v2294 = vunpack.c.l.s4 1983009808
      %v2295 = vunpack.c.0.s8 %v2294
      %v2296 = vlaneseq
      %v2297 = vshrl.u32 %v2296, 7
      %v2298 = vsub.s32 %v2295, %v2297
      %v2299 = vrot.slane %v2284, %v2298
      %v2301 = vunpack.c.l.s4 1983009808
      %v2302 = vunpack.c.0.s8 %v2301
      %v2303 = vlaneseq
      %v2304 = vshrl.u32 %v2303, 7
      %v2305 = vsub.s32 %v2302, %v2304
      %v2306 = vrot.slane %v2292, %v2305
      %v2307 = vcombine.high %v2299, %v2299
      %2308 = vrot.lane.b32.xlu0 %v2299, 99
      %v2309 = vpop.permute.xlu0 %2308
      %2310 = vrot.lane.b32.xlu0 %v2307, 99
      %v2311 = vpop.permute.xlu0 %2310
      %2312 = vrot.lane.b32.xlu0 %v2306, 99
      %v2313 = vpop.permute.xlu0 %2312
      %vm2314 = vcmask 809984
      %v2315 = vsel %vm2314, %v2309, %v2311
      %v2316 = vsel %vm2314, %v2311, %v2313
      %v2319 = vsel %vm2289, %v2315, 0.0
      %v2320 = vsel %vm2290, %v2316, 0.0
      %v2321 = vadd.f32 %v2270, %v2319
      %v2322 = vadd.f32 %v2271, %v2320
      %v2323 = vld [vmem:[#allocation2 + $0x2] sm:$0x3f]
      %2324 = vset.pattern.permute.xlu0 36
      %2325 = vperm.xlu0 %2324, %v530
      %v2326 = vpop.permute.xlu0 %2325
      %v2328 = vunpack.c.l.s4 269488144
      %v2329 = vunpack.c.0.s8 %v2328
      %v2330 = vlaneseq
      %v2331 = vshrl.u32 %v2330, 7
      %v2332 = vsub.s32 %v2329, %v2331
      %v2333 = vrot.slane %v2326, %v2332
      %v2335 = vmul.f32 %v2323, %v2333
      %vm2336 = vmand %vm514, %vm520
      %vm2337 = vmand %vm515, %vm521
      %v2338 = vsel %vm2336, 1, 0
      %v2339 = vsel %vm2337, 1, 0
      %vm2340 = vcmp.eq.s32.totalorder %v2338, 1
      %vm2341 = vcmp.eq.s32.totalorder %v2339, 1
      %v2343 = vcombine.high %v2335, %v2335
      %v2345 = vunpack.c.l.s4 1983009808
      %v2346 = vunpack.c.0.s8 %v2345
      %v2347 = vlaneseq
      %v2348 = vshrl.u32 %v2347, 7
      %v2349 = vsub.s32 %v2346, %v2348
      %v2350 = vrot.slane %v2335, %v2349
      %v2352 = vunpack.c.l.s4 1983009808
      %v2353 = vunpack.c.0.s8 %v2352
      %v2354 = vlaneseq
      %v2355 = vshrl.u32 %v2354, 7
      %v2356 = vsub.s32 %v2353, %v2355
      %v2357 = vrot.slane %v2343, %v2356
      %v2358 = vcombine.high %v2350, %v2350
      %2359 = vrot.lane.b32.xlu0 %v2350, 98
      %v2360 = vpop.permute.xlu0 %2359
      %2361 = vrot.lane.b32.xlu0 %v2358, 98
      %v2362 = vpop.permute.xlu0 %2361
      %2363 = vrot.lane.b32.xlu0 %v2357, 98
      %v2364 = vpop.permute.xlu0 %2363
      %vm2365 = vcmask 801792
      %v2366 = vsel %vm2365, %v2360, %v2362
      %v2367 = vsel %vm2365, %v2362, %v2364
      %v2370 = vsel %vm2340, %v2366, 0.0
      %v2371 = vsel %vm2341, %v2367, 0.0
      %v2372 = vadd.f32 %v2321, %v2370
      %v2373 = vadd.f32 %v2322, %v2371
      %v2374 = vld [vmem:[#allocation2 + $0x2] sm:$0x3f]
      %2375 = vset.pattern.permute.xlu0 37
      %2376 = vperm.xlu0 %2375, %v530
      %v2377 = vpop.permute.xlu0 %2376
      %v2379 = vunpack.c.l.s4 269488144
      %v2380 = vunpack.c.0.s8 %v2379
      %v2381 = vlaneseq
      %v2382 = vshrl.u32 %v2381, 7
      %v2383 = vsub.s32 %v2380, %v2382
      %v2384 = vrot.slane %v2377, %v2383
      %v2386 = vmul.f32 %v2374, %v2384
      %vm2387 = vmand %vm514, %vm522
      %vm2388 = vmand %vm515, %vm523
      %v2389 = vsel %vm2387, 1, 0
      %v2390 = vsel %vm2388, 1, 0
      %vm2391 = vcmp.eq.s32.totalorder %v2389, 1
      %vm2392 = vcmp.eq.s32.totalorder %v2390, 1
      %v2394 = vcombine.high %v2386, %v2386
      %v2396 = vunpack.c.l.s4 1983009808
      %v2397 = vunpack.c.0.s8 %v2396
      %v2398 = vlaneseq
      %v2399 = vshrl.u32 %v2398, 7
      %v2400 = vsub.s32 %v2397, %v2399
      %v2401 = vrot.slane %v2386, %v2400
      %v2403 = vunpack.c.l.s4 1983009808
      %v2404 = vunpack.c.0.s8 %v2403
      %v2405 = vlaneseq
      %v2406 = vshrl.u32 %v2405, 7
      %v2407 = vsub.s32 %v2404, %v2406
      %v2408 = vrot.slane %v2394, %v2407
      %v2409 = vcombine.high %v2401, %v2401
      %2410 = vrot.lane.b32.xlu0 %v2401, 97
      %v2411 = vpop.permute.xlu0 %2410
      %2412 = vrot.lane.b32.xlu0 %v2409, 97
      %v2413 = vpop.permute.xlu0 %2412
      %2414 = vrot.lane.b32.xlu0 %v2408, 97
      %v2415 = vpop.permute.xlu0 %2414
      %vm2416 = vcmask 793600
      %v2417 = vsel %vm2416, %v2411, %v2413
      %v2418 = vsel %vm2416, %v2413, %v2415
      %v2421 = vsel %vm2391, %v2417, 0.0
      %v2422 = vsel %vm2392, %v2418, 0.0
      %v2423 = vadd.f32 %v2372, %v2421
      %v2424 = vadd.f32 %v2373, %v2422
      %v2425 = vld [vmem:[#allocation2 + $0x2] sm:$0x3f]
      %2426 = vset.pattern.permute.xlu0 38
      %2427 = vperm.xlu0 %2426, %v530
      %v2428 = vpop.permute.xlu0 %2427
      %v2430 = vunpack.c.l.s4 269488144
      %v2431 = vunpack.c.0.s8 %v2430
      %v2432 = vlaneseq
      %v2433 = vshrl.u32 %v2432, 7
      %v2434 = vsub.s32 %v2431, %v2433
      %v2435 = vrot.slane %v2428, %v2434
      %v2437 = vmul.f32 %v2425, %v2435
      %v2438 = vsel %vm514, 1, 0
      %v2439 = vsel %vm515, 1, 0
      %vm2440 = vcmp.eq.s32.totalorder %v2438, 1
      %vm2441 = vcmp.eq.s32.totalorder %v2439, 1
      %v2443 = vcombine.high %v2437, %v2437
      %v2445 = vunpack.c.l.s4 1983009808
      %v2446 = vunpack.c.0.s8 %v2445
      %v2447 = vlaneseq
      %v2448 = vshrl.u32 %v2447, 7
      %v2449 = vsub.s32 %v2446, %v2448
      %v2450 = vrot.slane %v2437, %v2449
      %v2452 = vunpack.c.l.s4 1983009808
      %v2453 = vunpack.c.0.s8 %v2452
      %v2454 = vlaneseq
      %v2455 = vshrl.u32 %v2454, 7
      %v2456 = vsub.s32 %v2453, %v2455
      %v2457 = vrot.slane %v2443, %v2456
      %v2458 = vcombine.high %v2450, %v2450
      %2459 = vrot.lane.b32.xlu0 %v2450, 96
      %v2460 = vpop.permute.xlu0 %2459
      %2461 = vrot.lane.b32.xlu0 %v2458, 96
      %v2462 = vpop.permute.xlu0 %2461
      %2463 = vrot.lane.b32.xlu0 %v2457, 96
      %v2464 = vpop.permute.xlu0 %2463
      %vm2465 = vcmask 785408
      %v2466 = vsel %vm2465, %v2460, %v2462
      %v2467 = vsel %vm2465, %v2462, %v2464
      %v2470 = vsel %vm2440, %v2466, 0.0
      %v2471 = vsel %vm2441, %v2467, 0.0
      %v2472 = vadd.f32 %v2423, %v2470
      %v2473 = vadd.f32 %v2424, %v2471
      %v2474 = vld [vmem:[#allocation2 + $0x2] sm:$0x3f]
      %2475 = vset.pattern.permute.xlu0 39
      %2476 = vperm.xlu0 %2475, %v530
      %v2477 = vpop.permute.xlu0 %2476
      %v2479 = vunpack.c.l.s4 269488144
      %v2480 = vunpack.c.0.s8 %v2479
      %v2481 = vlaneseq
      %v2482 = vshrl.u32 %v2481, 7
      %v2483 = vsub.s32 %v2480, %v2482
      %v2484 = vrot.slane %v2477, %v2483
      %v2486 = vmul.f32 %v2474, %v2484
      %vm2487 = vmand %vm514, %vm524
      %vm2488 = vmand %vm515, %vm525
      %v2489 = vsel %vm2487, 1, 0
      %v2490 = vsel %vm2488, 1, 0
      %vm2491 = vcmp.eq.s32.totalorder %v2489, 1
      %vm2492 = vcmp.eq.s32.totalorder %v2490, 1
      %v2494 = vcombine.high %v2486, %v2486
      %v2496 = vunpack.c.l.s4 1983009808
      %v2497 = vunpack.c.0.s8 %v2496
      %v2498 = vlaneseq
      %v2499 = vshrl.u32 %v2498, 7
      %v2500 = vsub.s32 %v2497, %v2499
      %v2501 = vrot.slane %v2486, %v2500
      %v2503 = vunpack.c.l.s4 1983009808
      %v2504 = vunpack.c.0.s8 %v2503
      %v2505 = vlaneseq
      %v2506 = vshrl.u32 %v2505, 7
      %v2507 = vsub.s32 %v2504, %v2506
      %v2508 = vrot.slane %v2494, %v2507
      %v2509 = vcombine.high %v2501, %v2501
      %2510 = vrot.lane.b32.xlu0 %v2501, 95
      %v2511 = vpop.permute.xlu0 %2510
      %2512 = vrot.lane.b32.xlu0 %v2509, 95
      %v2513 = vpop.permute.xlu0 %2512
      %2514 = vrot.lane.b32.xlu0 %v2508, 95
      %v2515 = vpop.permute.xlu0 %2514
      %vm2516 = vcmask 777216
      %v2517 = vsel %vm2516, %v2511, %v2513
      %v2518 = vsel %vm2516, %v2513, %v2515
      %v2521 = vsel %vm2491, %v2517, 0.0
      %v2522 = vsel %vm2492, %v2518, 0.0
      %v2523 = vadd.f32 %v2472, %v2521
      %v2524 = vadd.f32 %v2473, %v2522
      %v2525 = vld [vmem:[#allocation2 + $0x2] sm:$0x3f]
      %2526 = vset.pattern.permute.xlu0 40
      %2527 = vperm.xlu0 %2526, %v530
      %v2528 = vpop.permute.xlu0 %2527
      %v2530 = vunpack.c.l.s4 269488144
      %v2531 = vunpack.c.0.s8 %v2530
      %v2532 = vlaneseq
      %v2533 = vshrl.u32 %v2532, 7
      %v2534 = vsub.s32 %v2531, %v2533
      %v2535 = vrot.slane %v2528, %v2534
      %v2537 = vmul.f32 %v2525, %v2535
      %vm2538 = vmand %vm514, %vm526
      %vm2539 = vmand %vm515, %vm527
      %v2540 = vsel %vm2538, 1, 0
      %v2541 = vsel %vm2539, 1, 0
      %vm2542 = vcmp.eq.s32.totalorder %v2540, 1
      %vm2543 = vcmp.eq.s32.totalorder %v2541, 1
      %v2545 = vcombine.high %v2537, %v2537
      %v2547 = vunpack.c.l.s4 1983009808
      %v2548 = vunpack.c.0.s8 %v2547
      %v2549 = vlaneseq
      %v2550 = vshrl.u32 %v2549, 7
      %v2551 = vsub.s32 %v2548, %v2550
      %v2552 = vrot.slane %v2537, %v2551
      %v2554 = vunpack.c.l.s4 1983009808
      %v2555 = vunpack.c.0.s8 %v2554
      %v2556 = vlaneseq
      %v2557 = vshrl.u32 %v2556, 7
      %v2558 = vsub.s32 %v2555, %v2557
      %v2559 = vrot.slane %v2545, %v2558
      %v2560 = vcombine.high %v2552, %v2552
      %2561 = vrot.lane.b32.xlu0 %v2552, 94
      %v2562 = vpop.permute.xlu0 %2561
      %2563 = vrot.lane.b32.xlu0 %v2560, 94
      %v2564 = vpop.permute.xlu0 %2563
      %2565 = vrot.lane.b32.xlu0 %v2559, 94
      %v2566 = vpop.permute.xlu0 %2565
      %vm2567 = vcmask 769024
      %v2568 = vsel %vm2567, %v2562, %v2564
      %v2569 = vsel %vm2567, %v2564, %v2566
      %v2572 = vsel %vm2542, %v2568, 0.0
      %v2573 = vsel %vm2543, %v2569, 0.0
      %v2574 = vadd.f32 %v2523, %v2572
      %v2575 = vadd.f32 %v2524, %v2573
      %v2576 = vld [vmem:[#allocation2 + $0x2] sm:$0x3f]
      %2577 = vset.pattern.permute.xlu0 41
      %2578 = vperm.xlu0 %2577, %v530
      %v2579 = vpop.permute.xlu0 %2578
      %v2581 = vunpack.c.l.s4 269488144
      %v2582 = vunpack.c.0.s8 %v2581
      %v2583 = vlaneseq
      %v2584 = vshrl.u32 %v2583, 7
      %v2585 = vsub.s32 %v2582, %v2584
      %v2586 = vrot.slane %v2579, %v2585
      %v2588 = vmul.f32 %v2576, %v2586
      %vm2589 = vmand %vm514, %vm528
      %vm2590 = vmand %vm515, %vm529
      %v2591 = vsel %vm2589, 1, 0
      %v2592 = vsel %vm2590, 1, 0
      %vm2593 = vcmp.eq.s32.totalorder %v2591, 1
      %vm2594 = vcmp.eq.s32.totalorder %v2592, 1
      %v2596 = vcombine.high %v2588, %v2588
      %v2598 = vunpack.c.l.s4 1983009808
      %v2599 = vunpack.c.0.s8 %v2598
      %v2600 = vlaneseq
      %v2601 = vshrl.u32 %v2600, 7
      %v2602 = vsub.s32 %v2599, %v2601
      %v2603 = vrot.slane %v2588, %v2602
      %v2605 = vunpack.c.l.s4 1983009808
      %v2606 = vunpack.c.0.s8 %v2605
      %v2607 = vlaneseq
      %v2608 = vshrl.u32 %v2607, 7
      %v2609 = vsub.s32 %v2606, %v2608
      %v2610 = vrot.slane %v2596, %v2609
      %v2611 = vcombine.high %v2603, %v2603
      %2612 = vrot.lane.b32.xlu0 %v2603, 93
      %v2613 = vpop.permute.xlu0 %2612
      %2614 = vrot.lane.b32.xlu0 %v2611, 93
      %v2615 = vpop.permute.xlu0 %2614
      %2616 = vrot.lane.b32.xlu0 %v2610, 93
      %v2617 = vpop.permute.xlu0 %2616
      %vm2618 = vcmask 760832
      %v2619 = vsel %vm2618, %v2613, %v2615
      %v2620 = vsel %vm2618, %v2615, %v2617
      %v2623 = vsel %vm2593, %v2619, 0.0
      %v2624 = vsel %vm2594, %v2620, 0.0
      %v2625 = vadd.f32 %v2574, %v2623
      %v2626 = vadd.f32 %v2575, %v2624
      %v2627 = vld [vmem:[#allocation2 + $0x2] sm:$0x3f]
      %2628 = vset.pattern.permute.xlu0 42
      %2629 = vperm.xlu0 %2628, %v530
      %v2630 = vpop.permute.xlu0 %2629
      %v2632 = vunpack.c.l.s4 269488144
      %v2633 = vunpack.c.0.s8 %v2632
      %v2634 = vlaneseq
      %v2635 = vshrl.u32 %v2634, 7
      %v2636 = vsub.s32 %v2633, %v2635
      %v2637 = vrot.slane %v2630, %v2636
      %v2639 = vmul.f32 %v2627, %v2637
      %vm2640 = vmand %vm516, %vm518
      %vm2641 = vmand %vm517, %vm519
      %v2642 = vsel %vm2640, 1, 0
      %v2643 = vsel %vm2641, 1, 0
      %vm2644 = vcmp.eq.s32.totalorder %v2642, 1
      %vm2645 = vcmp.eq.s32.totalorder %v2643, 1
      %v2647 = vcombine.high %v2639, %v2639
      %v2649 = vunpack.c.l.s4 1983009808
      %v2650 = vunpack.c.0.s8 %v2649
      %v2651 = vlaneseq
      %v2652 = vshrl.u32 %v2651, 7
      %v2653 = vsub.s32 %v2650, %v2652
      %v2654 = vrot.slane %v2639, %v2653
      %v2656 = vunpack.c.l.s4 1983009808
      %v2657 = vunpack.c.0.s8 %v2656
      %v2658 = vlaneseq
      %v2659 = vshrl.u32 %v2658, 7
      %v2660 = vsub.s32 %v2657, %v2659
      %v2661 = vrot.slane %v2647, %v2660
      %v2662 = vcombine.high %v2654, %v2654
      %2663 = vrot.lane.b32.xlu0 %v2654, 83
      %v2664 = vpop.permute.xlu0 %2663
      %2665 = vrot.lane.b32.xlu0 %v2662, 83
      %v2666 = vpop.permute.xlu0 %2665
      %2667 = vrot.lane.b32.xlu0 %v2661, 83
      %v2668 = vpop.permute.xlu0 %2667
      %vm2669 = vcmask 678912
      %v2670 = vsel %vm2669, %v2664, %v2666
      %v2671 = vsel %vm2669, %v2666, %v2668
      %v2674 = vsel %vm2644, %v2670, 0.0
      %v2675 = vsel %vm2645, %v2671, 0.0
      %v2676 = vadd.f32 %v2625, %v2674
      %v2677 = vadd.f32 %v2626, %v2675
      %v2678 = vld [vmem:[#allocation2 + $0x2] sm:$0x3f]
      %2679 = vset.pattern.permute.xlu0 43
      %2680 = vperm.xlu0 %2679, %v530
      %v2681 = vpop.permute.xlu0 %2680
      %v2683 = vunpack.c.l.s4 269488144
      %v2684 = vunpack.c.0.s8 %v2683
      %v2685 = vlaneseq
      %v2686 = vshrl.u32 %v2685, 7
      %v2687 = vsub.s32 %v2684, %v2686
      %v2688 = vrot.slane %v2681, %v2687
      %v2690 = vmul.f32 %v2678, %v2688
      %vm2691 = vmand %vm516, %vm520
      %vm2692 = vmand %vm517, %vm521
      %v2693 = vsel %vm2691, 1, 0
      %v2694 = vsel %vm2692, 1, 0
      %vm2695 = vcmp.eq.s32.totalorder %v2693, 1
      %vm2696 = vcmp.eq.s32.totalorder %v2694, 1
      %v2698 = vcombine.high %v2690, %v2690
      %v2700 = vunpack.c.l.s4 1983009808
      %v2701 = vunpack.c.0.s8 %v2700
      %v2702 = vlaneseq
      %v2703 = vshrl.u32 %v2702, 7
      %v2704 = vsub.s32 %v2701, %v2703
      %v2705 = vrot.slane %v2690, %v2704
      %v2707 = vunpack.c.l.s4 1983009808
      %v2708 = vunpack.c.0.s8 %v2707
      %v2709 = vlaneseq
      %v2710 = vshrl.u32 %v2709, 7
      %v2711 = vsub.s32 %v2708, %v2710
      %v2712 = vrot.slane %v2698, %v2711
      %v2713 = vcombine.high %v2705, %v2705
      %2714 = vrot.lane.b32.xlu0 %v2705, 82
      %v2715 = vpop.permute.xlu0 %2714
      %2716 = vrot.lane.b32.xlu0 %v2713, 82
      %v2717 = vpop.permute.xlu0 %2716
      %2718 = vrot.lane.b32.xlu0 %v2712, 82
      %v2719 = vpop.permute.xlu0 %2718
      %vm2720 = vcmask 670720
      %v2721 = vsel %vm2720, %v2715, %v2717
      %v2722 = vsel %vm2720, %v2717, %v2719
      %v2725 = vsel %vm2695, %v2721, 0.0
      %v2726 = vsel %vm2696, %v2722, 0.0
      %v2727 = vadd.f32 %v2676, %v2725
      %v2728 = vadd.f32 %v2677, %v2726
      %v2729 = vld [vmem:[#allocation2 + $0x2] sm:$0x3f]
      %2730 = vset.pattern.permute.xlu0 44
      %2731 = vperm.xlu0 %2730, %v530
      %v2732 = vpop.permute.xlu0 %2731
      %v2734 = vunpack.c.l.s4 269488144
      %v2735 = vunpack.c.0.s8 %v2734
      %v2736 = vlaneseq
      %v2737 = vshrl.u32 %v2736, 7
      %v2738 = vsub.s32 %v2735, %v2737
      %v2739 = vrot.slane %v2732, %v2738
      %v2741 = vmul.f32 %v2729, %v2739
      %vm2742 = vmand %vm516, %vm522
      %vm2743 = vmand %vm517, %vm523
      %v2744 = vsel %vm2742, 1, 0
      %v2745 = vsel %vm2743, 1, 0
      %vm2746 = vcmp.eq.s32.totalorder %v2744, 1
      %vm2747 = vcmp.eq.s32.totalorder %v2745, 1
      %v2749 = vcombine.high %v2741, %v2741
      %v2751 = vunpack.c.l.s4 1983009808
      %v2752 = vunpack.c.0.s8 %v2751
      %v2753 = vlaneseq
      %v2754 = vshrl.u32 %v2753, 7
      %v2755 = vsub.s32 %v2752, %v2754
      %v2756 = vrot.slane %v2741, %v2755
      %v2758 = vunpack.c.l.s4 1983009808
      %v2759 = vunpack.c.0.s8 %v2758
      %v2760 = vlaneseq
      %v2761 = vshrl.u32 %v2760, 7
      %v2762 = vsub.s32 %v2759, %v2761
      %v2763 = vrot.slane %v2749, %v2762
      %v2764 = vcombine.high %v2756, %v2756
      %2765 = vrot.lane.b32.xlu0 %v2756, 81
      %v2766 = vpop.permute.xlu0 %2765
      %2767 = vrot.lane.b32.xlu0 %v2764, 81
      %v2768 = vpop.permute.xlu0 %2767
      %2769 = vrot.lane.b32.xlu0 %v2763, 81
      %v2770 = vpop.permute.xlu0 %2769
      %vm2771 = vcmask 662528
      %v2772 = vsel %vm2771, %v2766, %v2768
      %v2773 = vsel %vm2771, %v2768, %v2770
      %v2776 = vsel %vm2746, %v2772, 0.0
      %v2777 = vsel %vm2747, %v2773, 0.0
      %v2778 = vadd.f32 %v2727, %v2776
      %v2779 = vadd.f32 %v2728, %v2777
      %v2780 = vld [vmem:[#allocation2 + $0x2] sm:$0x3f]
      %2781 = vset.pattern.permute.xlu0 45
      %2782 = vperm.xlu0 %2781, %v530
      %v2783 = vpop.permute.xlu0 %2782
      %v2785 = vunpack.c.l.s4 269488144
      %v2786 = vunpack.c.0.s8 %v2785
      %v2787 = vlaneseq
      %v2788 = vshrl.u32 %v2787, 7
      %v2789 = vsub.s32 %v2786, %v2788
      %v2790 = vrot.slane %v2783, %v2789
      %v2792 = vmul.f32 %v2780, %v2790
      %v2793 = vsel %vm516, 1, 0
      %v2794 = vsel %vm517, 1, 0
      %vm2795 = vcmp.eq.s32.totalorder %v2793, 1
      %vm2796 = vcmp.eq.s32.totalorder %v2794, 1
      %v2798 = vcombine.high %v2792, %v2792
      %v2800 = vunpack.c.l.s4 1983009808
      %v2801 = vunpack.c.0.s8 %v2800
      %v2802 = vlaneseq
      %v2803 = vshrl.u32 %v2802, 7
      %v2804 = vsub.s32 %v2801, %v2803
      %v2805 = vrot.slane %v2792, %v2804
      %v2807 = vunpack.c.l.s4 1983009808
      %v2808 = vunpack.c.0.s8 %v2807
      %v2809 = vlaneseq
      %v2810 = vshrl.u32 %v2809, 7
      %v2811 = vsub.s32 %v2808, %v2810
      %v2812 = vrot.slane %v2798, %v2811
      %v2813 = vcombine.high %v2805, %v2805
      %2814 = vrot.lane.b32.xlu0 %v2805, 80
      %v2815 = vpop.permute.xlu0 %2814
      %2816 = vrot.lane.b32.xlu0 %v2813, 80
      %v2817 = vpop.permute.xlu0 %2816
      %2818 = vrot.lane.b32.xlu0 %v2812, 80
      %v2819 = vpop.permute.xlu0 %2818
      %vm2820 = vcmask 654336
      %v2821 = vsel %vm2820, %v2815, %v2817
      %v2822 = vsel %vm2820, %v2817, %v2819
      %v2825 = vsel %vm2795, %v2821, 0.0
      %v2826 = vsel %vm2796, %v2822, 0.0
      %v2827 = vadd.f32 %v2778, %v2825
      %v2828 = vadd.f32 %v2779, %v2826
      %v2829 = vld [vmem:[#allocation2 + $0x2] sm:$0x3f]
      %2830 = vset.pattern.permute.xlu0 46
      %2831 = vperm.xlu0 %2830, %v530
      %v2832 = vpop.permute.xlu0 %2831
      %v2834 = vunpack.c.l.s4 269488144
      %v2835 = vunpack.c.0.s8 %v2834
      %v2836 = vlaneseq
      %v2837 = vshrl.u32 %v2836, 7
      %v2838 = vsub.s32 %v2835, %v2837
      %v2839 = vrot.slane %v2832, %v2838
      %v2841 = vmul.f32 %v2829, %v2839
      %vm2842 = vmand %vm516, %vm524
      %vm2843 = vmand %vm517, %vm525
      %v2844 = vsel %vm2842, 1, 0
      %v2845 = vsel %vm2843, 1, 0
      %vm2846 = vcmp.eq.s32.totalorder %v2844, 1
      %vm2847 = vcmp.eq.s32.totalorder %v2845, 1
      %v2849 = vcombine.high %v2841, %v2841
      %v2851 = vunpack.c.l.s4 1983009808
      %v2852 = vunpack.c.0.s8 %v2851
      %v2853 = vlaneseq
      %v2854 = vshrl.u32 %v2853, 7
      %v2855 = vsub.s32 %v2852, %v2854
      %v2856 = vrot.slane %v2841, %v2855
      %v2858 = vunpack.c.l.s4 1983009808
      %v2859 = vunpack.c.0.s8 %v2858
      %v2860 = vlaneseq
      %v2861 = vshrl.u32 %v2860, 7
      %v2862 = vsub.s32 %v2859, %v2861
      %v2863 = vrot.slane %v2849, %v2862
      %v2864 = vcombine.high %v2856, %v2856
      %2865 = vrot.lane.b32.xlu0 %v2856, 79
      %v2866 = vpop.permute.xlu0 %2865
      %2867 = vrot.lane.b32.xlu0 %v2864, 79
      %v2868 = vpop.permute.xlu0 %2867
      %2869 = vrot.lane.b32.xlu0 %v2863, 79
      %v2870 = vpop.permute.xlu0 %2869
      %vm2871 = vcmask 646144
      %v2872 = vsel %vm2871, %v2866, %v2868
      %v2873 = vsel %vm2871, %v2868, %v2870
      %v2876 = vsel %vm2846, %v2872, 0.0
      %v2877 = vsel %vm2847, %v2873, 0.0
      %v2878 = vadd.f32 %v2827, %v2876
      %v2879 = vadd.f32 %v2828, %v2877
      %v2880 = vld [vmem:[#allocation2 + $0x2] sm:$0x3f]
      %2881 = vset.pattern.permute.xlu0 47
      %2882 = vperm.xlu0 %2881, %v530
      %v2883 = vpop.permute.xlu0 %2882
      %v2885 = vunpack.c.l.s4 269488144
      %v2886 = vunpack.c.0.s8 %v2885
      %v2887 = vlaneseq
      %v2888 = vshrl.u32 %v2887, 7
      %v2889 = vsub.s32 %v2886, %v2888
      %v2890 = vrot.slane %v2883, %v2889
      %v2892 = vmul.f32 %v2880, %v2890
      %vm2893 = vmand %vm516, %vm526
      %vm2894 = vmand %vm517, %vm527
      %v2895 = vsel %vm2893, 1, 0
      %v2896 = vsel %vm2894, 1, 0
      %vm2897 = vcmp.eq.s32.totalorder %v2895, 1
      %vm2898 = vcmp.eq.s32.totalorder %v2896, 1
      %v2900 = vcombine.high %v2892, %v2892
      %v2902 = vunpack.c.l.s4 1983009808
      %v2903 = vunpack.c.0.s8 %v2902
      %v2904 = vlaneseq
      %v2905 = vshrl.u32 %v2904, 7
      %v2906 = vsub.s32 %v2903, %v2905
      %v2907 = vrot.slane %v2892, %v2906
      %v2909 = vunpack.c.l.s4 1983009808
      %v2910 = vunpack.c.0.s8 %v2909
      %v2911 = vlaneseq
      %v2912 = vshrl.u32 %v2911, 7
      %v2913 = vsub.s32 %v2910, %v2912
      %v2914 = vrot.slane %v2900, %v2913
      %v2915 = vcombine.high %v2907, %v2907
      %2916 = vrot.lane.b32.xlu0 %v2907, 78
      %v2917 = vpop.permute.xlu0 %2916
      %2918 = vrot.lane.b32.xlu0 %v2915, 78
      %v2919 = vpop.permute.xlu0 %2918
      %2920 = vrot.lane.b32.xlu0 %v2914, 78
      %v2921 = vpop.permute.xlu0 %2920
      %vm2922 = vcmask 637952
      %v2923 = vsel %vm2922, %v2917, %v2919
      %v2924 = vsel %vm2922, %v2919, %v2921
      %v2927 = vsel %vm2897, %v2923, 0.0
      %v2928 = vsel %vm2898, %v2924, 0.0
      %v2929 = vadd.f32 %v2878, %v2927
      %v2930 = vadd.f32 %v2879, %v2928
      %v2931 = vld [vmem:[#allocation2 + $0x2] sm:$0x3f]
      %2932 = vset.pattern.permute.xlu0 48
      %2933 = vperm.xlu0 %2932, %v530
      %v2934 = vpop.permute.xlu0 %2933
      %v2936 = vunpack.c.l.s4 269488144
      %v2937 = vunpack.c.0.s8 %v2936
      %v2938 = vlaneseq
      %v2939 = vshrl.u32 %v2938, 7
      %v2940 = vsub.s32 %v2937, %v2939
      %v2941 = vrot.slane %v2934, %v2940
      %v2943 = vmul.f32 %v2931, %v2941
      %vm2944 = vmand %vm516, %vm528
      %vm2945 = vmand %vm517, %vm529
      %v2946 = vsel %vm2944, 1, 0
      %v2947 = vsel %vm2945, 1, 0
      %vm2948 = vcmp.eq.s32.totalorder %v2946, 1
      %vm2949 = vcmp.eq.s32.totalorder %v2947, 1
      %v2951 = vcombine.high %v2943, %v2943
      %v2953 = vunpack.c.l.s4 1983009808
      %v2954 = vunpack.c.0.s8 %v2953
      %v2955 = vlaneseq
      %v2956 = vshrl.u32 %v2955, 7
      %v2957 = vsub.s32 %v2954, %v2956
      %v2958 = vrot.slane %v2943, %v2957
      %v2960 = vunpack.c.l.s4 1983009808
      %v2961 = vunpack.c.0.s8 %v2960
      %v2962 = vlaneseq
      %v2963 = vshrl.u32 %v2962, 7
      %v2964 = vsub.s32 %v2961, %v2963
      %v2965 = vrot.slane %v2951, %v2964
      %v2966 = vcombine.high %v2958, %v2958
      %2967 = vrot.lane.b32.xlu0 %v2958, 77
      %v2968 = vpop.permute.xlu0 %2967
      %2969 = vrot.lane.b32.xlu0 %v2966, 77
      %v2970 = vpop.permute.xlu0 %2969
      %2971 = vrot.lane.b32.xlu0 %v2965, 77
      %v2972 = vpop.permute.xlu0 %2971
      %vm2973 = vcmask 629760
      %v2974 = vsel %vm2973, %v2968, %v2970
      %v2975 = vsel %vm2973, %v2970, %v2972
      %v2978 = vsel %vm2948, %v2974, 0.0
      %v2979 = vsel %vm2949, %v2975, 0.0
      %v2980 = vadd.f32 %v2929, %v2978
      %v2981 = vadd.f32 %v2930, %v2979
      %v2984 = vrot.slane %v2980, 1
      %v2985 = vrot.slane %v2981, 1
      %v2988 = vadd.f32 %v2980, %v2984
      %v2989 = vadd.f32 %v2981, %v2985
      %s2990 = sld [smem:[#allocation3]]
      %v2991 = vstv %s2990
      %v2992 = vadd.f32 %v2988, %v2991
      %v2993 = vadd.f32 %v2989, %v2991
      %v2994 = vsub.f32 0.0, %v2992
      %v2995 = vsub.f32 0.0, %v2993
      %v2996 = vmul.f32 %v2994, 1.442695
      %v2997 = vpow.pop %v2996
      %v2998 = vmul.f32 %v2995, 1.442695
      %v2999 = vpow.pop %v2998
      %v3000 = vadd.f32 %v2997, 1.0
      %v3001 = vadd.f32 %v2999, 1.0
      %v3002 = vrcp.pop %v3000
      %v3003 = vmul.f32 1.0, %v3002
      %v3004 = vrcp.pop %v3001
      %v3005 = vmul.f32 1.0, %v3004
      %v3006 = vlaneseq
      %v3007 = vshrl.u32 %v3006, 7
      %v3008 = vsub.s32 0, %v3007
      %v3009 = vrot.slane %v3003, %v3008
      %v3010 = vlaneseq
      %v3011 = vshrl.u32 %v3010, 7
      %v3012 = vsub.s32 0, %v3011
      %v3013 = vrot.slane %v3005, %v3012
      %v3014 = vmul.f32 %v406, %v3009
      %v3015 = vmul.f32 %v407, %v3013
      %v3016 = vmul.f32 %v408, %v3009
      %v3017 = vmul.f32 %v409, %v3013
      %v3018 = vmul.f32 %v410, %v3009
      %v3019 = vmul.f32 %v411, %v3013
      %v3020 = vmul.f32 %v412, %v3009
      %v3021 = vmul.f32 %v413, %v3013
      %3022 = vst [vmem:[%s279] sm:$0xff] %v3014
      %3023 = vst [vmem:[%s279 + $0x8] sm:$0xff] %v3015
      %3024 = vst [vmem:[%s279 + $0x10] sm:$0xff] %v3016
      %3025 = vst [vmem:[%s279 + $0x18] sm:$0xff] %v3017
      %3026 = vst [vmem:[%s279 + $0x20] sm:$0xff] %v3018
      %3027 = vst [vmem:[%s279 + $0x28] sm:$0xff] %v3019
      %3028 = vst [vmem:[%s279 + $0x30] sm:$0xff] %v3020
      %3029 = vst [vmem:[%s279 + $0x38] sm:$0xff] %v3021
      %p3030 = scmp.lt.s32.totalorder %s19, 1
      %s3031 = scalar_select %p3030, %s19, 1
      %s3032 = smul.addr %s3031, 8
      %s3033 = smul.addr %s3032, 8
      %s3034 = scalar_lea.vmem %s7, %s3033
      // Predicated region
      $region49: #{attention_block_forward.1} parent=47 // pred_check
        %p3035 = pneg %p189
      $region50: #{attention_block_forward.1} parent=47 // pred_check_branch
        %3037 = sbr.rel (%p3035) target = $region52
      $region51: #{attention_block_forward.1} parent=47 // pred_region
        _
      $region52: #{attention_block_forward.1} parent=47 // pred_fallthru
        _
    $region48: #{attention_block_forward.1} parent=5 // pred_fallthru
      _
    %p3038 = scmp.le.s32.totalorder 2, %s14
    // Predicated region
    $region53: #{attention_block_forward.1} parent=5 // pred_check
      %p3039 = pneg %p3038
    $region54: #{attention_block_forward.1} parent=5 // pred_check_branch
      %3041 = sbr.rel (%p3039) target = $region56
    $region55: #{attention_block_forward.1} parent=5 // pred_region
      %s3042 = ssub.s32 %s14, 2
      // Predicated region
      $region57: #{attention_block_forward.1} parent=55 // pred_check
        %p3043 = pneg %p195
      $region58: #{attention_block_forward.1} parent=55 // pred_check_branch
        %3045 = sbr.rel (%p3043) target = $region60
      $region59: #{attention_block_forward.1} parent=55 // pred_region
        %p3046 = scmp.lt.s32.totalorder %s20, 1
        %s3047 = scalar_select %p3046, %s20, 1
        %s3048 = smul.addr %s3047, 8
        %s3049 = smul.addr %s3048, 8
        %s3050 = scalar_lea.vmem %s7, %s3049
      $region60: #{attention_block_forward.1} parent=55 // pred_fallthru
        _
    $region56: #{attention_block_forward.1} parent=5 // pred_fallthru
      _
  $region6: #{attention_block_forward.1} parent=0 // loop_footer
    %s18 = sadd.s32 1, %s14
  $region7: #{attention_block_forward.1} parent=0 // loop_footer_branch
    %13 = sbr.rel target = $region3
  $region8: #{attention_block_forward.1} parent=0 // loop_exit
    _

</llo_original>
